<compile_context>
chip_gen: v5e
topology: v5e:2x2
jax: 0.10.0
libtpu: 0.0.40
codegen_flags: <defaults>
</compile_context>

<pallas_src>
import numpy as np
import jax
import jax.numpy as jnp
from jax import lax
from jax.experimental import pallas as pl
from jax.experimental.pallas import tpu as pltpu

FEAT_DIM = 1024      # feat_dim in the reference script
EMB = 256            # params.embedding_size
OUT = 9              # high_encoder output width
LANE = 128           # lane width / padded output width
BN_EPS = 1e-5
_INV_SQRT2 = 0.7071067811865476
_VMEM_LIMIT = 64 * 1024 * 1024       # explicit scoped-VMEM limit (v7x has 64 MiB physical)
_X_TILE_BYTES = 4 * 1024 * 1024      # per-step x-tile budget (bf16); Pallas double-buffers


def _gelu_exact(x):
    return 0.5 * x * (1.0 + lax.erf(x * _INV_SQRT2))


# ---------------- kernel 1: attention pooling (gridded, online softmax) ----------------
def _pool_kernel(pw_ref, x_ref, pooled_ref, m_sc, l_sc, acc_sc):
    """Grid = (batch_tiles, seq_tiles); seq axis is the accumulation ('arbitrary') axis.

    pw_ref : (tB, 1, F)  bf16   pool weight, pre-broadcast over the batch tile (hoisted)
    x_ref  : (tB, tS, F) bf16   streamed input tile
    pooled_ref : (tB, 1, F) f32 output, resident across the seq axis
    m_sc/l_sc  : (tB, 1, 1) f32 running max / softmax denominator
    acc_sc     : (tB, 1, F) f32 running weighted sum of x
    """
    s_idx = pl.program_id(1)

    @pl.when(s_idx == 0)
    def _():
        m_sc[...] = jnp.full_like(m_sc, -jnp.inf)
        l_sc[...] = jnp.zeros_like(l_sc)
        acc_sc[...] = jnp.zeros_like(acc_sc)

    x = x_ref[...]                                               # (tB, tS, F) bf16
    # attention logits on the MXU (flash-style q@k^T with q := pool weight, q-len = 1)
    s_blk = jnp.einsum('bqf,bsf->bqs', pw_ref[...], x,
                       preferred_element_type=jnp.float32)       # (tB, 1, tS) f32
    m_new = jnp.maximum(m_sc[...], s_blk.max(-1, keepdims=True))
    alpha = jnp.exp(m_sc[...] - m_new)                           # rescale of old state
    p = jnp.exp(s_blk - m_new)                                   # (tB, 1, tS) f32
    l_sc[...] = alpha * l_sc[...] + p.sum(-1, keepdims=True)
    # weighted sum over seqlen, also on the MXU (bf16 operands, f32 accumulation)
    acc_sc[...] = alpha * acc_sc[...] + jnp.einsum(
        'bqs,bsf->bqf', p.astype(x.dtype), x,
        preferred_element_type=jnp.float32)                      # (tB, 1, F)
    m_sc[...] = m_new

    @pl.when(s_idx == pl.num_programs(1) - 1)
    def _():
        pooled_ref[...] = acc_sc[...] * pl.reciprocal(l_sc[...], approx=True)


# ---------------- kernel 2: MLP head (needs full-batch BN statistics) ----------------
def _head_kernel(pooled_ref, w1_ref, b1_ref, g1_ref, be1_ref,
                 w2_ref, b2_ref, g2_ref, be2_ref, out_ref):
    """Linear(F,E) + BN(E) + GELU + Linear(E,128-padded) + BN + Sigmoid, lane-dense out."""
    pooled = pooled_ref[...]                                     # (B, F) f32
    # MXU matmuls with bf16 inputs, f32 accumulation; BN/GELU math stays in f32 (v5e-safe).
    h = jnp.dot(pooled.astype(jnp.bfloat16), w1_ref[...],
                preferred_element_type=jnp.float32) + b1_ref[...]        # (B, E)
    mu = jnp.mean(h, axis=0, keepdims=True)
    var = jnp.mean(jnp.square(h - mu), axis=0, keepdims=True)            # biased var
    h = (h - mu) * lax.rsqrt(var + BN_EPS) * g1_ref[...] + be1_ref[...]
    h = _gelu_exact(h)

    y = jnp.dot(h.astype(jnp.bfloat16), w2_ref[...],
                preferred_element_type=jnp.float32) + b2_ref[...]        # (B, 128)
    mu2 = jnp.mean(y, axis=0, keepdims=True)
    var2 = jnp.mean(jnp.square(y - mu2), axis=0, keepdims=True)
    y = (y - mu2) * lax.rsqrt(var2 + BN_EPS) * g2_ref[...] + be2_ref[...]
    out_ref[...] = jax.nn.sigmoid(y).astype(out_ref.dtype)               # (B, 128)


# ---------------- parameter preparation (done once, outside the hot path) ----------------
def prepare_params(p):
    """Cast matmul weights to bf16 and zero-pad the 9-wide head parameters to 128 lanes
    so the second matmul / BN / sigmoid are lane-dense (unmasked vector stores)."""
    def pad_row(a):          # (1, OUT) f32 -> (1, LANE) f32, zero padded
        return jnp.pad(a.astype(jnp.float32), ((0, 0), (0, LANE - OUT)))

    return {
        'pw':     p['pool_w'].reshape(1, 1, FEAT_DIM).astype(jnp.bfloat16),
        'w1':     p['w1'].astype(jnp.bfloat16),                  # (F, E)
        'b1':     p['b1'].astype(jnp.float32),                   # (1, E)
        'gamma1': p['gamma1'].astype(jnp.float32),
        'beta1':  p['beta1'].astype(jnp.float32),
        'w2p':    jnp.pad(p['w2'], ((0, 0), (0, LANE - OUT))).astype(jnp.bfloat16),
        'b2p':    pad_row(p['b2']),
        'g2p':    pad_row(p['gamma2']),
        'be2p':   pad_row(p['beta2']),
    }


# ---------------- block-size selection ----------------
def _largest_divisor(n, cap, multiple_of=1):
    best = None
    for d in range(1, min(n, cap) + 1):
        if n % d == 0 and d % multiple_of == 0:
            best = d
    return best


def _choose_blocks(B, S, block_b, block_s):
    if block_b is None:
        block_b = _largest_divisor(B, 8) or B                 # batch tile <= 8
    if block_s is None:
        cap = max(16, _X_TILE_BYTES // (block_b * FEAT_DIM * 2))   # bf16 bytes per row
        bs = _largest_divisor(S, cap, multiple_of=16)         # bf16 sublane packing
        block_s = bs if bs is not None else S                 # fall back to full extent
    return block_b, block_s


# ---------------- wrapper ----------------
def stacked_forward(x, kp, *, block_b=None, block_s=None):
    """x: [B, S, FEAT_DIM] f32, kp: prepare_params(...) output. Returns {'high': [B, 9]}."""
    B, S, F = x.shape
    assert F == FEAT_DIM
    # Training-mode BatchNorm needs batch >= 2 (PyTorch raises for B == 1 as well).
    assert B >= 2
    block_b, block_s = _choose_blocks(B, S, block_b, block_s)
    assert B % block_b == 0 and S % block_s == 0, "block sizes must divide B and S"
    assert block_s % 16 == 0 or block_s == S, "bf16 sublane packing wants block_s % 16 == 0"

    x_bf = x.astype(jnp.bfloat16)         # halves the dominant HBM stream (B*S*F bytes)
    # Broadcast of the pool weight over the batch tile is hoisted out of the kernel
    # (tiny XLA op: block_b * F bf16 bytes), so no per-grid-step broadcast happens.
    pw_q = jnp.broadcast_to(kp['pw'], (block_b, 1, FEAT_DIM))
    n_b, n_s = B // block_b, S // block_s

    pooled3 = pl.pallas_call(
        _pool_kernel,
        out_shape=jax.ShapeDtypeStruct((B, 1, FEAT_DIM), jnp.float32),
        grid_spec=pltpu.PrefetchScalarGridSpec(
            num_scalar_prefetch=0,
            grid=(n_b, n_s),                              # reduction (seq) axis last
            in_specs=[
                pl.BlockSpec((block_b, 1, FEAT_DIM), lambda b, s: (0, 0, 0)),        # pw (resident)
                pl.BlockSpec((block_b, block_s, FEAT_DIM), lambda b, s: (b, s, 0)),  # x tile
            ],
            out_specs=pl.BlockSpec((block_b, 1, FEAT_DIM), lambda b, s: (b, 0, 0)),
            scratch_shapes=[
                pltpu.VMEM((block_b, 1, 1), jnp.float32),        # running max
                pltpu.VMEM((block_b, 1, 1), jnp.float32),        # running denominator
                pltpu.VMEM((block_b, 1, FEAT_DIM), jnp.float32), # pooled accumulator
            ]),
        compiler_params=pltpu.CompilerParams(
            dimension_semantics=("parallel", "arbitrary"),       # batch axis -> v7x megacore
            vmem_limit_bytes=_VMEM_LIMIT),
    )(pw_q, x_bf)

    pooled = pooled3.reshape(B, FEAT_DIM)                        # cheap XLA reshape

    vmem = pl.BlockSpec(memory_space=pltpu.MemorySpace.VMEM)
    head_args = (pooled, kp['w1'], kp['b1'], kp['gamma1'], kp['beta1'],
                 kp['w2p'], kp['b2p'], kp['g2p'], kp['be2p'])
    out_pad = pl.pallas_call(
        _head_kernel,
        out_shape=jax.ShapeDtypeStruct((B, LANE), jnp.float32),  # lane-dense output slab
        in_specs=[vmem] * len(head_args),
        out_specs=vmem,
        compiler_params=pltpu.CompilerParams(vmem_limit_bytes=_VMEM_LIMIT),
    )(*head_args)

    return {'high': out_pad[:, :OUT]}


# ---------------- pure-JAX reference (f32, mirrors the PyTorch forward) ----------------
def reference_forward(x, p):
    scores = jnp.einsum('bsf,f->bs', x, p['pool_w'][0])
    attn = jax.nn.softmax(scores, axis=1)
    pooled = jnp.einsum('bs,bsf->bf', attn, x)

    h = pooled @ p['w1'] + p['b1'][0]
    mu, var = jnp.mean(h, axis=0), jnp.var(h, axis=0)
    h = (h - mu) / jnp.sqrt(var + BN_EPS) * p['gamma1'][0] + p['beta1'][0]
    h = 0.5 * h * (1.0 + jax.scipy.special.erf(h * _INV_SQRT2))

    y = h @ p['w2'] + p['b2'][0]
    mu2, var2 = jnp.mean(y, axis=0), jnp.var(y, axis=0)
    y = (y - mu2) / jnp.sqrt(var2 + BN_EPS) * p['gamma2'][0] + p['beta2'][0]
    return jax.nn.sigmoid(y)


if __name__ == "__main__":
    key = jax.random.PRNGKey(0)
    B, S = 16, 32                       # small demo shapes; batch kept a multiple of 8
    block_b, block_s = 8, 16            # grid = (2, 2): exercises both grid axes
    k = jax.random.split(key, 6)

    def _uniform(kk, shape, fan_in):
        bound = 1.0 / np.sqrt(fan_in)
        return jax.random.uniform(kk, shape, jnp.float32, -bound, bound)

    x = jax.random.normal(k[0], (B, S, FEAT_DIM), jnp.float32)

    # Fresh-nn.Module-style init: PyTorch uniform for Linear, gamma=1 / beta=0 for BN.
    params = {
        'pool_w': _uniform(k[1], (1, FEAT_DIM), FEAT_DIM),    # Linear(F,1,bias=False).weight
        'w1':     _uniform(k[2], (FEAT_DIM, EMB), FEAT_DIM),  # Linear(F,E).weight^T
        'b1':     _uniform(k[3], (1, EMB), FEAT_DIM),
        'gamma1': jnp.ones((1, EMB), jnp.float32),
        'beta1':  jnp.zeros((1, EMB), jnp.float32),
        'w2':     _uniform(k[4], (EMB, OUT), EMB),            # Linear(E,9).weight^T
        'b2':     _uniform(k[5], (1, OUT), EMB),
        'gamma2': jnp.ones((1, OUT), jnp.float32),
        'beta2':  jnp.zeros((1, OUT), jnp.float32),
    }

    kparams = prepare_params(params)                          # one-time prep (cast / pad)
    fwd = jax.jit(lambda xx, pp: stacked_forward(xx, pp, block_b=block_b, block_s=block_s))

    out = fwd(x, kparams)['high']
    jax.block_until_ready(out)

    ref = reference_forward(x, params)
    # bf16 MXU operands (x, pool_w, w1, w2, pooled, h) -> relaxed tolerance vs f32 ref.
    np.testing.assert_allclose(np.asarray(out), np.asarray(ref), rtol=2e-2, atol=2e-2)
    print("KERNEL_OK")
</pallas_src>

<mosaic_0001>
module attributes {stable_mosaic.version = 11 : i64} {
  func.func @_pool_kernel(%arg0: i32, %arg1: i32, %arg2: memref<8x1x1024xbf16, #tpu.memory_space<vmem>>, %arg3: memref<8x16x1024xbf16, #tpu.memory_space<vmem>>, %arg4: memref<8x1x1024xf32, #tpu.memory_space<vmem>>, %arg5: memref<8x1x1xf32, #tpu.memory_space<vmem>>, %arg6: memref<8x1x1xf32, #tpu.memory_space<vmem>>, %arg7: memref<8x1x1024xf32, #tpu.memory_space<vmem>>) attributes {dimension_semantics = [#tpu.dimension_semantics<parallel>, #tpu.dimension_semantics<arbitrary>], iteration_bounds = array<i64: 2, 2>, scalar_prefetch = 0 : i64, scratch_operands = 3 : i64, tpu.core_type = #tpu.core_type<tc>, window_params = [{pipeline_mode = #tpu.pipeline_mode<synchronous>, transform_indices = @transform_0, window_bounds = array<i64: 8, 1, 1024>}, {transform_indices = @transform_1, window_bounds = array<i64: 8, 16, 1024>}, {transform_indices = @transform_2, window_bounds = array<i64: 8, 1, 1024>}]} {
    %c0_i32 = arith.constant 0 : i32
    %0 = arith.cmpi eq, %arg1, %c0_i32 : i32
    %1 = arith.extui %0 : i1 to i32
    %c0_i32_0 = arith.constant 0 : i32
    %2 = arith.cmpi ne, %1, %c0_i32_0 : i32
    scf.if %2 {
      %cst_31 = arith.constant 0xFF800000 : f32
      %33 = vector.broadcast %cst_31 : f32 to vector<8x1x1xf32>
      %c0_32 = arith.constant 0 : index
      %c0_33 = arith.constant 0 : index
      %c0_34 = arith.constant 0 : index
      %34 = vector.load %arg5[%c0_32, %c0_33, %c0_34] : memref<8x1x1xf32, #tpu.memory_space<vmem>>, vector<8x1x1xf32>
      tpu.vector_store %arg5[%c0_32, %c0_33, %c0_34], %33 {strides = array<i32>} : memref<8x1x1xf32, #tpu.memory_space<vmem>>, vector<8x1x1xf32>,
      %cst_35 = arith.constant 0.000000e+00 : f32
      %35 = vector.broadcast %cst_35 : f32 to vector<8x1x1xf32>
      %c0_36 = arith.constant 0 : index
      %c0_37 = arith.constant 0 : index
      %c0_38 = arith.constant 0 : index
      %36 = vector.load %arg6[%c0_36, %c0_37, %c0_38] : memref<8x1x1xf32, #tpu.memory_space<vmem>>, vector<8x1x1xf32>
      tpu.vector_store %arg6[%c0_36, %c0_37, %c0_38], %35 {strides = array<i32>} : memref<8x1x1xf32, #tpu.memory_space<vmem>>, vector<8x1x1xf32>,
      %cst_39 = arith.constant 0.000000e+00 : f32
      %37 = vector.broadcast %cst_39 : f32 to vector<8x1x1024xf32>
      %c0_40 = arith.constant 0 : index
      %c0_41 = arith.constant 0 : index
      %c0_42 = arith.constant 0 : index
      %38 = vector.load %arg7[%c0_40, %c0_41, %c0_42] : memref<8x1x1024xf32, #tpu.memory_space<vmem>>, vector<8x1x1024xf32>
      tpu.vector_store %arg7[%c0_40, %c0_41, %c0_42], %37 {strides = array<i32>} : memref<8x1x1024xf32, #tpu.memory_space<vmem>>, vector<8x1x1024xf32>,
    } else {
    }
    %c0 = arith.constant 0 : index
    %c0_1 = arith.constant 0 : index
    %c0_2 = arith.constant 0 : index
    %3 = vector.load %arg3[%c0, %c0_1, %c0_2] : memref<8x16x1024xbf16, #tpu.memory_space<vmem>>, vector<8x16x1024xbf16>
    %c0_3 = arith.constant 0 : index
    %c0_4 = arith.constant 0 : index
    %c0_5 = arith.constant 0 : index
    %4 = vector.load %arg2[%c0_3, %c0_4, %c0_5] : memref<8x1x1024xbf16, #tpu.memory_space<vmem>>, vector<8x1x1024xbf16>
    "tpu.trace_start"() <{level = 10 : i32, message = "bqf,bsf->bqs"}> : () -> ()
    %cst = arith.constant dense<0.000000e+00> : vector<8x1x16xf32>
    %5 = tpu.matmul %4, %3, %cst {dimension_numbers = #tpu.dot_dimension_numbers<[2], [2], [1], [1], [0, 0, 0, 1, 1, 1], [0], [0]>} : vector<8x1x1024xbf16>, vector<8x16x1024xbf16>, vector<8x1x16xf32> -> vector<8x1x16xf32>
    "tpu.trace_stop"() : () -> ()
    %c0_6 = arith.constant 0 : index
    %c0_7 = arith.constant 0 : index
    %c0_8 = arith.constant 0 : index
    %6 = vector.load %arg5[%c0_6, %c0_7, %c0_8] : memref<8x1x1xf32, #tpu.memory_space<vmem>>, vector<8x1x1xf32>
    %cst_9 = arith.constant dense<0xFF800000> : vector<8x1xf32>
    %7 = vector.multi_reduction <maximumf>, %5, %cst_9 [2] : vector<8x1x16xf32> to vector<8x1xf32>
    %8 = vector.shape_cast %7 : vector<8x1xf32> to vector<8x1x1xf32>
    %9 = arith.maximumf %6, %8 : vector<8x1x1xf32>
    %c0_10 = arith.constant 0 : index
    %c0_11 = arith.constant 0 : index
    %c0_12 = arith.constant 0 : index
    %10 = vector.load %arg5[%c0_10, %c0_11, %c0_12] : memref<8x1x1xf32, #tpu.memory_space<vmem>>, vector<8x1x1xf32>
    %11 = arith.subf %10, %9 : vector<8x1x1xf32>
    %12 = math.exp %11 : vector<8x1x1xf32>
    %13 = vector.broadcast %9 : vector<8x1x1xf32> to vector<8x1x16xf32>
    %14 = arith.subf %5, %13 : vector<8x1x16xf32>
    %15 = math.exp %14 : vector<8x1x16xf32>
    %c0_13 = arith.constant 0 : index
    %c0_14 = arith.constant 0 : index
    %c0_15 = arith.constant 0 : index
    %16 = vector.load %arg6[%c0_13, %c0_14, %c0_15] : memref<8x1x1xf32, #tpu.memory_space<vmem>>, vector<8x1x1xf32>
    %17 = arith.mulf %12, %16 : vector<8x1x1xf32>
    %cst_16 = arith.constant dense<0.000000e+00> : vector<8x1xf32>
    %18 = vector.multi_reduction <add>, %15, %cst_16 [2] : vector<8x1x16xf32> to vector<8x1xf32>
    %19 = vector.shape_cast %18 : vector<8x1xf32> to vector<8x1x1xf32>
    %20 = arith.addf %17, %19 : vector<8x1x1xf32>
    %c0_17 = arith.constant 0 : index
    %c0_18 = arith.constant 0 : index
    %c0_19 = arith.constant 0 : index
    %21 = vector.load %arg6[%c0_17, %c0_18, %c0_19] : memref<8x1x1xf32, #tpu.memory_space<vmem>>, vector<8x1x1xf32>
    tpu.vector_store %arg6[%c0_17, %c0_18, %c0_19], %20 {strides = array<i32>} : memref<8x1x1xf32, #tpu.memory_space<vmem>>, vector<8x1x1xf32>,
    %c0_20 = arith.constant 0 : index
    %c0_21 = arith.constant 0 : index
    %c0_22 = arith.constant 0 : index
    %22 = vector.load %arg7[%c0_20, %c0_21, %c0_22] : memref<8x1x1024xf32, #tpu.memory_space<vmem>>, vector<8x1x1024xf32>
    %23 = vector.broadcast %12 : vector<8x1x1xf32> to vector<8x1x1024xf32>
    %24 = arith.mulf %23, %22 : vector<8x1x1024xf32>
    %25 = arith.truncf %15 : vector<8x1x16xf32> to vector<8x1x16xbf16>
    "tpu.trace_start"() <{level = 10 : i32, message = "bqs,bsf->bqf"}> : () -> ()
    %cst_23 = arith.constant dense<0.000000e+00> : vector<8x1x1024xf32>
    %26 = tpu.matmul %25, %3, %cst_23 {dimension_numbers = #tpu.dot_dimension_numbers<[2], [1], [1], [2], [0, 0, 0, 1, 1, 2], [0], [0]>} : vector<8x1x16xbf16>, vector<8x16x1024xbf16>, vector<8x1x1024xf32> -> vector<8x1x1024xf32>
    "tpu.trace_stop"() : () -> ()
    %27 = arith.addf %24, %26 : vector<8x1x1024xf32>
    %c0_24 = arith.constant 0 : index
    %c0_25 = arith.constant 0 : index
    %c0_26 = arith.constant 0 : index
    %28 = vector.load %arg7[%c0_24, %c0_25, %c0_26] : memref<8x1x1024xf32, #tpu.memory_space<vmem>>, vector<8x1x1024xf32>
    tpu.vector_store %arg7[%c0_24, %c0_25, %c0_26], %27 {strides = array<i32>} : memref<8x1x1024xf32, #tpu.memory_space<vmem>>, vector<8x1x1024xf32>,
    %c0_27 = arith.constant 0 : index
    %c0_28 = arith.constant 0 : index
    %c0_29 = arith.constant 0 : index
    %29 = vector.load %arg5[%c0_27, %c0_28, %c0_29] : memref<8x1x1xf32, #tpu.memory_space<vmem>>, vector<8x1x1xf32>
    tpu.vector_store %arg5[%c0_27, %c0_28, %c0_29], %9 {strides = array<i32>} : memref<8x1x1xf32, #tpu.memory_space<vmem>>, vector<8x1x1xf32>,
    %c1_i32 = arith.constant 1 : i32
    %30 = arith.cmpi eq, %arg1, %c1_i32 : i32
    %31 = arith.extui %30 : i1 to i32
    %c0_i32_30 = arith.constant 0 : i32
    %32 = arith.cmpi ne, %31, %c0_i32_30 : i32
    scf.if %32 {
      %c0_31 = arith.constant 0 : index
      %c0_32 = arith.constant 0 : index
      %c0_33 = arith.constant 0 : index
      %33 = vector.load %arg7[%c0_31, %c0_32, %c0_33] : memref<8x1x1024xf32, #tpu.memory_space<vmem>>, vector<8x1x1024xf32>
      %c0_34 = arith.constant 0 : index
      %c0_35 = arith.constant 0 : index
      %c0_36 = arith.constant 0 : index
      %34 = vector.load %arg6[%c0_34, %c0_35, %c0_36] : memref<8x1x1xf32, #tpu.memory_space<vmem>>, vector<8x1x1xf32>
      %35 = tpu.reciprocal %34 {approx = true} : vector<8x1x1xf32> -> vector<8x1x1xf32>
      %36 = vector.broadcast %35 : vector<8x1x1xf32> to vector<8x1x1024xf32>
      %37 = arith.mulf %33, %36 : vector<8x1x1024xf32>
      %c0_37 = arith.constant 0 : index
      %c0_38 = arith.constant 0 : index
      %c0_39 = arith.constant 0 : index
      %38 = vector.load %arg4[%c0_37, %c0_38, %c0_39] : memref<8x1x1024xf32, #tpu.memory_space<vmem>>, vector<8x1x1024xf32>
      tpu.vector_store %arg4[%c0_37, %c0_38, %c0_39], %37 {strides = array<i32>} : memref<8x1x1024xf32, #tpu.memory_space<vmem>>, vector<8x1x1024xf32>,
    } else {
    }
    return
  }
  func.func @transform_0(%arg0: i32, %arg1: i32) -> (i32, i32, i32) {
    %c0_i32 = arith.constant 0 : i32
    %c0_i32_0 = arith.constant 0 : i32
    %c0_i32_1 = arith.constant 0 : i32
    %c0_i32_2 = arith.constant 0 : i32
    return %c0_i32, %c0_i32_0, %c0_i32_1 : i32, i32, i32
  }
  func.func @transform_1(%arg0: i32, %arg1: i32) -> (i32, i32, i32) {
    %c0_i32 = arith.constant 0 : i32
    %c0_i32_0 = arith.constant 0 : i32
    return %arg0, %arg1, %c0_i32 : i32, i32, i32
  }
  func.func @transform_2(%arg0: i32, %arg1: i32) -> (i32, i32, i32) {
    %c0_i32 = arith.constant 0 : i32
    %c0_i32_0 = arith.constant 0 : i32
    %c0_i32_1 = arith.constant 0 : i32
    return %arg0, %c0_i32, %c0_i32_0 : i32, i32, i32
  }
}

module attributes {stable_mosaic.version = 11 : i64} {
  func.func @_head_kernel(%arg0: memref<16x1024xf32, #tpu.memory_space<vmem>>, %arg1: memref<1024x256xbf16, #tpu.memory_space<vmem>>, %arg2: memref<1x256xf32, #tpu.memory_space<vmem>>, %arg3: memref<1x256xf32, #tpu.memory_space<vmem>>, %arg4: memref<1x256xf32, #tpu.memory_space<vmem>>, %arg5: memref<256x128xbf16, #tpu.memory_space<vmem>>, %arg6: memref<1x128xf32, #tpu.memory_space<vmem>>, %arg7: memref<1x128xf32, #tpu.memory_space<vmem>>, %arg8: memref<1x128xf32, #tpu.memory_space<vmem>>, %arg9: memref<16x128xf32, #tpu.memory_space<vmem>>) attributes {dimension_semantics = [], scalar_prefetch = 0 : i64, scratch_operands = 0 : i64, tpu.core_type = #tpu.core_type<tc>} {
    %c0 = arith.constant 0 : index
    %c0_0 = arith.constant 0 : index
    %0 = vector.load %arg0[%c0, %c0_0] : memref<16x1024xf32, #tpu.memory_space<vmem>>, vector<16x1024xf32>
    %1 = arith.truncf %0 : vector<16x1024xf32> to vector<16x1024xbf16>
    %c0_1 = arith.constant 0 : index
    %c0_2 = arith.constant 0 : index
    %2 = vector.load %arg1[%c0_1, %c0_2] : memref<1024x256xbf16, #tpu.memory_space<vmem>>, vector<1024x256xbf16>
    %cst = arith.constant dense<0.000000e+00> : vector<16x256xf32>
    %3 = tpu.matmul %1, %2, %cst {dimension_numbers = #tpu.dot_dimension_numbers<[1], [0], [0], [1], [0, 0, 1, 1], [], []>} : vector<16x1024xbf16>, vector<1024x256xbf16>, vector<16x256xf32> -> vector<16x256xf32>
    %c0_3 = arith.constant 0 : index
    %c0_4 = arith.constant 0 : index
    %4 = vector.load %arg2[%c0_3, %c0_4] : memref<1x256xf32, #tpu.memory_space<vmem>>, vector<1x256xf32>
    %5 = vector.broadcast %4 : vector<1x256xf32> to vector<16x256xf32>
    %6 = arith.addf %3, %5 : vector<16x256xf32>
    %cst_5 = arith.constant dense<0.000000e+00> : vector<256xf32>
    %7 = vector.multi_reduction <add>, %6, %cst_5 [0] : vector<16x256xf32> to vector<256xf32>
    %8 = vector.shape_cast %7 : vector<256xf32> to vector<1x256xf32>
    %cst_6 = arith.constant 1.600000e+01 : f32
    %9 = vector.broadcast %cst_6 : f32 to vector<1x256xf32>
    %10 = arith.divf %8, %9 : vector<1x256xf32>
    %11 = vector.broadcast %10 : vector<1x256xf32> to vector<16x256xf32>
    %12 = arith.subf %6, %11 : vector<16x256xf32>
    %13 = arith.mulf %12, %12 : vector<16x256xf32>
    %cst_7 = arith.constant dense<0.000000e+00> : vector<256xf32>
    %14 = vector.multi_reduction <add>, %13, %cst_7 [0] : vector<16x256xf32> to vector<256xf32>
    %15 = vector.shape_cast %14 : vector<256xf32> to vector<1x256xf32>
    %cst_8 = arith.constant 1.600000e+01 : f32
    %16 = vector.broadcast %cst_8 : f32 to vector<1x256xf32>
    %17 = arith.divf %15, %16 : vector<1x256xf32>
    %18 = vector.broadcast %10 : vector<1x256xf32> to vector<16x256xf32>
    %19 = arith.subf %6, %18 : vector<16x256xf32>
    %cst_9 = arith.constant 9.99999974E-6 : f32
    %20 = vector.broadcast %cst_9 : f32 to vector<1x256xf32>
    %21 = arith.addf %17, %20 : vector<1x256xf32>
    %22 = math.rsqrt %21 : vector<1x256xf32>
    %23 = vector.broadcast %22 : vector<1x256xf32> to vector<16x256xf32>
    %24 = arith.mulf %19, %23 : vector<16x256xf32>
    %c0_10 = arith.constant 0 : index
    %c0_11 = arith.constant 0 : index
    %25 = vector.load %arg3[%c0_10, %c0_11] : memref<1x256xf32, #tpu.memory_space<vmem>>, vector<1x256xf32>
    %26 = vector.broadcast %25 : vector<1x256xf32> to vector<16x256xf32>
    %27 = arith.mulf %24, %26 : vector<16x256xf32>
    %c0_12 = arith.constant 0 : index
    %c0_13 = arith.constant 0 : index
    %28 = vector.load %arg4[%c0_12, %c0_13] : memref<1x256xf32, #tpu.memory_space<vmem>>, vector<1x256xf32>
    %29 = vector.broadcast %28 : vector<1x256xf32> to vector<16x256xf32>
    %30 = arith.addf %27, %29 : vector<16x256xf32>
    %cst_14 = arith.constant 5.000000e-01 : f32
    %31 = vector.broadcast %cst_14 : f32 to vector<16x256xf32>
    %32 = arith.mulf %31, %30 : vector<16x256xf32>
    %cst_15 = arith.constant 0.707106769 : f32
    %33 = vector.broadcast %cst_15 : f32 to vector<16x256xf32>
    %34 = arith.mulf %30, %33 : vector<16x256xf32>
    %35 = math.erf %34 : vector<16x256xf32>
    %cst_16 = arith.constant 1.000000e+00 : f32
    %36 = vector.broadcast %cst_16 : f32 to vector<16x256xf32>
    %37 = arith.addf %36, %35 : vector<16x256xf32>
    %38 = arith.mulf %32, %37 : vector<16x256xf32>
    %39 = arith.truncf %38 : vector<16x256xf32> to vector<16x256xbf16>
    %c0_17 = arith.constant 0 : index
    %c0_18 = arith.constant 0 : index
    %40 = vector.load %arg5[%c0_17, %c0_18] : memref<256x128xbf16, #tpu.memory_space<vmem>>, vector<256x128xbf16>
    %cst_19 = arith.constant dense<0.000000e+00> : vector<16x128xf32>
    %41 = tpu.matmul %39, %40, %cst_19 {dimension_numbers = #tpu.dot_dimension_numbers<[1], [0], [0], [1], [0, 0, 1, 1], [], []>} : vector<16x256xbf16>, vector<256x128xbf16>, vector<16x128xf32> -> vector<16x128xf32>
    %c0_20 = arith.constant 0 : index
    %c0_21 = arith.constant 0 : index
    %42 = vector.load %arg6[%c0_20, %c0_21] : memref<1x128xf32, #tpu.memory_space<vmem>>, vector<1x128xf32>
    %43 = vector.broadcast %42 : vector<1x128xf32> to vector<16x128xf32>
    %44 = arith.addf %41, %43 : vector<16x128xf32>
    %cst_22 = arith.constant dense<0.000000e+00> : vector<128xf32>
    %45 = vector.multi_reduction <add>, %44, %cst_22 [0] : vector<16x128xf32> to vector<128xf32>
    %46 = vector.shape_cast %45 : vector<128xf32> to vector<1x128xf32>
    %cst_23 = arith.constant 1.600000e+01 : f32
    %47 = vector.broadcast %cst_23 : f32 to vector<1x128xf32>
    %48 = arith.divf %46, %47 : vector<1x128xf32>
    %49 = vector.broadcast %48 : vector<1x128xf32> to vector<16x128xf32>
    %50 = arith.subf %44, %49 : vector<16x128xf32>
    %51 = arith.mulf %50, %50 : vector<16x128xf32>
    %cst_24 = arith.constant dense<0.000000e+00> : vector<128xf32>
    %52 = vector.multi_reduction <add>, %51, %cst_24 [0] : vector<16x128xf32> to vector<128xf32>
    %53 = vector.shape_cast %52 : vector<128xf32> to vector<1x128xf32>
    %cst_25 = arith.constant 1.600000e+01 : f32
    %54 = vector.broadcast %cst_25 : f32 to vector<1x128xf32>
    %55 = arith.divf %53, %54 : vector<1x128xf32>
    %56 = vector.broadcast %48 : vector<1x128xf32> to vector<16x128xf32>
    %57 = arith.subf %44, %56 : vector<16x128xf32>
    %cst_26 = arith.constant 9.99999974E-6 : f32
    %58 = vector.broadcast %cst_26 : f32 to vector<1x128xf32>
    %59 = arith.addf %55, %58 : vector<1x128xf32>
    %60 = math.rsqrt %59 : vector<1x128xf32>
    %61 = vector.broadcast %60 : vector<1x128xf32> to vector<16x128xf32>
    %62 = arith.mulf %57, %61 : vector<16x128xf32>
    %c0_27 = arith.constant 0 : index
    %c0_28 = arith.constant 0 : index
    %63 = vector.load %arg7[%c0_27, %c0_28] : memref<1x128xf32, #tpu.memory_space<vmem>>, vector<1x128xf32>
    %64 = vector.broadcast %63 : vector<1x128xf32> to vector<16x128xf32>
    %65 = arith.mulf %62, %64 : vector<16x128xf32>
    %c0_29 = arith.constant 0 : index
    %c0_30 = arith.constant 0 : index
    %66 = vector.load %arg8[%c0_29, %c0_30] : memref<1x128xf32, #tpu.memory_space<vmem>>, vector<1x128xf32>
    %67 = vector.broadcast %66 : vector<1x128xf32> to vector<16x128xf32>
    %68 = arith.addf %65, %67 : vector<16x128xf32>
    %69 = arith.negf %68 : vector<16x128xf32>
    %70 = math.exp %69 : vector<16x128xf32>
    %cst_31 = arith.constant 1.000000e+00 : f32
    %71 = vector.broadcast %cst_31 : f32 to vector<16x128xf32>
    %72 = arith.addf %71, %70 : vector<16x128xf32>
    %73 = arith.divf %71, %72 : vector<16x128xf32>
    %c0_32 = arith.constant 0 : index
    %c0_33 = arith.constant 0 : index
    %74 = vector.load %arg9[%c0_32, %c0_33] : memref<16x128xf32, #tpu.memory_space<vmem>>, vector<16x128xf32>
    tpu.vector_store %arg9[%c0_32, %c0_33], %73 {strides = array<i32>} : memref<16x128xf32, #tpu.memory_space<vmem>>, vector<16x128xf32>,
    return
  }
}

</mosaic_0001>

<llo_original>
// kernel: _lambda_.3
$region0: #{_lambda_.3}
  #allocation0 [shape = 'u32[]', space=smem, size = 0x4, offset = 0x4, fixed_abs, tag = 'smem constant byte address 0x4 - core index']
  #allocation1 [shape = 'u32[72,128]{1,0:T(1,128)}', space=vmem, size = 0x9000, scoped, tag = 'internal scratch']
  %s0 = inlined_call_operand.vmem [shape: f32[16,1024], index: 0, kind: input, shape index: {}]
  %s1 = inlined_call_operand.vmem [shape: bf16[1024,256], index: 1, kind: input, shape index: {}]
  %s2 = inlined_call_operand.vmem [shape: f32[1,256], index: 2, kind: input, shape index: {}]
  %s3 = inlined_call_operand.vmem [shape: f32[1,256], index: 3, kind: input, shape index: {}]
  %s4 = inlined_call_operand.vmem [shape: f32[1,256], index: 4, kind: input, shape index: {}]
  %s5 = inlined_call_operand.vmem [shape: bf16[256,128], index: 5, kind: input, shape index: {}]
  %s6 = inlined_call_operand.vmem [shape: f32[1,128], index: 6, kind: input, shape index: {}]
  %s7 = inlined_call_operand.vmem [shape: f32[1,128], index: 7, kind: input, shape index: {}]
  %s8 = inlined_call_operand.vmem [shape: f32[1,128], index: 8, kind: input, shape index: {}]
  %s9 = inlined_call_operand.hbm [shape: f32[16,128], index: 9, kind: output, shape index: {}]
  %s10 = sld [smem:[#allocation0]]
  $region46: #{_lambda_.3} parent=0
    _
  %s12 = ssub.s32 1, %s10
  %s13 = scalar_select 0, %s12, %s10
  $region1: #{_lambda_.3} parent=0
    #allocation2 [shape = 'u8[8192]{0}', space=vmem, size = 0x2000, scoped, tag = 'output window, operand 0, single buffered']
    #allocation3 [shape = 's32[1]{0}', space=sflag, size = 0x4, scoped, tag = 'scoped memory for _lambda_.3']
    %14 = vsyncpa [#allocation3], 0
    // Predicated region
    $region2: #{_lambda_.3} parent=1 // pred_check
      _
    $region3: #{_lambda_.3} parent=1 // pred_check_branch
      %16 = sbr.rel (0) target = $region5
    $region4: #{_lambda_.3} parent=1 // pred_region
      _
    $region5: #{_lambda_.3} parent=1 // pred_fallthru
      _
    // Predicated region
    $region6: #{_lambda_.3} parent=1 // pred_check
      _
    $region7: #{_lambda_.3} parent=1 // pred_check_branch
      %18 = sbr.rel (0) target = $region9
    $region8: #{_lambda_.3} parent=1 // pred_region
      _
    $region9: #{_lambda_.3} parent=1 // pred_fallthru
      _
    // Predicated region
    $region10: #{_lambda_.3} parent=1 // pred_check
      _
    $region11: #{_lambda_.3} parent=1 // pred_check_branch
      %20 = sbr.rel (0) target = $region13
    $region12: #{_lambda_.3} parent=1 // pred_region
      _
    $region13: #{_lambda_.3} parent=1 // pred_fallthru
      _
    // Predicated region
    $region14: #{_lambda_.3} parent=1 // pred_check
      _
    $region15: #{_lambda_.3} parent=1 // pred_check_branch
      %22 = sbr.rel (0) target = $region17
    $region16: #{_lambda_.3} parent=1 // pred_region
      _
    $region17: #{_lambda_.3} parent=1 // pred_fallthru
      _
    // Predicated region
    $region18: #{_lambda_.3} parent=1 // pred_check
      _
    $region19: #{_lambda_.3} parent=1 // pred_check_branch
      %24 = sbr.rel (0) target = $region21
    $region20: #{_lambda_.3} parent=1 // pred_region
      _
    $region21: #{_lambda_.3} parent=1 // pred_fallthru
      _
    // Predicated region
    $region22: #{_lambda_.3} parent=1 // pred_check
      _
    $region23: #{_lambda_.3} parent=1 // pred_check_branch
      %26 = sbr.rel (0) target = $region25
    $region24: #{_lambda_.3} parent=1 // pred_region
      _
    $region25: #{_lambda_.3} parent=1 // pred_fallthru
      _
    // Predicated region
    $region26: #{_lambda_.3} parent=1 // pred_check
      _
    $region27: #{_lambda_.3} parent=1 // pred_check_branch
      %28 = sbr.rel (0) target = $region29
    $region28: #{_lambda_.3} parent=1 // pred_region
      _
    $region29: #{_lambda_.3} parent=1 // pred_fallthru
      _
    // Predicated region
    $region30: #{_lambda_.3} parent=1 // pred_check
      _
    $region31: #{_lambda_.3} parent=1 // pred_check_branch
      %30 = sbr.rel (0) target = $region33
    $region32: #{_lambda_.3} parent=1 // pred_region
      _
    $region33: #{_lambda_.3} parent=1 // pred_fallthru
      _
    // Predicated region
    $region34: #{_lambda_.3} parent=1 // pred_check
      _
    $region35: #{_lambda_.3} parent=1 // pred_check_branch
      %32 = sbr.rel (0) target = $region37
    $region36: #{_lambda_.3} parent=1 // pred_region
      _
    $region37: #{_lambda_.3} parent=1 // pred_fallthru
      _
    %v33 = vld [vmem:[%s0] sm:$0xff]
    %v34 = vld [vmem:[%s0 + $0x8] sm:$0xff]
    %v35 = vld [vmem:[%s0 + $0x10] sm:$0xff]
    %v36 = vld [vmem:[%s0 + $0x18] sm:$0xff]
    %v37 = vld [vmem:[%s0 + $0x20] sm:$0xff]
    %v38 = vld [vmem:[%s0 + $0x28] sm:$0xff]
    %v39 = vld [vmem:[%s0 + $0x30] sm:$0xff]
    %v40 = vld [vmem:[%s0 + $0x38] sm:$0xff]
    %v41 = vld [vmem:[%s0 + $0x40] sm:$0xff]
    %v42 = vld [vmem:[%s0 + $0x48] sm:$0xff]
    %v43 = vld [vmem:[%s0 + $0x50] sm:$0xff]
    %v44 = vld [vmem:[%s0 + $0x58] sm:$0xff]
    %v45 = vld [vmem:[%s0 + $0x60] sm:$0xff]
    %v46 = vld [vmem:[%s0 + $0x68] sm:$0xff]
    %v47 = vld [vmem:[%s0 + $0x70] sm:$0xff]
    %v48 = vld [vmem:[%s0 + $0x78] sm:$0xff]
    %v49 = vpack.c.bf16 %v41, %v33
    %v50 = vpack.c.bf16 %v42, %v34
    %v51 = vpack.c.bf16 %v43, %v35
    %v52 = vpack.c.bf16 %v44, %v36
    %v53 = vpack.c.bf16 %v45, %v37
    %v54 = vpack.c.bf16 %v46, %v38
    %v55 = vpack.c.bf16 %v47, %v39
    %v56 = vpack.c.bf16 %v48, %v40
    %v57 = vld [vmem:[%s1] sm:$0xff]
    %v58 = vld [vmem:[%s1 + $0x8] sm:$0xff]
    %v59 = vld [vmem:[%s1 + $0x10] sm:$0xff]
    %v60 = vld [vmem:[%s1 + $0x18] sm:$0xff]
    %v61 = vld [vmem:[%s1 + $0x20] sm:$0xff]
    %v62 = vld [vmem:[%s1 + $0x28] sm:$0xff]
    %v63 = vld [vmem:[%s1 + $0x30] sm:$0xff]
    %v64 = vld [vmem:[%s1 + $0x38] sm:$0xff]
    %v65 = vld [vmem:[%s1 + $0x40] sm:$0xff]
    %v66 = vld [vmem:[%s1 + $0x48] sm:$0xff]
    %v67 = vld [vmem:[%s1 + $0x50] sm:$0xff]
    %v68 = vld [vmem:[%s1 + $0x58] sm:$0xff]
    %v69 = vld [vmem:[%s1 + $0x60] sm:$0xff]
    %v70 = vld [vmem:[%s1 + $0x68] sm:$0xff]
    %v71 = vld [vmem:[%s1 + $0x70] sm:$0xff]
    %v72 = vld [vmem:[%s1 + $0x78] sm:$0xff]
    %v73 = vld [vmem:[%s1 + $0x80] sm:$0xff]
    %v74 = vld [vmem:[%s1 + $0x88] sm:$0xff]
    %v75 = vld [vmem:[%s1 + $0x90] sm:$0xff]
    %v76 = vld [vmem:[%s1 + $0x98] sm:$0xff]
    %v77 = vld [vmem:[%s1 + $0xa0] sm:$0xff]
    %v78 = vld [vmem:[%s1 + $0xa8] sm:$0xff]
    %v79 = vld [vmem:[%s1 + $0xb0] sm:$0xff]
    %v80 = vld [vmem:[%s1 + $0xb8] sm:$0xff]
    %v81 = vld [vmem:[%s1 + $0xc0] sm:$0xff]
    %v82 = vld [vmem:[%s1 + $0xc8] sm:$0xff]
    %v83 = vld [vmem:[%s1 + $0xd0] sm:$0xff]
    %v84 = vld [vmem:[%s1 + $0xd8] sm:$0xff]
    %v85 = vld [vmem:[%s1 + $0xe0] sm:$0xff]
    %v86 = vld [vmem:[%s1 + $0xe8] sm:$0xff]
    %v87 = vld [vmem:[%s1 + $0xf0] sm:$0xff]
    %v88 = vld [vmem:[%s1 + $0xf8] sm:$0xff]
    %v89 = vld [vmem:[%s1 + $0x100] sm:$0xff]
    %v90 = vld [vmem:[%s1 + $0x108] sm:$0xff]
    %v91 = vld [vmem:[%s1 + $0x110] sm:$0xff]
    %v92 = vld [vmem:[%s1 + $0x118] sm:$0xff]
    %v93 = vld [vmem:[%s1 + $0x120] sm:$0xff]
    %v94 = vld [vmem:[%s1 + $0x128] sm:$0xff]
    %v95 = vld [vmem:[%s1 + $0x130] sm:$0xff]
    %v96 = vld [vmem:[%s1 + $0x138] sm:$0xff]
    %v97 = vld [vmem:[%s1 + $0x140] sm:$0xff]
    %v98 = vld [vmem:[%s1 + $0x148] sm:$0xff]
    %v99 = vld [vmem:[%s1 + $0x150] sm:$0xff]
    %v100 = vld [vmem:[%s1 + $0x158] sm:$0xff]
    %v101 = vld [vmem:[%s1 + $0x160] sm:$0xff]
    %v102 = vld [vmem:[%s1 + $0x168] sm:$0xff]
    %v103 = vld [vmem:[%s1 + $0x170] sm:$0xff]
    %v104 = vld [vmem:[%s1 + $0x178] sm:$0xff]
    %v105 = vld [vmem:[%s1 + $0x180] sm:$0xff]
    %v106 = vld [vmem:[%s1 + $0x188] sm:$0xff]
    %v107 = vld [vmem:[%s1 + $0x190] sm:$0xff]
    %v108 = vld [vmem:[%s1 + $0x198] sm:$0xff]
    %v109 = vld [vmem:[%s1 + $0x1a0] sm:$0xff]
    %v110 = vld [vmem:[%s1 + $0x1a8] sm:$0xff]
    %v111 = vld [vmem:[%s1 + $0x1b0] sm:$0xff]
    %v112 = vld [vmem:[%s1 + $0x1b8] sm:$0xff]
    %v113 = vld [vmem:[%s1 + $0x1c0] sm:$0xff]
    %v114 = vld [vmem:[%s1 + $0x1c8] sm:$0xff]
    %v115 = vld [vmem:[%s1 + $0x1d0] sm:$0xff]
    %v116 = vld [vmem:[%s1 + $0x1d8] sm:$0xff]
    %v117 = vld [vmem:[%s1 + $0x1e0] sm:$0xff]
    %v118 = vld [vmem:[%s1 + $0x1e8] sm:$0xff]
    %v119 = vld [vmem:[%s1 + $0x1f0] sm:$0xff]
    %v120 = vld [vmem:[%s1 + $0x1f8] sm:$0xff]
    %v121 = vld [vmem:[%s1 + $0x200] sm:$0xff]
    %v122 = vld [vmem:[%s1 + $0x208] sm:$0xff]
    %v123 = vld [vmem:[%s1 + $0x210] sm:$0xff]
    %v124 = vld [vmem:[%s1 + $0x218] sm:$0xff]
    %v125 = vld [vmem:[%s1 + $0x220] sm:$0xff]
    %v126 = vld [vmem:[%s1 + $0x228] sm:$0xff]
    %v127 = vld [vmem:[%s1 + $0x230] sm:$0xff]
    %v128 = vld [vmem:[%s1 + $0x238] sm:$0xff]
    %v129 = vld [vmem:[%s1 + $0x240] sm:$0xff]
    %v130 = vld [vmem:[%s1 + $0x248] sm:$0xff]
    %v131 = vld [vmem:[%s1 + $0x250] sm:$0xff]
    %v132 = vld [vmem:[%s1 + $0x258] sm:$0xff]
    %v133 = vld [vmem:[%s1 + $0x260] sm:$0xff]
    %v134 = vld [vmem:[%s1 + $0x268] sm:$0xff]
    %v135 = vld [vmem:[%s1 + $0x270] sm:$0xff]
    %v136 = vld [vmem:[%s1 + $0x278] sm:$0xff]
    %v137 = vld [vmem:[%s1 + $0x280] sm:$0xff]
    %v138 = vld [vmem:[%s1 + $0x288] sm:$0xff]
    %v139 = vld [vmem:[%s1 + $0x290] sm:$0xff]
    %v140 = vld [vmem:[%s1 + $0x298] sm:$0xff]
    %v141 = vld [vmem:[%s1 + $0x2a0] sm:$0xff]
    %v142 = vld [vmem:[%s1 + $0x2a8] sm:$0xff]
    %v143 = vld [vmem:[%s1 + $0x2b0] sm:$0xff]
    %v144 = vld [vmem:[%s1 + $0x2b8] sm:$0xff]
    %v145 = vld [vmem:[%s1 + $0x2c0] sm:$0xff]
    %v146 = vld [vmem:[%s1 + $0x2c8] sm:$0xff]
    %v147 = vld [vmem:[%s1 + $0x2d0] sm:$0xff]
    %v148 = vld [vmem:[%s1 + $0x2d8] sm:$0xff]
    %v149 = vld [vmem:[%s1 + $0x2e0] sm:$0xff]
    %v150 = vld [vmem:[%s1 + $0x2e8] sm:$0xff]
    %v151 = vld [vmem:[%s1 + $0x2f0] sm:$0xff]
    %v152 = vld [vmem:[%s1 + $0x2f8] sm:$0xff]
    %v153 = vld [vmem:[%s1 + $0x300] sm:$0xff]
    %v154 = vld [vmem:[%s1 + $0x308] sm:$0xff]
    %v155 = vld [vmem:[%s1 + $0x310] sm:$0xff]
    %v156 = vld [vmem:[%s1 + $0x318] sm:$0xff]
    %v157 = vld [vmem:[%s1 + $0x320] sm:$0xff]
    %v158 = vld [vmem:[%s1 + $0x328] sm:$0xff]
    %v159 = vld [vmem:[%s1 + $0x330] sm:$0xff]
    %v160 = vld [vmem:[%s1 + $0x338] sm:$0xff]
    %v161 = vld [vmem:[%s1 + $0x340] sm:$0xff]
    %v162 = vld [vmem:[%s1 + $0x348] sm:$0xff]
    %v163 = vld [vmem:[%s1 + $0x350] sm:$0xff]
    %v164 = vld [vmem:[%s1 + $0x358] sm:$0xff]
    %v165 = vld [vmem:[%s1 + $0x360] sm:$0xff]
    %v166 = vld [vmem:[%s1 + $0x368] sm:$0xff]
    %v167 = vld [vmem:[%s1 + $0x370] sm:$0xff]
    %v168 = vld [vmem:[%s1 + $0x378] sm:$0xff]
    %v169 = vld [vmem:[%s1 + $0x380] sm:$0xff]
    %v170 = vld [vmem:[%s1 + $0x388] sm:$0xff]
    %v171 = vld [vmem:[%s1 + $0x390] sm:$0xff]
    %v172 = vld [vmem:[%s1 + $0x398] sm:$0xff]
    %v173 = vld [vmem:[%s1 + $0x3a0] sm:$0xff]
    %v174 = vld [vmem:[%s1 + $0x3a8] sm:$0xff]
    %v175 = vld [vmem:[%s1 + $0x3b0] sm:$0xff]
    %v176 = vld [vmem:[%s1 + $0x3b8] sm:$0xff]
    %v177 = vld [vmem:[%s1 + $0x3c0] sm:$0xff]
    %v178 = vld [vmem:[%s1 + $0x3c8] sm:$0xff]
    %v179 = vld [vmem:[%s1 + $0x3d0] sm:$0xff]
    %v180 = vld [vmem:[%s1 + $0x3d8] sm:$0xff]
    %v181 = vld [vmem:[%s1 + $0x3e0] sm:$0xff]
    %v182 = vld [vmem:[%s1 + $0x3e8] sm:$0xff]
    %v183 = vld [vmem:[%s1 + $0x3f0] sm:$0xff]
    %v184 = vld [vmem:[%s1 + $0x3f8] sm:$0xff]
    %v185 = vld [vmem:[%s2] sm:$0x3]
    %v187 = vperm.slane %v185, 0
    %v188 = vperm.slane %v185, 1
    %v319 = vunpack.c.l.b16 %v57
    %v320 = vunpack.c.h.b16 %v57
    %v321 = vunpack.c.l.b16 %v58
    %v322 = vunpack.c.h.b16 %v58
    %v323 = vunpack.c.l.b16 %v59
    %v324 = vunpack.c.h.b16 %v59
    %v325 = vunpack.c.l.b16 %v60
    %v326 = vunpack.c.h.b16 %v60
    %v327 = vunpack.c.l.b16 %v61
    %v328 = vunpack.c.h.b16 %v61
    %v329 = vunpack.c.l.b16 %v62
    %v330 = vunpack.c.h.b16 %v62
    %v331 = vunpack.c.l.b16 %v63
    %v332 = vunpack.c.h.b16 %v63
    %v333 = vunpack.c.l.b16 %v64
    %v334 = vunpack.c.h.b16 %v64
    %v335 = vunpack.c.l.b16 %v65
    %v336 = vunpack.c.h.b16 %v65
    %v337 = vunpack.c.l.b16 %v66
    %v338 = vunpack.c.h.b16 %v66
    %v339 = vunpack.c.l.b16 %v67
    %v340 = vunpack.c.h.b16 %v67
    %v341 = vunpack.c.l.b16 %v68
    %v342 = vunpack.c.h.b16 %v68
    %v343 = vunpack.c.l.b16 %v69
    %v344 = vunpack.c.h.b16 %v69
    %v345 = vunpack.c.l.b16 %v70
    %v346 = vunpack.c.h.b16 %v70
    %v347 = vunpack.c.l.b16 %v71
    %v348 = vunpack.c.h.b16 %v71
    %v349 = vunpack.c.l.b16 %v72
    %v350 = vunpack.c.h.b16 %v72
    %v351 = vunpack.c.l.b16 %v73
    %v352 = vunpack.c.h.b16 %v73
    %v353 = vunpack.c.l.b16 %v74
    %v354 = vunpack.c.h.b16 %v74
    %v355 = vunpack.c.l.b16 %v75
    %v356 = vunpack.c.h.b16 %v75
    %v357 = vunpack.c.l.b16 %v76
    %v358 = vunpack.c.h.b16 %v76
    %v359 = vunpack.c.l.b16 %v77
    %v360 = vunpack.c.h.b16 %v77
    %v361 = vunpack.c.l.b16 %v78
    %v362 = vunpack.c.h.b16 %v78
    %v363 = vunpack.c.l.b16 %v79
    %v364 = vunpack.c.h.b16 %v79
    %v365 = vunpack.c.l.b16 %v80
    %v366 = vunpack.c.h.b16 %v80
    %v367 = vunpack.c.l.b16 %v81
    %v368 = vunpack.c.h.b16 %v81
    %v369 = vunpack.c.l.b16 %v82
    %v370 = vunpack.c.h.b16 %v82
    %v371 = vunpack.c.l.b16 %v83
    %v372 = vunpack.c.h.b16 %v83
    %v373 = vunpack.c.l.b16 %v84
    %v374 = vunpack.c.h.b16 %v84
    %v375 = vunpack.c.l.b16 %v85
    %v376 = vunpack.c.h.b16 %v85
    %v377 = vunpack.c.l.b16 %v86
    %v378 = vunpack.c.h.b16 %v86
    %v379 = vunpack.c.l.b16 %v87
    %v380 = vunpack.c.h.b16 %v87
    %v381 = vunpack.c.l.b16 %v88
    %v382 = vunpack.c.h.b16 %v88
    %v383 = vunpack.c.l.b16 %v89
    %v384 = vunpack.c.h.b16 %v89
    %v385 = vunpack.c.l.b16 %v90
    %v386 = vunpack.c.h.b16 %v90
    %v387 = vunpack.c.l.b16 %v91
    %v388 = vunpack.c.h.b16 %v91
    %v389 = vunpack.c.l.b16 %v92
    %v390 = vunpack.c.h.b16 %v92
    %v391 = vunpack.c.l.b16 %v93
    %v392 = vunpack.c.h.b16 %v93
    %v393 = vunpack.c.l.b16 %v94
    %v394 = vunpack.c.h.b16 %v94
    %v395 = vunpack.c.l.b16 %v95
    %v396 = vunpack.c.h.b16 %v95
    %v397 = vunpack.c.l.b16 %v96
    %v398 = vunpack.c.h.b16 %v96
    %v399 = vunpack.c.l.b16 %v97
    %v400 = vunpack.c.h.b16 %v97
    %v401 = vunpack.c.l.b16 %v98
    %v402 = vunpack.c.h.b16 %v98
    %v403 = vunpack.c.l.b16 %v99
    %v404 = vunpack.c.h.b16 %v99
    %v405 = vunpack.c.l.b16 %v100
    %v406 = vunpack.c.h.b16 %v100
    %v407 = vunpack.c.l.b16 %v101
    %v408 = vunpack.c.h.b16 %v101
    %v409 = vunpack.c.l.b16 %v102
    %v410 = vunpack.c.h.b16 %v102
    %v411 = vunpack.c.l.b16 %v103
    %v412 = vunpack.c.h.b16 %v103
    %v413 = vunpack.c.l.b16 %v104
    %v414 = vunpack.c.h.b16 %v104
    %v415 = vunpack.c.l.b16 %v105
    %v416 = vunpack.c.h.b16 %v105
    %v417 = vunpack.c.l.b16 %v106
    %v418 = vunpack.c.h.b16 %v106
    %v419 = vunpack.c.l.b16 %v107
    %v420 = vunpack.c.h.b16 %v107
    %v421 = vunpack.c.l.b16 %v108
    %v422 = vunpack.c.h.b16 %v108
    %v423 = vunpack.c.l.b16 %v109
    %v424 = vunpack.c.h.b16 %v109
    %v425 = vunpack.c.l.b16 %v110
    %v426 = vunpack.c.h.b16 %v110
    %v427 = vunpack.c.l.b16 %v111
    %v428 = vunpack.c.h.b16 %v111
    %v429 = vunpack.c.l.b16 %v112
    %v430 = vunpack.c.h.b16 %v112
    %v431 = vunpack.c.l.b16 %v113
    %v432 = vunpack.c.h.b16 %v113
    %v433 = vunpack.c.l.b16 %v114
    %v434 = vunpack.c.h.b16 %v114
    %v435 = vunpack.c.l.b16 %v115
    %v436 = vunpack.c.h.b16 %v115
    %v437 = vunpack.c.l.b16 %v116
    %v438 = vunpack.c.h.b16 %v116
    %v439 = vunpack.c.l.b16 %v117
    %v440 = vunpack.c.h.b16 %v117
    %v441 = vunpack.c.l.b16 %v118
    %v442 = vunpack.c.h.b16 %v118
    %v443 = vunpack.c.l.b16 %v119
    %v444 = vunpack.c.h.b16 %v119
    %v445 = vunpack.c.l.b16 %v120
    %v446 = vunpack.c.h.b16 %v120
    %v447 = vunpack.c.l.b16 %v121
    %v448 = vunpack.c.h.b16 %v121
    %v449 = vunpack.c.l.b16 %v122
    %v450 = vunpack.c.h.b16 %v122
    %v451 = vunpack.c.l.b16 %v123
    %v452 = vunpack.c.h.b16 %v123
    %v453 = vunpack.c.l.b16 %v124
    %v454 = vunpack.c.h.b16 %v124
    %v455 = vunpack.c.l.b16 %v125
    %v456 = vunpack.c.h.b16 %v125
    %v457 = vunpack.c.l.b16 %v126
    %v458 = vunpack.c.h.b16 %v126
    %v459 = vunpack.c.l.b16 %v127
    %v460 = vunpack.c.h.b16 %v127
    %v461 = vunpack.c.l.b16 %v128
    %v462 = vunpack.c.h.b16 %v128
    %v463 = vunpack.c.l.b16 %v129
    %v464 = vunpack.c.h.b16 %v129
    %v465 = vunpack.c.l.b16 %v130
    %v466 = vunpack.c.h.b16 %v130
    %v467 = vunpack.c.l.b16 %v131
    %v468 = vunpack.c.h.b16 %v131
    %v469 = vunpack.c.l.b16 %v132
    %v470 = vunpack.c.h.b16 %v132
    %v471 = vunpack.c.l.b16 %v133
    %v472 = vunpack.c.h.b16 %v133
    %v473 = vunpack.c.l.b16 %v134
    %v474 = vunpack.c.h.b16 %v134
    %v475 = vunpack.c.l.b16 %v135
    %v476 = vunpack.c.h.b16 %v135
    %v477 = vunpack.c.l.b16 %v136
    %v478 = vunpack.c.h.b16 %v136
    %v479 = vunpack.c.l.b16 %v137
    %v480 = vunpack.c.h.b16 %v137
    %v481 = vunpack.c.l.b16 %v138
    %v482 = vunpack.c.h.b16 %v138
    %v483 = vunpack.c.l.b16 %v139
    %v484 = vunpack.c.h.b16 %v139
    %v485 = vunpack.c.l.b16 %v140
    %v486 = vunpack.c.h.b16 %v140
    %v487 = vunpack.c.l.b16 %v141
    %v488 = vunpack.c.h.b16 %v141
    %v489 = vunpack.c.l.b16 %v142
    %v490 = vunpack.c.h.b16 %v142
    %v491 = vunpack.c.l.b16 %v143
    %v492 = vunpack.c.h.b16 %v143
    %v493 = vunpack.c.l.b16 %v144
    %v494 = vunpack.c.h.b16 %v144
    %v495 = vunpack.c.l.b16 %v145
    %v496 = vunpack.c.h.b16 %v145
    %v497 = vunpack.c.l.b16 %v146
    %v498 = vunpack.c.h.b16 %v146
    %v499 = vunpack.c.l.b16 %v147
    %v500 = vunpack.c.h.b16 %v147
    %v501 = vunpack.c.l.b16 %v148
    %v502 = vunpack.c.h.b16 %v148
    %v503 = vunpack.c.l.b16 %v149
    %v504 = vunpack.c.h.b16 %v149
    %v505 = vunpack.c.l.b16 %v150
    %v506 = vunpack.c.h.b16 %v150
    %v507 = vunpack.c.l.b16 %v151
    %v508 = vunpack.c.h.b16 %v151
    %v509 = vunpack.c.l.b16 %v152
    %v510 = vunpack.c.h.b16 %v152
    %v511 = vunpack.c.l.b16 %v153
    %v512 = vunpack.c.h.b16 %v153
    %v513 = vunpack.c.l.b16 %v154
    %v514 = vunpack.c.h.b16 %v154
    %v515 = vunpack.c.l.b16 %v155
    %v516 = vunpack.c.h.b16 %v155
    %v517 = vunpack.c.l.b16 %v156
    %v518 = vunpack.c.h.b16 %v156
    %v519 = vunpack.c.l.b16 %v157
    %v520 = vunpack.c.h.b16 %v157
    %v521 = vunpack.c.l.b16 %v158
    %v522 = vunpack.c.h.b16 %v158
    %v523 = vunpack.c.l.b16 %v159
    %v524 = vunpack.c.h.b16 %v159
    %v525 = vunpack.c.l.b16 %v160
    %v526 = vunpack.c.h.b16 %v160
    %v527 = vunpack.c.l.b16 %v161
    %v528 = vunpack.c.h.b16 %v161
    %v529 = vunpack.c.l.b16 %v162
    %v530 = vunpack.c.h.b16 %v162
    %v531 = vunpack.c.l.b16 %v163
    %v532 = vunpack.c.h.b16 %v163
    %v533 = vunpack.c.l.b16 %v164
    %v534 = vunpack.c.h.b16 %v164
    %v535 = vunpack.c.l.b16 %v165
    %v536 = vunpack.c.h.b16 %v165
    %v537 = vunpack.c.l.b16 %v166
    %v538 = vunpack.c.h.b16 %v166
    %v539 = vunpack.c.l.b16 %v167
    %v540 = vunpack.c.h.b16 %v167
    %v541 = vunpack.c.l.b16 %v168
    %v542 = vunpack.c.h.b16 %v168
    %v543 = vunpack.c.l.b16 %v169
    %v544 = vunpack.c.h.b16 %v169
    %v545 = vunpack.c.l.b16 %v170
    %v546 = vunpack.c.h.b16 %v170
    %v547 = vunpack.c.l.b16 %v171
    %v548 = vunpack.c.h.b16 %v171
    %v549 = vunpack.c.l.b16 %v172
    %v550 = vunpack.c.h.b16 %v172
    %v551 = vunpack.c.l.b16 %v173
    %v552 = vunpack.c.h.b16 %v173
    %v553 = vunpack.c.l.b16 %v174
    %v554 = vunpack.c.h.b16 %v174
    %v555 = vunpack.c.l.b16 %v175
    %v556 = vunpack.c.h.b16 %v175
    %v557 = vunpack.c.l.b16 %v176
    %v558 = vunpack.c.h.b16 %v176
    %v559 = vunpack.c.l.b16 %v177
    %v560 = vunpack.c.h.b16 %v177
    %v561 = vunpack.c.l.b16 %v178
    %v562 = vunpack.c.h.b16 %v178
    %v563 = vunpack.c.l.b16 %v179
    %v564 = vunpack.c.h.b16 %v179
    %v565 = vunpack.c.l.b16 %v180
    %v566 = vunpack.c.h.b16 %v180
    %v567 = vunpack.c.l.b16 %v181
    %v568 = vunpack.c.h.b16 %v181
    %v569 = vunpack.c.l.b16 %v182
    %v570 = vunpack.c.h.b16 %v182
    %v571 = vunpack.c.l.b16 %v183
    %v572 = vunpack.c.h.b16 %v183
    %v573 = vunpack.c.l.b16 %v184
    %v574 = vunpack.c.h.b16 %v184
    %v575 = vpack.c.b16 %v321, %v319
    %v576 = vpack.c.b16 %v322, %v320
    %v577 = vpack.c.b16 %v325, %v323
    %v578 = vpack.c.b16 %v326, %v324
    %v579 = vpack.c.b16 %v329, %v327
    %v580 = vpack.c.b16 %v330, %v328
    %v581 = vpack.c.b16 %v333, %v331
    %v582 = vpack.c.b16 %v334, %v332
    %v583 = vpack.c.b16 %v337, %v335
    %v584 = vpack.c.b16 %v338, %v336
    %v585 = vpack.c.b16 %v341, %v339
    %v586 = vpack.c.b16 %v342, %v340
    %v587 = vpack.c.b16 %v345, %v343
    %v588 = vpack.c.b16 %v346, %v344
    %v589 = vpack.c.b16 %v349, %v347
    %v590 = vpack.c.b16 %v350, %v348
    %v591 = vpack.c.b16 %v353, %v351
    %v592 = vpack.c.b16 %v354, %v352
    %v593 = vpack.c.b16 %v357, %v355
    %v594 = vpack.c.b16 %v358, %v356
    %v595 = vpack.c.b16 %v361, %v359
    %v596 = vpack.c.b16 %v362, %v360
    %v597 = vpack.c.b16 %v365, %v363
    %v598 = vpack.c.b16 %v366, %v364
    %v599 = vpack.c.b16 %v369, %v367
    %v600 = vpack.c.b16 %v370, %v368
    %v601 = vpack.c.b16 %v373, %v371
    %v602 = vpack.c.b16 %v374, %v372
    %v603 = vpack.c.b16 %v377, %v375
    %v604 = vpack.c.b16 %v378, %v376
    %v605 = vpack.c.b16 %v381, %v379
    %v606 = vpack.c.b16 %v382, %v380
    %v607 = vpack.c.b16 %v385, %v383
    %v608 = vpack.c.b16 %v386, %v384
    %v609 = vpack.c.b16 %v389, %v387
    %v610 = vpack.c.b16 %v390, %v388
    %v611 = vpack.c.b16 %v393, %v391
    %v612 = vpack.c.b16 %v394, %v392
    %v613 = vpack.c.b16 %v397, %v395
    %v614 = vpack.c.b16 %v398, %v396
    %v615 = vpack.c.b16 %v401, %v399
    %v616 = vpack.c.b16 %v402, %v400
    %v617 = vpack.c.b16 %v405, %v403
    %v618 = vpack.c.b16 %v406, %v404
    %v619 = vpack.c.b16 %v409, %v407
    %v620 = vpack.c.b16 %v410, %v408
    %v621 = vpack.c.b16 %v413, %v411
    %v622 = vpack.c.b16 %v414, %v412
    %v623 = vpack.c.b16 %v417, %v415
    %v624 = vpack.c.b16 %v418, %v416
    %v625 = vpack.c.b16 %v421, %v419
    %v626 = vpack.c.b16 %v422, %v420
    %v627 = vpack.c.b16 %v425, %v423
    %v628 = vpack.c.b16 %v426, %v424
    %v629 = vpack.c.b16 %v429, %v427
    %v630 = vpack.c.b16 %v430, %v428
    %v631 = vpack.c.b16 %v433, %v431
    %v632 = vpack.c.b16 %v434, %v432
    %v633 = vpack.c.b16 %v437, %v435
    %v634 = vpack.c.b16 %v438, %v436
    %v635 = vpack.c.b16 %v441, %v439
    %v636 = vpack.c.b16 %v442, %v440
    %v637 = vpack.c.b16 %v445, %v443
    %v638 = vpack.c.b16 %v446, %v444
    %v639 = vpack.c.b16 %v449, %v447
    %v640 = vpack.c.b16 %v450, %v448
    %v641 = vpack.c.b16 %v453, %v451
    %v642 = vpack.c.b16 %v454, %v452
    %v643 = vpack.c.b16 %v457, %v455
    %v644 = vpack.c.b16 %v458, %v456
    %v645 = vpack.c.b16 %v461, %v459
    %v646 = vpack.c.b16 %v462, %v460
    %v647 = vpack.c.b16 %v465, %v463
    %v648 = vpack.c.b16 %v466, %v464
    %v649 = vpack.c.b16 %v469, %v467
    %v650 = vpack.c.b16 %v470, %v468
    %v651 = vpack.c.b16 %v473, %v471
    %v652 = vpack.c.b16 %v474, %v472
    %v653 = vpack.c.b16 %v477, %v475
    %v654 = vpack.c.b16 %v478, %v476
    %v655 = vpack.c.b16 %v481, %v479
    %v656 = vpack.c.b16 %v482, %v480
    %v657 = vpack.c.b16 %v485, %v483
    %v658 = vpack.c.b16 %v486, %v484
    %v659 = vpack.c.b16 %v489, %v487
    %v660 = vpack.c.b16 %v490, %v488
    %v661 = vpack.c.b16 %v493, %v491
    %v662 = vpack.c.b16 %v494, %v492
    %v663 = vpack.c.b16 %v497, %v495
    %v664 = vpack.c.b16 %v498, %v496
    %v665 = vpack.c.b16 %v501, %v499
    %v666 = vpack.c.b16 %v502, %v500
    %v667 = vpack.c.b16 %v505, %v503
    %v668 = vpack.c.b16 %v506, %v504
    %v669 = vpack.c.b16 %v509, %v507
    %v670 = vpack.c.b16 %v510, %v508
    %v671 = vpack.c.b16 %v513, %v511
    %v672 = vpack.c.b16 %v514, %v512
    %v673 = vpack.c.b16 %v517, %v515
    %v674 = vpack.c.b16 %v518, %v516
    %v675 = vpack.c.b16 %v521, %v519
    %v676 = vpack.c.b16 %v522, %v520
    %v677 = vpack.c.b16 %v525, %v523
    %v678 = vpack.c.b16 %v526, %v524
    %v679 = vpack.c.b16 %v529, %v527
    %v680 = vpack.c.b16 %v530, %v528
    %v681 = vpack.c.b16 %v533, %v531
    %v682 = vpack.c.b16 %v534, %v532
    %v683 = vpack.c.b16 %v537, %v535
    %v684 = vpack.c.b16 %v538, %v536
    %v685 = vpack.c.b16 %v541, %v539
    %v686 = vpack.c.b16 %v542, %v540
    %v687 = vpack.c.b16 %v545, %v543
    %v688 = vpack.c.b16 %v546, %v544
    %v689 = vpack.c.b16 %v549, %v547
    %v690 = vpack.c.b16 %v550, %v548
    %v691 = vpack.c.b16 %v553, %v551
    %v692 = vpack.c.b16 %v554, %v552
    %v693 = vpack.c.b16 %v557, %v555
    %v694 = vpack.c.b16 %v558, %v556
    %v695 = vpack.c.b16 %v561, %v559
    %v696 = vpack.c.b16 %v562, %v560
    %v697 = vpack.c.b16 %v565, %v563
    %v698 = vpack.c.b16 %v566, %v564
    %v699 = vpack.c.b16 %v569, %v567
    %v700 = vpack.c.b16 %v570, %v568
    %v701 = vpack.c.b16 %v573, %v571
    %v702 = vpack.c.b16 %v574, %v572
    %831 = vmatpush.bf16.msra.mxu0 %v589
    %832 = vmatpush.bf16.msra.mxu0 %v587
    %833 = vmatpush.bf16.msra.mxu0 %v585
    %834 = vmatpush.bf16.msra.mxu0 %v583
    %835 = vmatpush.bf16.msra.mxu0 %v581
    %836 = vmatpush.bf16.msra.mxu0 %v579
    %837 = vmatpush.bf16.msra.mxu0 %v577
    %838 = vmatpush.bf16.msra.mxu0 %v575
    %839 = vmatmul.bf16.gmra.mxu0 %v49
    %v840 = vpop.f32.mrf.mxu0
    %v841 = vadd.f32 %v187, %v840
    %v842 = vpop.f32.mrf.mxu0
    %v843 = vadd.f32 %v187, %v842
    %844 = vdwg.mxu0
    %845 = vmatpush.bf16.msra.mxu0 %v605
    %846 = vmatpush.bf16.msra.mxu0 %v603
    %847 = vmatpush.bf16.msra.mxu0 %v601
    %848 = vmatpush.bf16.msra.mxu0 %v599
    %849 = vmatpush.bf16.msra.mxu0 %v597
    %850 = vmatpush.bf16.msra.mxu0 %v595
    %851 = vmatpush.bf16.msra.mxu0 %v593
    %852 = vmatpush.bf16.msra.mxu0 %v591
    %853 = vmatmul.bf16.gmra.mxu0 %v50
    %v854 = vpop.f32.mrf.mxu0
    %v855 = vadd.f32 %v841, %v854
    %v856 = vpop.f32.mrf.mxu0
    %v857 = vadd.f32 %v843, %v856
    %858 = vdwg.mxu0
    %859 = vmatpush.bf16.msra.mxu0 %v621
    %860 = vmatpush.bf16.msra.mxu0 %v619
    %861 = vmatpush.bf16.msra.mxu0 %v617
    %862 = vmatpush.bf16.msra.mxu0 %v615
    %863 = vmatpush.bf16.msra.mxu0 %v613
    %864 = vmatpush.bf16.msra.mxu0 %v611
    %865 = vmatpush.bf16.msra.mxu0 %v609
    %866 = vmatpush.bf16.msra.mxu0 %v607
    %867 = vmatmul.bf16.gmra.mxu0 %v51
    %v868 = vpop.f32.mrf.mxu0
    %v869 = vadd.f32 %v855, %v868
    %v870 = vpop.f32.mrf.mxu0
    %v871 = vadd.f32 %v857, %v870
    %872 = vdwg.mxu0
    %873 = vmatpush.bf16.msra.mxu0 %v637
    %874 = vmatpush.bf16.msra.mxu0 %v635
    %875 = vmatpush.bf16.msra.mxu0 %v633
    %876 = vmatpush.bf16.msra.mxu0 %v631
    %877 = vmatpush.bf16.msra.mxu0 %v629
    %878 = vmatpush.bf16.msra.mxu0 %v627
    %879 = vmatpush.bf16.msra.mxu0 %v625
    %880 = vmatpush.bf16.msra.mxu0 %v623
    %881 = vmatmul.bf16.gmra.mxu0 %v52
    %v882 = vpop.f32.mrf.mxu0
    %v883 = vadd.f32 %v869, %v882
    %v884 = vpop.f32.mrf.mxu0
    %v885 = vadd.f32 %v871, %v884
    %886 = vdwg.mxu0
    %887 = vmatpush.bf16.msra.mxu0 %v653
    %888 = vmatpush.bf16.msra.mxu0 %v651
    %889 = vmatpush.bf16.msra.mxu0 %v649
    %890 = vmatpush.bf16.msra.mxu0 %v647
    %891 = vmatpush.bf16.msra.mxu0 %v645
    %892 = vmatpush.bf16.msra.mxu0 %v643
    %893 = vmatpush.bf16.msra.mxu0 %v641
    %894 = vmatpush.bf16.msra.mxu0 %v639
    %895 = vmatmul.bf16.gmra.mxu0 %v53
    %v896 = vpop.f32.mrf.mxu0
    %v897 = vadd.f32 %v883, %v896
    %v898 = vpop.f32.mrf.mxu0
    %v899 = vadd.f32 %v885, %v898
    %900 = vdwg.mxu0
    %901 = vmatpush.bf16.msra.mxu0 %v669
    %902 = vmatpush.bf16.msra.mxu0 %v667
    %903 = vmatpush.bf16.msra.mxu0 %v665
    %904 = vmatpush.bf16.msra.mxu0 %v663
    %905 = vmatpush.bf16.msra.mxu0 %v661
    %906 = vmatpush.bf16.msra.mxu0 %v659
    %907 = vmatpush.bf16.msra.mxu0 %v657
    %908 = vmatpush.bf16.msra.mxu0 %v655
    %909 = vmatmul.bf16.gmra.mxu0 %v54
    %v910 = vpop.f32.mrf.mxu0
    %v911 = vadd.f32 %v897, %v910
    %v912 = vpop.f32.mrf.mxu0
    %v913 = vadd.f32 %v899, %v912
    %914 = vdwg.mxu0
    %915 = vmatpush.bf16.msra.mxu0 %v685
    %916 = vmatpush.bf16.msra.mxu0 %v683
    %917 = vmatpush.bf16.msra.mxu0 %v681
    %918 = vmatpush.bf16.msra.mxu0 %v679
    %919 = vmatpush.bf16.msra.mxu0 %v677
    %920 = vmatpush.bf16.msra.mxu0 %v675
    %921 = vmatpush.bf16.msra.mxu0 %v673
    %922 = vmatpush.bf16.msra.mxu0 %v671
    %923 = vmatmul.bf16.gmra.mxu0 %v55
    %v924 = vpop.f32.mrf.mxu0
    %v925 = vadd.f32 %v911, %v924
    %v926 = vpop.f32.mrf.mxu0
    %v927 = vadd.f32 %v913, %v926
    %928 = vdwg.mxu0
    %929 = vmatpush.bf16.msra.mxu0 %v701
    %930 = vmatpush.bf16.msra.mxu0 %v699
    %931 = vmatpush.bf16.msra.mxu0 %v697
    %932 = vmatpush.bf16.msra.mxu0 %v695
    %933 = vmatpush.bf16.msra.mxu0 %v693
    %934 = vmatpush.bf16.msra.mxu0 %v691
    %935 = vmatpush.bf16.msra.mxu0 %v689
    %936 = vmatpush.bf16.msra.mxu0 %v687
    %937 = vmatmul.bf16.gmra.mxu0 %v56
    %v938 = vpop.f32.mrf.mxu0
    %v939 = vadd.f32 %v925, %v938
    %v940 = vpop.f32.mrf.mxu0
    %v941 = vadd.f32 %v927, %v940
    %942 = vdwg.mxu0
    %943 = vmatpush.bf16.msra.mxu0 %v590
    %944 = vmatpush.bf16.msra.mxu0 %v588
    %945 = vmatpush.bf16.msra.mxu0 %v586
    %946 = vmatpush.bf16.msra.mxu0 %v584
    %947 = vmatpush.bf16.msra.mxu0 %v582
    %948 = vmatpush.bf16.msra.mxu0 %v580
    %949 = vmatpush.bf16.msra.mxu0 %v578
    %950 = vmatpush.bf16.msra.mxu0 %v576
    %951 = vmatmul.bf16.gmra.mxu0 %v49
    %v952 = vpop.f32.mrf.mxu0
    %v953 = vadd.f32 %v188, %v952
    %v954 = vpop.f32.mrf.mxu0
    %v955 = vadd.f32 %v188, %v954
    %956 = vdwg.mxu0
    %957 = vmatpush.bf16.msra.mxu0 %v606
    %958 = vmatpush.bf16.msra.mxu0 %v604
    %959 = vmatpush.bf16.msra.mxu0 %v602
    %960 = vmatpush.bf16.msra.mxu0 %v600
    %961 = vmatpush.bf16.msra.mxu0 %v598
    %962 = vmatpush.bf16.msra.mxu0 %v596
    %963 = vmatpush.bf16.msra.mxu0 %v594
    %964 = vmatpush.bf16.msra.mxu0 %v592
    %965 = vmatmul.bf16.gmra.mxu0 %v50
    %v966 = vpop.f32.mrf.mxu0
    %v967 = vadd.f32 %v953, %v966
    %v968 = vpop.f32.mrf.mxu0
    %v969 = vadd.f32 %v955, %v968
    %970 = vdwg.mxu0
    %971 = vmatpush.bf16.msra.mxu0 %v622
    %972 = vmatpush.bf16.msra.mxu0 %v620
    %973 = vmatpush.bf16.msra.mxu0 %v618
    %974 = vmatpush.bf16.msra.mxu0 %v616
    %975 = vmatpush.bf16.msra.mxu0 %v614
    %976 = vmatpush.bf16.msra.mxu0 %v612
    %977 = vmatpush.bf16.msra.mxu0 %v610
    %978 = vmatpush.bf16.msra.mxu0 %v608
    %979 = vmatmul.bf16.gmra.mxu0 %v51
    %v980 = vpop.f32.mrf.mxu0
    %v981 = vadd.f32 %v967, %v980
    %v982 = vpop.f32.mrf.mxu0
    %v983 = vadd.f32 %v969, %v982
    %984 = vdwg.mxu0
    %985 = vmatpush.bf16.msra.mxu0 %v638
    %986 = vmatpush.bf16.msra.mxu0 %v636
    %987 = vmatpush.bf16.msra.mxu0 %v634
    %988 = vmatpush.bf16.msra.mxu0 %v632
    %989 = vmatpush.bf16.msra.mxu0 %v630
    %990 = vmatpush.bf16.msra.mxu0 %v628
    %991 = vmatpush.bf16.msra.mxu0 %v626
    %992 = vmatpush.bf16.msra.mxu0 %v624
    %993 = vmatmul.bf16.gmra.mxu0 %v52
    %v994 = vpop.f32.mrf.mxu0
    %v995 = vadd.f32 %v981, %v994
    %v996 = vpop.f32.mrf.mxu0
    %v997 = vadd.f32 %v983, %v996
    %998 = vdwg.mxu0
    %999 = vmatpush.bf16.msra.mxu0 %v654
    %1000 = vmatpush.bf16.msra.mxu0 %v652
    %1001 = vmatpush.bf16.msra.mxu0 %v650
    %1002 = vmatpush.bf16.msra.mxu0 %v648
    %1003 = vmatpush.bf16.msra.mxu0 %v646
    %1004 = vmatpush.bf16.msra.mxu0 %v644
    %1005 = vmatpush.bf16.msra.mxu0 %v642
    %1006 = vmatpush.bf16.msra.mxu0 %v640
    %1007 = vmatmul.bf16.gmra.mxu0 %v53
    %v1008 = vpop.f32.mrf.mxu0
    %v1009 = vadd.f32 %v995, %v1008
    %v1010 = vpop.f32.mrf.mxu0
    %v1011 = vadd.f32 %v997, %v1010
    %1012 = vdwg.mxu0
    %1013 = vmatpush.bf16.msra.mxu0 %v670
    %1014 = vmatpush.bf16.msra.mxu0 %v668
    %1015 = vmatpush.bf16.msra.mxu0 %v666
    %1016 = vmatpush.bf16.msra.mxu0 %v664
    %1017 = vmatpush.bf16.msra.mxu0 %v662
    %1018 = vmatpush.bf16.msra.mxu0 %v660
    %1019 = vmatpush.bf16.msra.mxu0 %v658
    %1020 = vmatpush.bf16.msra.mxu0 %v656
    %1021 = vmatmul.bf16.gmra.mxu0 %v54
    %v1022 = vpop.f32.mrf.mxu0
    %v1023 = vadd.f32 %v1009, %v1022
    %v1024 = vpop.f32.mrf.mxu0
    %v1025 = vadd.f32 %v1011, %v1024
    %1026 = vdwg.mxu0
    %1027 = vmatpush.bf16.msra.mxu0 %v686
    %1028 = vmatpush.bf16.msra.mxu0 %v684
    %1029 = vmatpush.bf16.msra.mxu0 %v682
    %1030 = vmatpush.bf16.msra.mxu0 %v680
    %1031 = vmatpush.bf16.msra.mxu0 %v678
    %1032 = vmatpush.bf16.msra.mxu0 %v676
    %1033 = vmatpush.bf16.msra.mxu0 %v674
    %1034 = vmatpush.bf16.msra.mxu0 %v672
    %1035 = vmatmul.bf16.gmra.mxu0 %v55
    %v1036 = vpop.f32.mrf.mxu0
    %v1037 = vadd.f32 %v1023, %v1036
    %v1038 = vpop.f32.mrf.mxu0
    %v1039 = vadd.f32 %v1025, %v1038
    %1040 = vdwg.mxu0
    %1041 = vmatpush.bf16.msra.mxu0 %v702
    %1042 = vmatpush.bf16.msra.mxu0 %v700
    %1043 = vmatpush.bf16.msra.mxu0 %v698
    %1044 = vmatpush.bf16.msra.mxu0 %v696
    %1045 = vmatpush.bf16.msra.mxu0 %v694
    %1046 = vmatpush.bf16.msra.mxu0 %v692
    %1047 = vmatpush.bf16.msra.mxu0 %v690
    %1048 = vmatpush.bf16.msra.mxu0 %v688
    %1049 = vmatmul.bf16.gmra.mxu0 %v56
    %v1050 = vpop.f32.mrf.mxu0
    %v1051 = vadd.f32 %v1037, %v1050
    %v1052 = vpop.f32.mrf.mxu0
    %v1053 = vadd.f32 %v1039, %v1052
    %1054 = vdwg.mxu0
    %v1055 = vadd.f32 %v939, %v941
    %v1056 = vrot.slane %v1055, 4
    %v1057 = vadd.f32 %v1055, %v1056
    %v1058 = vrot.slane %v1057, 2
    %v1059 = vadd.f32 %v1057, %v1058
    %v1060 = vrot.slane %v1059, 1
    %v1061 = vadd.f32 %v1059, %v1060
    %v1062 = vadd.f32 %v1051, %v1053
    %v1063 = vrot.slane %v1062, 4
    %v1064 = vadd.f32 %v1062, %v1063
    %v1065 = vrot.slane %v1064, 2
    %v1066 = vadd.f32 %v1064, %v1065
    %v1067 = vrot.slane %v1066, 1
    %v1068 = vadd.f32 %v1066, %v1067
    %v1069 = vrcp.pop 16.0
    %v1070 = vmul.f32 16.0, %v1069
    %v1071 = vsub.f32 1.0, %v1070
    %v1072 = vmul.f32 %v1069, %v1071
    %v1073 = vadd.f32 %v1069, %v1072
    %vm1074 = vweird.f32 %v1069
    %v1075 = vsel %vm1074, %v1069, %v1073
    %v1076 = vmul.f32 %v1061, %v1075
    %v1077 = vmul.f32 %v1068, %v1075
    %v1078 = vsub.f32 %v939, %v1076
    %v1079 = vsub.f32 %v1051, %v1077
    %v1080 = vsub.f32 %v941, %v1076
    %v1081 = vsub.f32 %v1053, %v1077
    %v1082 = vmul.f32 %v1078, %v1078
    %v1083 = vmul.f32 %v1079, %v1079
    %v1084 = vmul.f32 %v1080, %v1080
    %v1085 = vmul.f32 %v1081, %v1081
    %v1086 = vadd.f32 %v1082, %v1084
    %v1087 = vrot.slane %v1086, 4
    %v1088 = vadd.f32 %v1086, %v1087
    %v1089 = vrot.slane %v1088, 2
    %v1090 = vadd.f32 %v1088, %v1089
    %v1091 = vrot.slane %v1090, 1
    %v1092 = vadd.f32 %v1090, %v1091
    %v1093 = vadd.f32 %v1083, %v1085
    %v1094 = vrot.slane %v1093, 4
    %v1095 = vadd.f32 %v1093, %v1094
    %v1096 = vrot.slane %v1095, 2
    %v1097 = vadd.f32 %v1095, %v1096
    %v1098 = vrot.slane %v1097, 1
    %v1099 = vadd.f32 %v1097, %v1098
    %v1100 = vmul.f32 %v1092, %v1075
    %v1101 = vmul.f32 %v1099, %v1075
    %v1102 = vadd.f32 %v1100, 1e-05
    %v1103 = vadd.f32 %v1101, 1e-05
    %v1104 = vrsqrt.pop %v1102
    %v1105 = vmul.f32 %v1104, %v1102
    %v1106 = vmul.f32 %v1105, %v1104
    %v1107 = vmul.f32 0.5, %v1106
    %v1108 = vsub.f32 1.5, %v1107
    %v1109 = vmul.f32 %v1104, %v1108
    %vm1110 = vweird.f32 %v1102
    %vm1111 = vweird.f32 %v1104
    %vm1112 = vmor %vm1110, %vm1111
    %v1113 = vsel %vm1112, %v1104, %v1109
    %v1114 = vrsqrt.pop %v1103
    %v1115 = vmul.f32 %v1114, %v1103
    %v1116 = vmul.f32 %v1115, %v1114
    %v1117 = vmul.f32 0.5, %v1116
    %v1118 = vsub.f32 1.5, %v1117
    %v1119 = vmul.f32 %v1114, %v1118
    %vm1120 = vweird.f32 %v1103
    %vm1121 = vweird.f32 %v1114
    %vm1122 = vmor %vm1120, %vm1121
    %v1123 = vsel %vm1122, %v1114, %v1119
    %v1124 = vmul.f32 %v1078, %v1113
    %v1125 = vmul.f32 %v1079, %v1123
    %v1126 = vmul.f32 %v1080, %v1113
    %v1127 = vmul.f32 %v1081, %v1123
    %v1128 = vld [vmem:[%s3] sm:$0x3]
    %v1130 = vperm.slane %v1128, 0
    %v1131 = vperm.slane %v1128, 1
    %v1134 = vmul.f32 %v1124, %v1130
    %v1135 = vmul.f32 %v1125, %v1131
    %v1136 = vmul.f32 %v1126, %v1130
    %v1137 = vmul.f32 %v1127, %v1131
    %v1138 = vld [vmem:[%s4] sm:$0x3]
    %v1140 = vperm.slane %v1138, 0
    %v1141 = vperm.slane %v1138, 1
    %v1144 = vadd.f32 %v1134, %v1140
    %v1145 = vadd.f32 %v1135, %v1141
    %v1146 = vadd.f32 %v1136, %v1140
    %v1147 = vadd.f32 %v1137, %v1141
    %v1148 = vmul.f32 %v1144, 0.5
    %v1149 = vmul.f32 %v1145, 0.5
    %v1150 = vmul.f32 %v1146, 0.5
    %v1151 = vmul.f32 %v1147, 0.5
    %v1152 = vmul.f32 %v1144, 0.70710677
    %v1153 = vmul.f32 %v1145, 0.70710677
    %v1154 = vmul.f32 %v1146, 0.70710677
    %v1155 = vmul.f32 %v1147, 0.70710677
    %v1156 = vmul.f32 %v1152, %v1152
    %v1157 = vmin.f32 16.0, %v1156
    %v1158 = vmul.f32 %v1157, 2.1237322e-06
    %v1159 = vadd.f32 %v1158, 0.00028619796
    %v1160 = vmul.f32 %v1157, %v1159
    %v1161 = vadd.f32 %v1160, 0.0036580483
    %v1162 = vmul.f32 %v1157, %v1161
    %v1163 = vadd.f32 %v1162, 0.05243302
    %v1164 = vmul.f32 %v1157, %v1163
    %v1165 = vadd.f32 %v1164, 0.18741608
    %v1166 = vmul.f32 %v1157, %v1165
    %v1167 = vadd.f32 %v1166, 1.1283791
    %v1168 = vmul.f32 %v1152, %v1167
    %v1169 = vmul.f32 %v1157, 3.8918573e-05
    %v1170 = vadd.f32 %v1169, 0.001143296
    %v1171 = vmul.f32 %v1157, %v1170
    %v1172 = vadd.f32 %v1171, 0.014752088
    %v1173 = vmul.f32 %v1157, %v1172
    %v1174 = vadd.f32 %v1173, 0.112945676
    %v1175 = vmul.f32 %v1157, %v1174
    %v1176 = vadd.f32 %v1175, 0.4994258
    %v1177 = vmul.f32 %v1157, %v1176
    %v1178 = vadd.f32 %v1177, 1.0
    %v1179 = vrcp.pop %v1178
    %v1180 = vmul.f32 %v1178, %v1179
    %v1181 = vsub.f32 1.0, %v1180
    %v1182 = vmul.f32 %v1179, %v1181
    %v1183 = vadd.f32 %v1179, %v1182
    %vm1184 = vweird.f32 %v1178
    %vm1185 = vweird.f32 %v1179
    %vm1186 = vmor %vm1184, %vm1185
    %v1187 = vsel %vm1186, %v1179, %v1183
    %v1188 = vand.u32 2147483647, %v1178
    %vm1189 = vcmp.eq.f32.partialorder %v1188, 8.507059e+37
    %v1190 = vand.u32 %v1178, 2147483648
    %v1191 = vor.u32 1.1754944e-38, %v1190
    %v1192 = vsel %vm1189, %v1191, %v1187
    %v1193 = vmul.f32 %v1168, %v1192
    %v1194 = vmin.f32 %v1193, 1.0
    %v1195 = vmax.f32 %v1194, -1.0
    %v1196 = vmul.f32 %v1153, %v1153
    %v1197 = vmin.f32 16.0, %v1196
    %v1198 = vmul.f32 %v1197, 2.1237322e-06
    %v1199 = vadd.f32 %v1198, 0.00028619796
    %v1200 = vmul.f32 %v1197, %v1199
    %v1201 = vadd.f32 %v1200, 0.0036580483
    %v1202 = vmul.f32 %v1197, %v1201
    %v1203 = vadd.f32 %v1202, 0.05243302
    %v1204 = vmul.f32 %v1197, %v1203
    %v1205 = vadd.f32 %v1204, 0.18741608
    %v1206 = vmul.f32 %v1197, %v1205
    %v1207 = vadd.f32 %v1206, 1.1283791
    %v1208 = vmul.f32 %v1153, %v1207
    %v1209 = vmul.f32 %v1197, 3.8918573e-05
    %v1210 = vadd.f32 %v1209, 0.001143296
    %v1211 = vmul.f32 %v1197, %v1210
    %v1212 = vadd.f32 %v1211, 0.014752088
    %v1213 = vmul.f32 %v1197, %v1212
    %v1214 = vadd.f32 %v1213, 0.112945676
    %v1215 = vmul.f32 %v1197, %v1214
    %v1216 = vadd.f32 %v1215, 0.4994258
    %v1217 = vmul.f32 %v1197, %v1216
    %v1218 = vadd.f32 %v1217, 1.0
    %v1219 = vrcp.pop %v1218
    %v1220 = vmul.f32 %v1218, %v1219
    %v1221 = vsub.f32 1.0, %v1220
    %v1222 = vmul.f32 %v1219, %v1221
    %v1223 = vadd.f32 %v1219, %v1222
    %vm1224 = vweird.f32 %v1218
    %vm1225 = vweird.f32 %v1219
    %vm1226 = vmor %vm1224, %vm1225
    %v1227 = vsel %vm1226, %v1219, %v1223
    %v1228 = vand.u32 2147483647, %v1218
    %vm1229 = vcmp.eq.f32.partialorder %v1228, 8.507059e+37
    %v1230 = vand.u32 %v1218, 2147483648
    %v1231 = vor.u32 1.1754944e-38, %v1230
    %v1232 = vsel %vm1229, %v1231, %v1227
    %v1233 = vmul.f32 %v1208, %v1232
    %v1234 = vmin.f32 %v1233, 1.0
    %v1235 = vmax.f32 %v1234, -1.0
    %v1236 = vmul.f32 %v1154, %v1154
    %v1237 = vmin.f32 16.0, %v1236
    %v1238 = vmul.f32 %v1237, 2.1237322e-06
    %v1239 = vadd.f32 %v1238, 0.00028619796
    %v1240 = vmul.f32 %v1237, %v1239
    %v1241 = vadd.f32 %v1240, 0.0036580483
    %v1242 = vmul.f32 %v1237, %v1241
    %v1243 = vadd.f32 %v1242, 0.05243302
    %v1244 = vmul.f32 %v1237, %v1243
    %v1245 = vadd.f32 %v1244, 0.18741608
    %v1246 = vmul.f32 %v1237, %v1245
    %v1247 = vadd.f32 %v1246, 1.1283791
    %v1248 = vmul.f32 %v1154, %v1247
    %v1249 = vmul.f32 %v1237, 3.8918573e-05
    %v1250 = vadd.f32 %v1249, 0.001143296
    %v1251 = vmul.f32 %v1237, %v1250
    %v1252 = vadd.f32 %v1251, 0.014752088
    %v1253 = vmul.f32 %v1237, %v1252
    %v1254 = vadd.f32 %v1253, 0.112945676
    %v1255 = vmul.f32 %v1237, %v1254
    %v1256 = vadd.f32 %v1255, 0.4994258
    %v1257 = vmul.f32 %v1237, %v1256
    %v1258 = vadd.f32 %v1257, 1.0
    %v1259 = vrcp.pop %v1258
    %v1260 = vmul.f32 %v1258, %v1259
    %v1261 = vsub.f32 1.0, %v1260
    %v1262 = vmul.f32 %v1259, %v1261
    %v1263 = vadd.f32 %v1259, %v1262
    %vm1264 = vweird.f32 %v1258
    %vm1265 = vweird.f32 %v1259
    %vm1266 = vmor %vm1264, %vm1265
    %v1267 = vsel %vm1266, %v1259, %v1263
    %v1268 = vand.u32 2147483647, %v1258
    %vm1269 = vcmp.eq.f32.partialorder %v1268, 8.507059e+37
    %v1270 = vand.u32 %v1258, 2147483648
    %v1271 = vor.u32 1.1754944e-38, %v1270
    %v1272 = vsel %vm1269, %v1271, %v1267
    %v1273 = vmul.f32 %v1248, %v1272
    %v1274 = vmin.f32 %v1273, 1.0
    %v1275 = vmax.f32 %v1274, -1.0
    %v1276 = vmul.f32 %v1155, %v1155
    %v1277 = vmin.f32 16.0, %v1276
    %v1278 = vmul.f32 %v1277, 2.1237322e-06
    %v1279 = vadd.f32 %v1278, 0.00028619796
    %v1280 = vmul.f32 %v1277, %v1279
    %v1281 = vadd.f32 %v1280, 0.0036580483
    %v1282 = vmul.f32 %v1277, %v1281
    %v1283 = vadd.f32 %v1282, 0.05243302
    %v1284 = vmul.f32 %v1277, %v1283
    %v1285 = vadd.f32 %v1284, 0.18741608
    %v1286 = vmul.f32 %v1277, %v1285
    %v1287 = vadd.f32 %v1286, 1.1283791
    %v1288 = vmul.f32 %v1155, %v1287
    %v1289 = vmul.f32 %v1277, 3.8918573e-05
    %v1290 = vadd.f32 %v1289, 0.001143296
    %v1291 = vmul.f32 %v1277, %v1290
    %v1292 = vadd.f32 %v1291, 0.014752088
    %v1293 = vmul.f32 %v1277, %v1292
    %v1294 = vadd.f32 %v1293, 0.112945676
    %v1295 = vmul.f32 %v1277, %v1294
    %v1296 = vadd.f32 %v1295, 0.4994258
    %v1297 = vmul.f32 %v1277, %v1296
    %v1298 = vadd.f32 %v1297, 1.0
    %v1299 = vrcp.pop %v1298
    %v1300 = vmul.f32 %v1298, %v1299
    %v1301 = vsub.f32 1.0, %v1300
    %v1302 = vmul.f32 %v1299, %v1301
    %v1303 = vadd.f32 %v1299, %v1302
    %vm1304 = vweird.f32 %v1298
    %vm1305 = vweird.f32 %v1299
    %vm1306 = vmor %vm1304, %vm1305
    %v1307 = vsel %vm1306, %v1299, %v1303
    %v1308 = vand.u32 2147483647, %v1298
    %vm1309 = vcmp.eq.f32.partialorder %v1308, 8.507059e+37
    %v1310 = vand.u32 %v1298, 2147483648
    %v1311 = vor.u32 1.1754944e-38, %v1310
    %v1312 = vsel %vm1309, %v1311, %v1307
    %v1313 = vmul.f32 %v1288, %v1312
    %v1314 = vmin.f32 %v1313, 1.0
    %v1315 = vmax.f32 %v1314, -1.0
    %v1316 = vadd.f32 %v1195, 1.0
    %v1317 = vadd.f32 %v1235, 1.0
    %v1318 = vadd.f32 %v1275, 1.0
    %v1319 = vadd.f32 %v1315, 1.0
    %v1320 = vmul.f32 %v1148, %v1316
    %v1321 = vmul.f32 %v1149, %v1317
    %v1322 = vmul.f32 %v1150, %v1318
    %v1323 = vmul.f32 %v1151, %v1319
    %v1324 = vpack.c.bf16 %v1322, %v1320
    %v1325 = vpack.c.bf16 %v1323, %v1321
    %v1326 = vld [vmem:[%s5] sm:$0xf]
    %v1327 = vld [vmem:[%s5 + $0x4] sm:$0xf]
    %v1328 = vld [vmem:[%s5 + $0x8] sm:$0xf]
    %v1329 = vld [vmem:[%s5 + $0xc] sm:$0xf]
    %v1330 = vld [vmem:[%s5 + $0x10] sm:$0xf]
    %v1331 = vld [vmem:[%s5 + $0x14] sm:$0xf]
    %v1332 = vld [vmem:[%s5 + $0x18] sm:$0xf]
    %v1333 = vld [vmem:[%s5 + $0x1c] sm:$0xf]
    %v1334 = vld [vmem:[%s5 + $0x20] sm:$0xf]
    %v1335 = vld [vmem:[%s5 + $0x24] sm:$0xf]
    %v1336 = vld [vmem:[%s5 + $0x28] sm:$0xf]
    %v1337 = vld [vmem:[%s5 + $0x2c] sm:$0xf]
    %v1338 = vld [vmem:[%s5 + $0x30] sm:$0xf]
    %v1339 = vld [vmem:[%s5 + $0x34] sm:$0xf]
    %v1340 = vld [vmem:[%s5 + $0x38] sm:$0xf]
    %v1341 = vld [vmem:[%s5 + $0x3c] sm:$0xf]
    %v1342 = vld [vmem:[%s5 + $0x40] sm:$0xf]
    %v1343 = vld [vmem:[%s5 + $0x44] sm:$0xf]
    %v1344 = vld [vmem:[%s5 + $0x48] sm:$0xf]
    %v1345 = vld [vmem:[%s5 + $0x4c] sm:$0xf]
    %v1346 = vld [vmem:[%s5 + $0x50] sm:$0xf]
    %v1347 = vld [vmem:[%s5 + $0x54] sm:$0xf]
    %v1348 = vld [vmem:[%s5 + $0x58] sm:$0xf]
    %v1349 = vld [vmem:[%s5 + $0x5c] sm:$0xf]
    %v1350 = vld [vmem:[%s5 + $0x60] sm:$0xf]
    %v1351 = vld [vmem:[%s5 + $0x64] sm:$0xf]
    %v1352 = vld [vmem:[%s5 + $0x68] sm:$0xf]
    %v1353 = vld [vmem:[%s5 + $0x6c] sm:$0xf]
    %v1354 = vld [vmem:[%s5 + $0x70] sm:$0xf]
    %v1355 = vld [vmem:[%s5 + $0x74] sm:$0xf]
    %v1356 = vld [vmem:[%s5 + $0x78] sm:$0xf]
    %v1357 = vld [vmem:[%s5 + $0x7c] sm:$0xf]
    %v1358 = vld [vmem:[%s6] sm:$0x1]
    %v1360 = vperm.slane %v1358, 0
    %v1394 = vunpack.c.l.b16 %v1326
    %v1395 = vunpack.c.l.b16 %v1327
    %v1396 = vunpack.c.l.b16 %v1328
    %v1397 = vunpack.c.l.b16 %v1329
    %v1398 = vunpack.c.l.b16 %v1330
    %v1399 = vunpack.c.l.b16 %v1331
    %v1400 = vunpack.c.l.b16 %v1332
    %v1401 = vunpack.c.l.b16 %v1333
    %v1402 = vunpack.c.l.b16 %v1334
    %v1403 = vunpack.c.l.b16 %v1335
    %v1404 = vunpack.c.l.b16 %v1336
    %v1405 = vunpack.c.l.b16 %v1337
    %v1406 = vunpack.c.l.b16 %v1338
    %v1407 = vunpack.c.l.b16 %v1339
    %v1408 = vunpack.c.l.b16 %v1340
    %v1409 = vunpack.c.l.b16 %v1341
    %v1410 = vunpack.c.l.b16 %v1342
    %v1411 = vunpack.c.l.b16 %v1343
    %v1412 = vunpack.c.l.b16 %v1344
    %v1413 = vunpack.c.l.b16 %v1345
    %v1414 = vunpack.c.l.b16 %v1346
    %v1415 = vunpack.c.l.b16 %v1347
    %v1416 = vunpack.c.l.b16 %v1348
    %v1417 = vunpack.c.l.b16 %v1349
    %v1418 = vunpack.c.l.b16 %v1350
    %v1419 = vunpack.c.l.b16 %v1351
    %v1420 = vunpack.c.l.b16 %v1352
    %v1421 = vunpack.c.l.b16 %v1353
    %v1422 = vunpack.c.l.b16 %v1354
    %v1423 = vunpack.c.l.b16 %v1355
    %v1424 = vunpack.c.l.b16 %v1356
    %v1425 = vunpack.c.l.b16 %v1357
    %v1426 = vpack.c.b16 %v1395, %v1394
    %v1427 = vpack.c.b16 %v1397, %v1396
    %v1428 = vpack.c.b16 %v1399, %v1398
    %v1429 = vpack.c.b16 %v1401, %v1400
    %v1430 = vpack.c.b16 %v1403, %v1402
    %v1431 = vpack.c.b16 %v1405, %v1404
    %v1432 = vpack.c.b16 %v1407, %v1406
    %v1433 = vpack.c.b16 %v1409, %v1408
    %v1434 = vpack.c.b16 %v1411, %v1410
    %v1435 = vpack.c.b16 %v1413, %v1412
    %v1436 = vpack.c.b16 %v1415, %v1414
    %v1437 = vpack.c.b16 %v1417, %v1416
    %v1438 = vpack.c.b16 %v1419, %v1418
    %v1439 = vpack.c.b16 %v1421, %v1420
    %v1440 = vpack.c.b16 %v1423, %v1422
    %v1441 = vpack.c.b16 %v1425, %v1424
    %1458 = vmatpush.bf16.msra.mxu0 %v1433
    %1459 = vmatpush.bf16.msra.mxu0 %v1432
    %1460 = vmatpush.bf16.msra.mxu0 %v1431
    %1461 = vmatpush.bf16.msra.mxu0 %v1430
    %1462 = vmatpush.bf16.msra.mxu0 %v1429
    %1463 = vmatpush.bf16.msra.mxu0 %v1428
    %1464 = vmatpush.bf16.msra.mxu0 %v1427
    %1465 = vmatpush.bf16.msra.mxu0 %v1426
    %1466 = vmatmul.bf16.gmra.mxu0 %v1324
    %v1467 = vpop.f32.mrf.mxu0
    %v1468 = vadd.f32 %v1360, %v1467
    %v1469 = vpop.f32.mrf.mxu0
    %v1470 = vadd.f32 %v1360, %v1469
    %1471 = vdwg.mxu0
    %1472 = vmatpush.bf16.msra.mxu0 %v1441
    %1473 = vmatpush.bf16.msra.mxu0 %v1440
    %1474 = vmatpush.bf16.msra.mxu0 %v1439
    %1475 = vmatpush.bf16.msra.mxu0 %v1438
    %1476 = vmatpush.bf16.msra.mxu0 %v1437
    %1477 = vmatpush.bf16.msra.mxu0 %v1436
    %1478 = vmatpush.bf16.msra.mxu0 %v1435
    %1479 = vmatpush.bf16.msra.mxu0 %v1434
    %1480 = vmatmul.bf16.gmra.mxu0 %v1325
    %v1481 = vpop.f32.mrf.mxu0
    %v1482 = vadd.f32 %v1468, %v1481
    %v1483 = vpop.f32.mrf.mxu0
    %v1484 = vadd.f32 %v1470, %v1483
    %1485 = vdwg.mxu0
    %v1486 = vadd.f32 %v1482, %v1484
    %v1487 = vrot.slane %v1486, 4
    %v1488 = vadd.f32 %v1486, %v1487
    %v1489 = vrot.slane %v1488, 2
    %v1490 = vadd.f32 %v1488, %v1489
    %v1491 = vrot.slane %v1490, 1
    %v1492 = vadd.f32 %v1490, %v1491
    %v1493 = vmul.f32 %v1492, %v1075
    %v1494 = vsub.f32 %v1482, %v1493
    %v1495 = vsub.f32 %v1484, %v1493
    %v1496 = vmul.f32 %v1494, %v1494
    %v1497 = vmul.f32 %v1495, %v1495
    %v1498 = vadd.f32 %v1496, %v1497
    %v1499 = vrot.slane %v1498, 4
    %v1500 = vadd.f32 %v1498, %v1499
    %v1501 = vrot.slane %v1500, 2
    %v1502 = vadd.f32 %v1500, %v1501
    %v1503 = vrot.slane %v1502, 1
    %v1504 = vadd.f32 %v1502, %v1503
    %v1505 = vmul.f32 %v1504, %v1075
    %v1506 = vadd.f32 %v1505, 1e-05
    %v1507 = vrsqrt.pop %v1506
    %v1508 = vmul.f32 %v1507, %v1506
    %v1509 = vmul.f32 %v1508, %v1507
    %v1510 = vmul.f32 0.5, %v1509
    %v1511 = vsub.f32 1.5, %v1510
    %v1512 = vmul.f32 %v1507, %v1511
    %vm1513 = vweird.f32 %v1506
    %vm1514 = vweird.f32 %v1507
    %vm1515 = vmor %vm1513, %vm1514
    %v1516 = vsel %vm1515, %v1507, %v1512
    %v1517 = vmul.f32 %v1494, %v1516
    %v1518 = vmul.f32 %v1495, %v1516
    %v1519 = vld [vmem:[%s7] sm:$0x1]
    %v1521 = vperm.slane %v1519, 0
    %v1523 = vmul.f32 %v1517, %v1521
    %v1524 = vmul.f32 %v1518, %v1521
    %v1525 = vld [vmem:[%s8] sm:$0x1]
    %v1527 = vperm.slane %v1525, 0
    %v1529 = vadd.f32 %v1523, %v1527
    %v1530 = vadd.f32 %v1524, %v1527
    %v1531 = vxor.u32 %v1529, 2147483648
    %v1532 = vxor.u32 %v1530, 2147483648
    %v1533 = vmul.f32 %v1531, 1.442695
    %v1534 = vpow.pop %v1533
    %v1535 = vmul.f32 %v1532, 1.442695
    %v1536 = vpow.pop %v1535
    %v1537 = vadd.f32 %v1534, 1.0
    %v1538 = vadd.f32 %v1536, 1.0
    %v1539 = vrcp.pop %v1537
    %v1540 = vmul.f32 %v1537, %v1539
    %v1541 = vsub.f32 1.0, %v1540
    %v1542 = vmul.f32 %v1539, %v1541
    %v1543 = vadd.f32 %v1539, %v1542
    %vm1544 = vweird.f32 %v1537
    %vm1545 = vweird.f32 %v1539
    %vm1546 = vmor %vm1544, %vm1545
    %v1547 = vsel %vm1546, %v1539, %v1543
    %v1548 = vand.u32 2147483647, %v1537
    %vm1549 = vcmp.eq.f32.partialorder %v1548, 8.507059e+37
    %v1550 = vand.u32 %v1537, 2147483648
    %v1551 = vor.u32 1.1754944e-38, %v1550
    %v1552 = vsel %vm1549, %v1551, %v1547
    %v1553 = vmul.f32 1.0, %v1552
    %v1554 = vrcp.pop %v1538
    %v1555 = vmul.f32 %v1538, %v1554
    %v1556 = vsub.f32 1.0, %v1555
    %v1557 = vmul.f32 %v1554, %v1556
    %v1558 = vadd.f32 %v1554, %v1557
    %vm1559 = vweird.f32 %v1538
    %vm1560 = vweird.f32 %v1554
    %vm1561 = vmor %vm1559, %vm1560
    %v1562 = vsel %vm1561, %v1554, %v1558
    %v1563 = vand.u32 2147483647, %v1538
    %vm1564 = vcmp.eq.f32.partialorder %v1563, 8.507059e+37
    %v1565 = vand.u32 %v1538, 2147483648
    %v1566 = vor.u32 1.1754944e-38, %v1565
    %v1567 = vsel %vm1564, %v1566, %v1562
    %v1568 = vmul.f32 1.0, %v1567
    %1569 = vst [vmem:[#allocation2] sm:$0xff] %v1553
    %1570 = vst [vmem:[#allocation2 + $0x8] sm:$0xff] %v1568
    // Predicated region
    $region38: #{_lambda_.3} parent=1 // pred_check
      _
    $region39: #{_lambda_.3} parent=1 // pred_check_branch
      %1572 = sbr.rel (0) target = $region41
    $region40: #{_lambda_.3} parent=1 // pred_region
      %1574 = vsyncadd [#allocation3], 0
      %s1575 = sshll.u32 [#allocation2], 4
      %s1576 = int_to_ptr.vmem [resolvable:$true] %s1575
      %s1577 = sshll.u32 %s9, 4
      %s1578 = int_to_ptr.hbm [resolvable:$true] %s1577
      %1583 = dma.vmem_to_hbm [thread:$0]  %s1576, 256, %s1578, [#allocation3], 128, 128, 8
    $region41: #{_lambda_.3} parent=1 // pred_fallthru
      _
    // Predicated region
    $region42: #{_lambda_.3} parent=1 // pred_check
      _
    $region43: #{_lambda_.3} parent=1 // pred_check_branch
      %1585 = sbr.rel (0) target = $region45
    $region44: #{_lambda_.3} parent=1 // pred_region
      %1587 = dma.done [#allocation3], 256
    $region45: #{_lambda_.3} parent=1 // pred_fallthru
      _
    %1588 = vsyncpa [#allocation3], 1

// kernel: _lambda_.2
$region0: #{_lambda_.2}
  #allocation0 [shape = 'u32[]', space=smem, size = 0x4, offset = 0x4, fixed_abs, tag = 'smem constant byte address 0x4 - core index']
  #allocation1 [shape = 'u32[72,128]{1,0:T(1,128)}', space=vmem, size = 0x9000, scoped, tag = 'internal scratch']
  #allocation2 [shape = 'f32[8,1,1]{2,1,0:T(1,128)}', space=vmem, size = 0x1000, scoped, tag = 'scratch operand']
  #allocation3 [shape = 'f32[8,1,1]{2,1,0:T(1,128)}', space=vmem, size = 0x1000, scoped, tag = 'scratch operand']
  #allocation4 [shape = 'f32[8,1,1024]{2,1,0:T(1,128)}', space=vmem, size = 0x8000, scoped, tag = 'scratch operand']
  %s0 = inlined_call_operand.vmem [shape: bf16[8,1,1024], index: 0, kind: input, shape index: {}]
  %s1 = inlined_call_operand.vmem [shape: bf16[16,32,1024], index: 1, kind: input, shape index: {}]
  %s2 = inlined_call_operand.vmem [shape: f32[16,1,1024], index: 2, kind: output, shape index: {}]
  %s3 = sld [smem:[#allocation0]]
  $region72: #{_lambda_.2} parent=0
    _
  %s5 = ssub.s32 1, %s3
  %s6 = scalar_select 0, %s5, %s3
  $region1: #{_lambda_.2} parent=0
    #allocation5 [shape = 'u8[524288]{0}', space=vmem, size = 0x80000, scoped, tag = 'input window, operand 1']
    loop: start=0, step=1, limit=6
    $region2: #{_lambda_.2} parent=1 // loop_pre_header
      _
    $region3: #{_lambda_.2} parent=1 // loop_header
      %s8 = sphi 0, %s12
      %p9 = scmp.ge.s32.totalorder %s8, 6
      %s15 = sphi 0, %s27
      %s16 = sphi 0, %s23
      %s17 = sphi 0, %s15
      %s18 = sphi 0, %s16
      %s19 = sphi 0, %s17
      %s20 = sphi 0, %s18
      %s28 = sphi 0, %s28
      %s30 = sphi 0, %s28
      %s31 = sphi 0, %s30
      %s45 = sphi 0, %s31
      %s53 = sphi 0, %s55
      %s56 = sphi 0, %s53
      %s57 = sphi 0, %s56
      %s73 = sphi 0, %s57
      %s79 = sphi 0, %s81
      %s82 = sphi 0, %s79
      %s83 = sphi 0, %s82
      %s99 = sphi 0, %s83
    $region4: #{_lambda_.2} parent=1 // loop_header_branch
      %11 = sbr.rel (%p9) target = $region8
    $region5: #{_lambda_.2} parent=1 // loop_body
      %s13 = ssub.s32 %s8, 1
      %s14 = ssub.s32 %s8, 2
      %s21 = sadd.s32 1, %s16
      %p22 = scmp.ge.s32.totalorder %s21, 2
      %s23 = scalar_select %p22, 0, %s21
      %s24 = sadd.s32 1, %s15
      %s25 = scalar_select %p22, %s24, %s15
      %p26 = scmp.ge.s32.totalorder %s25, 2
      %s27 = scalar_select %p26, 0, %s25
      %s29 = sadd.s32 %s28, 1
      %p32 = scmp.eq.s32.totalorder %s8, 3
      %p33 = scmp.ne.s32.totalorder %s28, %s30
      %p34 = scmp.eq.s32.totalorder %s8, 0
      %p35 = por %p33, %p34
      %p36 = scmp.ne.s32.totalorder %s28, %s30
      %p37 = scmp.eq.s32.totalorder %s13, 3
      %p38 = por %p36, %p37
      %p39 = scmp.ne.s32.totalorder %s30, %s31
      %p40 = scmp.eq.s32.totalorder %s13, 0
      %p41 = por %p39, %p40
      %p42 = scmp.ne.s32.totalorder %s30, %s31
      %p43 = scmp.eq.s32.totalorder %s14, 3
      %p44 = por %p42, %p43
      %p46 = scmp.ne.s32.totalorder %s31, %s45
      %p47 = scmp.eq.s32.totalorder %s14, 0
      %p48 = por %p46, %p47
      %s49 = ssub.s32 %s15, %s27
      %s50 = ssub.s32 %s16, %s23
      %s51 = sor.u32 %s49, %s50
      %p52 = scmp.eq.s32.totalorder %s51, 0
      %s54 = sadd.s32 %s53, 1
      %s55 = scalar_select %p52, %s53, %s54
      %p58 = pneg %p52
      %p59 = scmp.eq.s32.totalorder %s8, 3
      %p60 = por %p58, %p59
      %p61 = scmp.ne.s32.totalorder %s53, %s56
      %p62 = scmp.eq.s32.totalorder %s8, 0
      %p63 = por %p61, %p62
      %p64 = scmp.ne.s32.totalorder %s53, %s56
      %p65 = scmp.eq.s32.totalorder %s13, 3
      %p66 = por %p64, %p65
      %p67 = scmp.ne.s32.totalorder %s56, %s57
      %p68 = scmp.eq.s32.totalorder %s13, 0
      %p69 = por %p67, %p68
      %p70 = scmp.ne.s32.totalorder %s56, %s57
      %p71 = scmp.eq.s32.totalorder %s14, 3
      %p72 = por %p70, %p71
      %p74 = scmp.ne.s32.totalorder %s57, %s73
      %p75 = scmp.eq.s32.totalorder %s14, 0
      %p76 = por %p74, %p75
      %s77 = ssub.s32 %s15, %s27
      %p78 = scmp.eq.s32.totalorder %s77, 0
      %s80 = sadd.s32 %s79, 1
      %s81 = scalar_select %p78, %s79, %s80
      %p84 = pneg %p78
      %p85 = scmp.eq.s32.totalorder %s8, 3
      %p86 = por %p84, %p85
      %p87 = scmp.ne.s32.totalorder %s79, %s82
      %p88 = scmp.eq.s32.totalorder %s8, 0
      %p89 = por %p87, %p88
      %p90 = scmp.ne.s32.totalorder %s79, %s82
      %p91 = scmp.eq.s32.totalorder %s13, 3
      %p92 = por %p90, %p91
      %p93 = scmp.ne.s32.totalorder %s82, %s83
      %p94 = scmp.eq.s32.totalorder %s13, 0
      %p95 = por %p93, %p94
      %p96 = scmp.ne.s32.totalorder %s82, %s83
      %p97 = scmp.eq.s32.totalorder %s14, 3
      %p98 = por %p96, %p97
      %p100 = scmp.ne.s32.totalorder %s83, %s99
      %p101 = scmp.eq.s32.totalorder %s14, 0
      %p102 = por %p100, %p101
      %p103 = scmp.le.s32.totalorder 1, %s8
      %p104 = scmp.lt.s32.totalorder %s8, 5
      %p105 = pnand %p103, %p104
      %p106 = pneg %p105
      // Predicated region
      $region9: #{_lambda_.2} parent=5 // pred_check
        _
      $region10: #{_lambda_.2} parent=5 // pred_check_branch
        %108 = sbr.rel (%p105) target = $region12
      $region11: #{_lambda_.2} parent=5 // pred_region
        %s109 = ssub.s32 %s8, 1
        // Predicated region
        $region13: #{_lambda_.2} parent=11 // pred_check
          %p110 = pneg %p41
        $region14: #{_lambda_.2} parent=11 // pred_check_branch
          %112 = sbr.rel (%p110) target = $region16
        $region15: #{_lambda_.2} parent=11 // pred_region
          _
        $region16: #{_lambda_.2} parent=11 // pred_fallthru
          _
      $region12: #{_lambda_.2} parent=5 // pred_fallthru
        _
      %p113 = scmp.lt.s32.totalorder %s8, 4
      // Predicated region
      $region17: #{_lambda_.2} parent=5 // pred_check
        %p114 = pneg %p113
      $region18: #{_lambda_.2} parent=5 // pred_check_branch
        %116 = sbr.rel (%p114) target = $region20
      $region19: #{_lambda_.2} parent=5 // pred_region
        // Predicated region
        $region21: #{_lambda_.2} parent=19 // pred_check
          %p117 = pneg %p63
        $region22: #{_lambda_.2} parent=19 // pred_check_branch
          %119 = sbr.rel (%p117) target = $region24
        $region23: #{_lambda_.2} parent=19 // pred_region
          %s120 = sand.u32 %s53, 1
          %s121 = sand.u32 %s53, 1
          %s122 = smul.addr %s121, 512
          %s123 = scalar_lea.vmem [#allocation5], %s122
          %s124 = smul.u32 8, %s15
          %s125 = smul.u32 2, %s16
          %s126 = smul.addr %s125, 8
          %s127 = smul.addr %s124, 32
          %s128 = sadd.s32 %s126, %s127
          %s129 = smul.addr %s128, 4
          %s130 = scalar_lea.vmem %s1, %s129
          // Predicated region
          $region25: #{_lambda_.2} parent=23 // pred_check
            _
          $region26: #{_lambda_.2} parent=23 // pred_check_branch
            %132 = sbr.rel (0) target = $region28
          $region27: #{_lambda_.2} parent=23 // pred_region
            // Predicated region
            $region29: #{_lambda_.2} parent=27 // pred_check
              _
            $region30: #{_lambda_.2} parent=27 // pred_check_branch
              %134 = sbr.rel (0) target = $region32
            $region31: #{_lambda_.2} parent=27 // pred_region
              loop: start=0, step=1, limit=1
              $region33: #{_lambda_.2} parent=31 // loop_pre_header
                _
              $region34: #{_lambda_.2} parent=31 // loop_header
                %s136 = sphi 0, %s140
                %p137 = scmp.ge.s32.totalorder %s136, 1
                %s141 = sphi %s130, %s130
                %s142 = sphi %s123, %s123
              $region35: #{_lambda_.2} parent=31 // loop_header_branch
                %139 = sbr.rel (%p137) target = $region39
              $region36: #{_lambda_.2} parent=31 // loop_body
                %v143 = vld [vmem:[%s141] sm:$0xff]
                %144 = vst [vmem:[%s142] sm:$0xff] %v143
                %v145 = vld [vmem:[%s141 + $0x8] sm:$0xff]
                %146 = vst [vmem:[%s142 + $0x8] sm:$0xff] %v145
                %v147 = vld [vmem:[%s141 + $0x10] sm:$0xff]
                %148 = vst [vmem:[%s142 + $0x10] sm:$0xff] %v147
                %v149 = vld [vmem:[%s141 + $0x18] sm:$0xff]
                %150 = vst [vmem:[%s142 + $0x18] sm:$0xff] %v149
                %v151 = vld [vmem:[%s141 + $0x20] sm:$0xff]
                %152 = vst [vmem:[%s142 + $0x20] sm:$0xff] %v151
                %v153 = vld [vmem:[%s141 + $0x28] sm:$0xff]
                %154 = vst [vmem:[%s142 + $0x28] sm:$0xff] %v153
                %v155 = vld [vmem:[%s141 + $0x30] sm:$0xff]
                %156 = vst [vmem:[%s142 + $0x30] sm:$0xff] %v155
                %v157 = vld [vmem:[%s141 + $0x38] sm:$0xff]
                %158 = vst [vmem:[%s142 + $0x38] sm:$0xff] %v157
                %v159 = vld [vmem:[%s141 + $0x80] sm:$0xff]
                %160 = vst [vmem:[%s142 + $0x40] sm:$0xff] %v159
                %v161 = vld [vmem:[%s141 + $0x88] sm:$0xff]
                %162 = vst [vmem:[%s142 + $0x48] sm:$0xff] %v161
                %v163 = vld [vmem:[%s141 + $0x90] sm:$0xff]
                %164 = vst [vmem:[%s142 + $0x50] sm:$0xff] %v163
                %v165 = vld [vmem:[%s141 + $0x98] sm:$0xff]
                %166 = vst [vmem:[%s142 + $0x58] sm:$0xff] %v165
                %v167 = vld [vmem:[%s141 + $0xa0] sm:$0xff]
                %168 = vst [vmem:[%s142 + $0x60] sm:$0xff] %v167
                %v169 = vld [vmem:[%s141 + $0xa8] sm:$0xff]
                %170 = vst [vmem:[%s142 + $0x68] sm:$0xff] %v169
                %v171 = vld [vmem:[%s141 + $0xb0] sm:$0xff]
                %172 = vst [vmem:[%s142 + $0x70] sm:$0xff] %v171
                %v173 = vld [vmem:[%s141 + $0xb8] sm:$0xff]
                %174 = vst [vmem:[%s142 + $0x78] sm:$0xff] %v173
                %v175 = vld [vmem:[%s141 + $0x100] sm:$0xff]
                %176 = vst [vmem:[%s142 + $0x80] sm:$0xff] %v175
                %v177 = vld [vmem:[%s141 + $0x108] sm:$0xff]
                %178 = vst [vmem:[%s142 + $0x88] sm:$0xff] %v177
                %v179 = vld [vmem:[%s141 + $0x110] sm:$0xff]
                %180 = vst [vmem:[%s142 + $0x90] sm:$0xff] %v179
                %v181 = vld [vmem:[%s141 + $0x118] sm:$0xff]
                %182 = vst [vmem:[%s142 + $0x98] sm:$0xff] %v181
                %v183 = vld [vmem:[%s141 + $0x120] sm:$0xff]
                %184 = vst [vmem:[%s142 + $0xa0] sm:$0xff] %v183
                %v185 = vld [vmem:[%s141 + $0x128] sm:$0xff]
                %186 = vst [vmem:[%s142 + $0xa8] sm:$0xff] %v185
                %v187 = vld [vmem:[%s141 + $0x130] sm:$0xff]
                %188 = vst [vmem:[%s142 + $0xb0] sm:$0xff] %v187
                %v189 = vld [vmem:[%s141 + $0x138] sm:$0xff]
                %190 = vst [vmem:[%s142 + $0xb8] sm:$0xff] %v189
                %v191 = vld [vmem:[%s141 + $0x180] sm:$0xff]
                %192 = vst [vmem:[%s142 + $0xc0] sm:$0xff] %v191
                %v193 = vld [vmem:[%s141 + $0x188] sm:$0xff]
                %194 = vst [vmem:[%s142 + $0xc8] sm:$0xff] %v193
                %v195 = vld [vmem:[%s141 + $0x190] sm:$0xff]
                %196 = vst [vmem:[%s142 + $0xd0] sm:$0xff] %v195
                %v197 = vld [vmem:[%s141 + $0x198] sm:$0xff]
                %198 = vst [vmem:[%s142 + $0xd8] sm:$0xff] %v197
                %v199 = vld [vmem:[%s141 + $0x1a0] sm:$0xff]
                %200 = vst [vmem:[%s142 + $0xe0] sm:$0xff] %v199
                %v201 = vld [vmem:[%s141 + $0x1a8] sm:$0xff]
                %202 = vst [vmem:[%s142 + $0xe8] sm:$0xff] %v201
                %v203 = vld [vmem:[%s141 + $0x1b0] sm:$0xff]
                %204 = vst [vmem:[%s142 + $0xf0] sm:$0xff] %v203
                %v205 = vld [vmem:[%s141 + $0x1b8] sm:$0xff]
                %206 = vst [vmem:[%s142 + $0xf8] sm:$0xff] %v205
                %v207 = vld [vmem:[%s141 + $0x200] sm:$0xff]
                %208 = vst [vmem:[%s142 + $0x100] sm:$0xff] %v207
                %v209 = vld [vmem:[%s141 + $0x208] sm:$0xff]
                %210 = vst [vmem:[%s142 + $0x108] sm:$0xff] %v209
                %v211 = vld [vmem:[%s141 + $0x210] sm:$0xff]
                %212 = vst [vmem:[%s142 + $0x110] sm:$0xff] %v211
                %v213 = vld [vmem:[%s141 + $0x218] sm:$0xff]
                %214 = vst [vmem:[%s142 + $0x118] sm:$0xff] %v213
                %v215 = vld [vmem:[%s141 + $0x220] sm:$0xff]
                %216 = vst [vmem:[%s142 + $0x120] sm:$0xff] %v215
                %v217 = vld [vmem:[%s141 + $0x228] sm:$0xff]
                %218 = vst [vmem:[%s142 + $0x128] sm:$0xff] %v217
                %v219 = vld [vmem:[%s141 + $0x230] sm:$0xff]
                %220 = vst [vmem:[%s142 + $0x130] sm:$0xff] %v219
                %v221 = vld [vmem:[%s141 + $0x238] sm:$0xff]
                %222 = vst [vmem:[%s142 + $0x138] sm:$0xff] %v221
                %v223 = vld [vmem:[%s141 + $0x280] sm:$0xff]
                %224 = vst [vmem:[%s142 + $0x140] sm:$0xff] %v223
                %v225 = vld [vmem:[%s141 + $0x288] sm:$0xff]
                %226 = vst [vmem:[%s142 + $0x148] sm:$0xff] %v225
                %v227 = vld [vmem:[%s141 + $0x290] sm:$0xff]
                %228 = vst [vmem:[%s142 + $0x150] sm:$0xff] %v227
                %v229 = vld [vmem:[%s141 + $0x298] sm:$0xff]
                %230 = vst [vmem:[%s142 + $0x158] sm:$0xff] %v229
                %v231 = vld [vmem:[%s141 + $0x2a0] sm:$0xff]
                %232 = vst [vmem:[%s142 + $0x160] sm:$0xff] %v231
                %v233 = vld [vmem:[%s141 + $0x2a8] sm:$0xff]
                %234 = vst [vmem:[%s142 + $0x168] sm:$0xff] %v233
                %v235 = vld [vmem:[%s141 + $0x2b0] sm:$0xff]
                %236 = vst [vmem:[%s142 + $0x170] sm:$0xff] %v235
                %v237 = vld [vmem:[%s141 + $0x2b8] sm:$0xff]
                %238 = vst [vmem:[%s142 + $0x178] sm:$0xff] %v237
                %v239 = vld [vmem:[%s141 + $0x300] sm:$0xff]
                %240 = vst [vmem:[%s142 + $0x180] sm:$0xff] %v239
                %v241 = vld [vmem:[%s141 + $0x308] sm:$0xff]
                %242 = vst [vmem:[%s142 + $0x188] sm:$0xff] %v241
                %v243 = vld [vmem:[%s141 + $0x310] sm:$0xff]
                %244 = vst [vmem:[%s142 + $0x190] sm:$0xff] %v243
                %v245 = vld [vmem:[%s141 + $0x318] sm:$0xff]
                %246 = vst [vmem:[%s142 + $0x198] sm:$0xff] %v245
                %v247 = vld [vmem:[%s141 + $0x320] sm:$0xff]
                %248 = vst [vmem:[%s142 + $0x1a0] sm:$0xff] %v247
                %v249 = vld [vmem:[%s141 + $0x328] sm:$0xff]
                %250 = vst [vmem:[%s142 + $0x1a8] sm:$0xff] %v249
                %v251 = vld [vmem:[%s141 + $0x330] sm:$0xff]
                %252 = vst [vmem:[%s142 + $0x1b0] sm:$0xff] %v251
                %v253 = vld [vmem:[%s141 + $0x338] sm:$0xff]
                %254 = vst [vmem:[%s142 + $0x1b8] sm:$0xff] %v253
                %v255 = vld [vmem:[%s141 + $0x380] sm:$0xff]
                %256 = vst [vmem:[%s142 + $0x1c0] sm:$0xff] %v255
                %v257 = vld [vmem:[%s141 + $0x388] sm:$0xff]
                %258 = vst [vmem:[%s142 + $0x1c8] sm:$0xff] %v257
                %v259 = vld [vmem:[%s141 + $0x390] sm:$0xff]
                %260 = vst [vmem:[%s142 + $0x1d0] sm:$0xff] %v259
                %v261 = vld [vmem:[%s141 + $0x398] sm:$0xff]
                %262 = vst [vmem:[%s142 + $0x1d8] sm:$0xff] %v261
                %v263 = vld [vmem:[%s141 + $0x3a0] sm:$0xff]
                %264 = vst [vmem:[%s142 + $0x1e0] sm:$0xff] %v263
                %v265 = vld [vmem:[%s141 + $0x3a8] sm:$0xff]
                %266 = vst [vmem:[%s142 + $0x1e8] sm:$0xff] %v265
                %v267 = vld [vmem:[%s141 + $0x3b0] sm:$0xff]
                %268 = vst [vmem:[%s142 + $0x1f0] sm:$0xff] %v267
                %v269 = vld [vmem:[%s141 + $0x3b8] sm:$0xff]
                %270 = vst [vmem:[%s142 + $0x1f8] sm:$0xff] %v269
              $region37: #{_lambda_.2} parent=31 // loop_footer
                %s140 = sadd.s32 1, %s136
              $region38: #{_lambda_.2} parent=31 // loop_footer_branch
                %135 = sbr.rel target = $region34
              $region39: #{_lambda_.2} parent=31 // loop_exit
                _
            $region32: #{_lambda_.2} parent=27 // pred_fallthru
              _
            // Predicated region
            $region40: #{_lambda_.2} parent=27 // pred_check
              _
            $region41: #{_lambda_.2} parent=27 // pred_check_branch
              %272 = sbr.rel target = $region43
            $region42: #{_lambda_.2} parent=27 // pred_region
              _
            $region43: #{_lambda_.2} parent=27 // pred_fallthru
              _
          $region28: #{_lambda_.2} parent=23 // pred_fallthru
            _
          %273 = vnop
        $region24: #{_lambda_.2} parent=19 // pred_fallthru
          _
      $region20: #{_lambda_.2} parent=5 // pred_fallthru
        _
      %p274 = scmp.le.s32.totalorder 1, %s8
      %p275 = scmp.lt.s32.totalorder %s8, 5
      %p276 = pnand %p274, %p275
      %p277 = pneg %p276
      // Predicated region
      $region44: #{_lambda_.2} parent=5 // pred_check
        _
      $region45: #{_lambda_.2} parent=5 // pred_check_branch
        %279 = sbr.rel (%p276) target = $region47
      $region46: #{_lambda_.2} parent=5 // pred_region
        %s280 = ssub.s32 %s8, 1
        %s281 = sand.u32 %s56, 1
        %s282 = sand.u32 %s56, 1
        %s283 = smul.addr %s282, 512
        %s284 = scalar_lea.vmem [#allocation5], %s283
        // Predicated region
        $region48: #{_lambda_.2} parent=46 // pred_check
          %p285 = pneg %p69
        $region49: #{_lambda_.2} parent=46 // pred_check_branch
          %287 = sbr.rel (%p285) target = $region51
        $region50: #{_lambda_.2} parent=46 // pred_region
          _
        $region51: #{_lambda_.2} parent=46 // pred_fallthru
          _
        %p288 = pneg %p41
        %p289 = pneg %p38
        %s290 = sand.u32 %s56, 1
        %s291 = sand.u32 %s56, 1
        %s292 = smul.addr %s291, 512
        %s293 = scalar_lea.vmem [#allocation5], %s292
        %p294 = pneg %p69
        %p295 = pneg %p66
        %p296 = pneg %p95
        %p297 = pneg %p92
        %s298 = smul.u32 8, %s17
        %p299 = scmp.lt.s32.totalorder %s298, 15
        %s300 = scalar_select %p299, %s298, 15
        %s301 = smul.addr %s300, 8
        %s302 = scalar_lea.vmem %s2, %s301
        %s303 = smul.u32 8, %s17
        %s304 = smul.u32 2, %s18
        %s305 = smul.u32 8, %s17
        %p306 = scmp.lt.s32.totalorder %s305, 15
        %s307 = scalar_select %p306, %s305, 15
        %s308 = smul.addr %s307, 8
        %s309 = scalar_lea.vmem %s2, %s308
        %s310 = smul.u32 8, %s17
        %p312 = scmp.eq.s32.totalorder %s18, 0
        // Predicated region
        $region52: #{_lambda_.2} parent=46 // pred_check
          %p313 = pneg %p312
        $region53: #{_lambda_.2} parent=46 // pred_check_branch
          %315 = sbr.rel (%p313) target = $region55
        $region54: #{_lambda_.2} parent=46 // pred_region
          %vm316 = vcmask 0
          %317 = vst.msk [vmem:[#allocation2] sm:$0x1] %vm316, -inf
          %318 = vst.msk [vmem:[#allocation2 + $0x1] sm:$0x1] %vm316, -inf
          %319 = vst.msk [vmem:[#allocation2 + $0x2] sm:$0x1] %vm316, -inf
          %320 = vst.msk [vmem:[#allocation2 + $0x3] sm:$0x1] %vm316, -inf
          %321 = vst.msk [vmem:[#allocation2 + $0x4] sm:$0x1] %vm316, -inf
          %322 = vst.msk [vmem:[#allocation2 + $0x5] sm:$0x1] %vm316, -inf
          %323 = vst.msk [vmem:[#allocation2 + $0x6] sm:$0x1] %vm316, -inf
          %324 = vst.msk [vmem:[#allocation2 + $0x7] sm:$0x1] %vm316, -inf
          %325 = vst.msk [vmem:[#allocation3] sm:$0x1] %vm316, 0.0
          %326 = vst.msk [vmem:[#allocation3 + $0x1] sm:$0x1] %vm316, 0.0
          %327 = vst.msk [vmem:[#allocation3 + $0x2] sm:$0x1] %vm316, 0.0
          %328 = vst.msk [vmem:[#allocation3 + $0x3] sm:$0x1] %vm316, 0.0
          %329 = vst.msk [vmem:[#allocation3 + $0x4] sm:$0x1] %vm316, 0.0
          %330 = vst.msk [vmem:[#allocation3 + $0x5] sm:$0x1] %vm316, 0.0
          %331 = vst.msk [vmem:[#allocation3 + $0x6] sm:$0x1] %vm316, 0.0
          %332 = vst.msk [vmem:[#allocation3 + $0x7] sm:$0x1] %vm316, 0.0
          %333 = vst [vmem:[#allocation4] sm:$0xff] 0.0
          %334 = vst [vmem:[#allocation4 + $0x8] sm:$0xff] 0.0
          %335 = vst [vmem:[#allocation4 + $0x10] sm:$0xff] 0.0
          %336 = vst [vmem:[#allocation4 + $0x18] sm:$0xff] 0.0
          %337 = vst [vmem:[#allocation4 + $0x20] sm:$0xff] 0.0
          %338 = vst [vmem:[#allocation4 + $0x28] sm:$0xff] 0.0
          %339 = vst [vmem:[#allocation4 + $0x30] sm:$0xff] 0.0
          %340 = vst [vmem:[#allocation4 + $0x38] sm:$0xff] 0.0
        $region55: #{_lambda_.2} parent=46 // pred_fallthru
          _
        %v341 = vld [vmem:[%s284] sm:$0xff]
        %v342 = vld [vmem:[%s284 + $0x8] sm:$0xff]
        %v343 = vld [vmem:[%s284 + $0x10] sm:$0xff]
        %v344 = vld [vmem:[%s284 + $0x18] sm:$0xff]
        %v345 = vld [vmem:[%s284 + $0x20] sm:$0xff]
        %v346 = vld [vmem:[%s284 + $0x28] sm:$0xff]
        %v347 = vld [vmem:[%s284 + $0x30] sm:$0xff]
        %v348 = vld [vmem:[%s284 + $0x38] sm:$0xff]
        %v349 = vld [vmem:[%s284 + $0x40] sm:$0xff]
        %v350 = vld [vmem:[%s284 + $0x48] sm:$0xff]
        %v351 = vld [vmem:[%s284 + $0x50] sm:$0xff]
        %v352 = vld [vmem:[%s284 + $0x58] sm:$0xff]
        %v353 = vld [vmem:[%s284 + $0x60] sm:$0xff]
        %v354 = vld [vmem:[%s284 + $0x68] sm:$0xff]
        %v355 = vld [vmem:[%s284 + $0x70] sm:$0xff]
        %v356 = vld [vmem:[%s284 + $0x78] sm:$0xff]
        %v357 = vld [vmem:[%s284 + $0x80] sm:$0xff]
        %v358 = vld [vmem:[%s284 + $0x88] sm:$0xff]
        %v359 = vld [vmem:[%s284 + $0x90] sm:$0xff]
        %v360 = vld [vmem:[%s284 + $0x98] sm:$0xff]
        %v361 = vld [vmem:[%s284 + $0xa0] sm:$0xff]
        %v362 = vld [vmem:[%s284 + $0xa8] sm:$0xff]
        %v363 = vld [vmem:[%s284 + $0xb0] sm:$0xff]
        %v364 = vld [vmem:[%s284 + $0xb8] sm:$0xff]
        %v365 = vld [vmem:[%s284 + $0xc0] sm:$0xff]
        %v366 = vld [vmem:[%s284 + $0xc8] sm:$0xff]
        %v367 = vld [vmem:[%s284 + $0xd0] sm:$0xff]
        %v368 = vld [vmem:[%s284 + $0xd8] sm:$0xff]
        %v369 = vld [vmem:[%s284 + $0xe0] sm:$0xff]
        %v370 = vld [vmem:[%s284 + $0xe8] sm:$0xff]
        %v371 = vld [vmem:[%s284 + $0xf0] sm:$0xff]
        %v372 = vld [vmem:[%s284 + $0xf8] sm:$0xff]
        %v373 = vld [vmem:[%s284 + $0x100] sm:$0xff]
        %v374 = vld [vmem:[%s284 + $0x108] sm:$0xff]
        %v375 = vld [vmem:[%s284 + $0x110] sm:$0xff]
        %v376 = vld [vmem:[%s284 + $0x118] sm:$0xff]
        %v377 = vld [vmem:[%s284 + $0x120] sm:$0xff]
        %v378 = vld [vmem:[%s284 + $0x128] sm:$0xff]
        %v379 = vld [vmem:[%s284 + $0x130] sm:$0xff]
        %v380 = vld [vmem:[%s284 + $0x138] sm:$0xff]
        %v381 = vld [vmem:[%s284 + $0x140] sm:$0xff]
        %v382 = vld [vmem:[%s284 + $0x148] sm:$0xff]
        %v383 = vld [vmem:[%s284 + $0x150] sm:$0xff]
        %v384 = vld [vmem:[%s284 + $0x158] sm:$0xff]
        %v385 = vld [vmem:[%s284 + $0x160] sm:$0xff]
        %v386 = vld [vmem:[%s284 + $0x168] sm:$0xff]
        %v387 = vld [vmem:[%s284 + $0x170] sm:$0xff]
        %v388 = vld [vmem:[%s284 + $0x178] sm:$0xff]
        %v389 = vld [vmem:[%s284 + $0x180] sm:$0xff]
        %v390 = vld [vmem:[%s284 + $0x188] sm:$0xff]
        %v391 = vld [vmem:[%s284 + $0x190] sm:$0xff]
        %v392 = vld [vmem:[%s284 + $0x198] sm:$0xff]
        %v393 = vld [vmem:[%s284 + $0x1a0] sm:$0xff]
        %v394 = vld [vmem:[%s284 + $0x1a8] sm:$0xff]
        %v395 = vld [vmem:[%s284 + $0x1b0] sm:$0xff]
        %v396 = vld [vmem:[%s284 + $0x1b8] sm:$0xff]
        %v397 = vld [vmem:[%s284 + $0x1c0] sm:$0xff]
        %v398 = vld [vmem:[%s284 + $0x1c8] sm:$0xff]
        %v399 = vld [vmem:[%s284 + $0x1d0] sm:$0xff]
        %v400 = vld [vmem:[%s284 + $0x1d8] sm:$0xff]
        %v401 = vld [vmem:[%s284 + $0x1e0] sm:$0xff]
        %v402 = vld [vmem:[%s284 + $0x1e8] sm:$0xff]
        %v403 = vld [vmem:[%s284 + $0x1f0] sm:$0xff]
        %v404 = vld [vmem:[%s284 + $0x1f8] sm:$0xff]
        %v405 = vld [vmem:[%s0] sm:$0xff]
        %v406 = vld [vmem:[%s0 + $0x8] sm:$0xff]
        %v407 = vld [vmem:[%s0 + $0x10] sm:$0xff]
        %v408 = vld [vmem:[%s0 + $0x18] sm:$0xff]
        %v409 = vld [vmem:[%s0 + $0x20] sm:$0xff]
        %v410 = vld [vmem:[%s0 + $0x28] sm:$0xff]
        %v411 = vld [vmem:[%s0 + $0x30] sm:$0xff]
        %v412 = vld [vmem:[%s0 + $0x38] sm:$0xff]
        %414 = vst [vmem:[#allocation1] ss:$9 sm:$0xff] %v405
        %v415 = vld [vmem:[#allocation1] sm:$0xff]
        %v416 = vld [vmem:[#allocation1 + $0x9] sm:$0xff]
        %v417 = vld [vmem:[#allocation1 + $0x12] sm:$0xff]
        %v418 = vld [vmem:[#allocation1 + $0x1b] sm:$0xff]
        %v419 = vld [vmem:[#allocation1 + $0x24] sm:$0xff]
        %v420 = vld [vmem:[#allocation1 + $0x2d] sm:$0xff]
        %v421 = vld [vmem:[#allocation1 + $0x36] sm:$0xff]
        %v422 = vld [vmem:[#allocation1 + $0x3f] sm:$0xff]
        %v439 = vunpack.c.l.b16 %v341
        %v440 = vunpack.c.h.b16 %v341
        %v441 = vunpack.c.l.b16 %v342
        %v442 = vunpack.c.h.b16 %v342
        %v443 = vunpack.c.l.b16 %v343
        %v444 = vunpack.c.h.b16 %v343
        %v445 = vunpack.c.l.b16 %v344
        %v446 = vunpack.c.h.b16 %v344
        %v447 = vunpack.c.l.b16 %v345
        %v448 = vunpack.c.h.b16 %v345
        %v449 = vunpack.c.l.b16 %v346
        %v450 = vunpack.c.h.b16 %v346
        %v451 = vunpack.c.l.b16 %v347
        %v452 = vunpack.c.h.b16 %v347
        %v453 = vunpack.c.l.b16 %v348
        %v454 = vunpack.c.h.b16 %v348
        %v455 = vpack.c.b16 %v447, %v439
        %v456 = vpack.c.b16 %v448, %v440
        %v457 = vpack.c.b16 %v449, %v441
        %v458 = vpack.c.b16 %v450, %v442
        %v459 = vpack.c.b16 %v451, %v443
        %v460 = vpack.c.b16 %v452, %v444
        %v461 = vpack.c.b16 %v453, %v445
        %v462 = vpack.c.b16 %v454, %v446
        %471 = vmatpush.bf16.xpose.msra.mxu0 0
        %472 = vmatpush.bf16.xpose.msra.mxu0 0
        %473 = vmatpush.bf16.xpose.msra.mxu0 0
        %474 = vmatpush.bf16.xpose.msra.mxu0 0
        %475 = vmatpush.bf16.xpose.msra.mxu0 0
        %476 = vmatpush.bf16.xpose.msra.mxu0 0
        %477 = vmatpush.bf16.xpose.msra.mxu0 0
        %478 = vmatpush.bf16.xpose.msra.mxu0 %v455
        %479 = vmatmul.bf16.gmra.mxu0 %v415
        %v480 = vpop.f32.mrf.mxu0
        %v481 = vadd.f32 0.0, %v480
        %v482 = vpop.f32.mrf.mxu0
        %483 = vdwg.mxu0
        %484 = vmatpush.bf16.xpose.msra.mxu0 0
        %485 = vmatpush.bf16.xpose.msra.mxu0 0
        %486 = vmatpush.bf16.xpose.msra.mxu0 0
        %487 = vmatpush.bf16.xpose.msra.mxu0 0
        %488 = vmatpush.bf16.xpose.msra.mxu0 0
        %489 = vmatpush.bf16.xpose.msra.mxu0 0
        %490 = vmatpush.bf16.xpose.msra.mxu0 0
        %491 = vmatpush.bf16.xpose.msra.mxu0 %v456
        %492 = vmatmul.bf16.gmra.mxu0 %v416
        %v493 = vpop.f32.mrf.mxu0
        %v494 = vadd.f32 %v481, %v493
        %v495 = vpop.f32.mrf.mxu0
        %496 = vdwg.mxu0
        %497 = vmatpush.bf16.xpose.msra.mxu0 0
        %498 = vmatpush.bf16.xpose.msra.mxu0 0
        %499 = vmatpush.bf16.xpose.msra.mxu0 0
        %500 = vmatpush.bf16.xpose.msra.mxu0 0
        %501 = vmatpush.bf16.xpose.msra.mxu0 0
        %502 = vmatpush.bf16.xpose.msra.mxu0 0
        %503 = vmatpush.bf16.xpose.msra.mxu0 0
        %504 = vmatpush.bf16.xpose.msra.mxu0 %v457
        %505 = vmatmul.bf16.gmra.mxu0 %v417
        %v506 = vpop.f32.mrf.mxu0
        %v507 = vadd.f32 %v494, %v506
        %v508 = vpop.f32.mrf.mxu0
        %509 = vdwg.mxu0
        %510 = vmatpush.bf16.xpose.msra.mxu0 0
        %511 = vmatpush.bf16.xpose.msra.mxu0 0
        %512 = vmatpush.bf16.xpose.msra.mxu0 0
        %513 = vmatpush.bf16.xpose.msra.mxu0 0
        %514 = vmatpush.bf16.xpose.msra.mxu0 0
        %515 = vmatpush.bf16.xpose.msra.mxu0 0
        %516 = vmatpush.bf16.xpose.msra.mxu0 0
        %517 = vmatpush.bf16.xpose.msra.mxu0 %v458
        %518 = vmatmul.bf16.gmra.mxu0 %v418
        %v519 = vpop.f32.mrf.mxu0
        %v520 = vadd.f32 %v507, %v519
        %v521 = vpop.f32.mrf.mxu0
        %522 = vdwg.mxu0
        %523 = vmatpush.bf16.xpose.msra.mxu0 0
        %524 = vmatpush.bf16.xpose.msra.mxu0 0
        %525 = vmatpush.bf16.xpose.msra.mxu0 0
        %526 = vmatpush.bf16.xpose.msra.mxu0 0
        %527 = vmatpush.bf16.xpose.msra.mxu0 0
        %528 = vmatpush.bf16.xpose.msra.mxu0 0
        %529 = vmatpush.bf16.xpose.msra.mxu0 0
        %530 = vmatpush.bf16.xpose.msra.mxu0 %v459
        %531 = vmatmul.bf16.gmra.mxu0 %v419
        %v532 = vpop.f32.mrf.mxu0
        %v533 = vadd.f32 %v520, %v532
        %v534 = vpop.f32.mrf.mxu0
        %535 = vdwg.mxu0
        %536 = vmatpush.bf16.xpose.msra.mxu0 0
        %537 = vmatpush.bf16.xpose.msra.mxu0 0
        %538 = vmatpush.bf16.xpose.msra.mxu0 0
        %539 = vmatpush.bf16.xpose.msra.mxu0 0
        %540 = vmatpush.bf16.xpose.msra.mxu0 0
        %541 = vmatpush.bf16.xpose.msra.mxu0 0
        %542 = vmatpush.bf16.xpose.msra.mxu0 0
        %543 = vmatpush.bf16.xpose.msra.mxu0 %v460
        %544 = vmatmul.bf16.gmra.mxu0 %v420
        %v545 = vpop.f32.mrf.mxu0
        %v546 = vadd.f32 %v533, %v545
        %v547 = vpop.f32.mrf.mxu0
        %548 = vdwg.mxu0
        %549 = vmatpush.bf16.xpose.msra.mxu0 0
        %550 = vmatpush.bf16.xpose.msra.mxu0 0
        %551 = vmatpush.bf16.xpose.msra.mxu0 0
        %552 = vmatpush.bf16.xpose.msra.mxu0 0
        %553 = vmatpush.bf16.xpose.msra.mxu0 0
        %554 = vmatpush.bf16.xpose.msra.mxu0 0
        %555 = vmatpush.bf16.xpose.msra.mxu0 0
        %556 = vmatpush.bf16.xpose.msra.mxu0 %v461
        %557 = vmatmul.bf16.gmra.mxu0 %v421
        %v558 = vpop.f32.mrf.mxu0
        %v559 = vadd.f32 %v546, %v558
        %v560 = vpop.f32.mrf.mxu0
        %561 = vdwg.mxu0
        %562 = vmatpush.bf16.xpose.msra.mxu0 0
        %563 = vmatpush.bf16.xpose.msra.mxu0 0
        %564 = vmatpush.bf16.xpose.msra.mxu0 0
        %565 = vmatpush.bf16.xpose.msra.mxu0 0
        %566 = vmatpush.bf16.xpose.msra.mxu0 0
        %567 = vmatpush.bf16.xpose.msra.mxu0 0
        %568 = vmatpush.bf16.xpose.msra.mxu0 0
        %569 = vmatpush.bf16.xpose.msra.mxu0 %v462
        %570 = vmatmul.bf16.gmra.mxu0 %v422
        %v571 = vpop.f32.mrf.mxu0
        %v572 = vadd.f32 %v559, %v571
        %v573 = vpop.f32.mrf.mxu0
        %574 = vdwg.mxu0
        %576 = vst [vmem:[#allocation1] ss:$9 sm:$0xff] %v406
        %v577 = vld [vmem:[#allocation1] sm:$0xff]
        %v578 = vld [vmem:[#allocation1 + $0x9] sm:$0xff]
        %v579 = vld [vmem:[#allocation1 + $0x12] sm:$0xff]
        %v580 = vld [vmem:[#allocation1 + $0x1b] sm:$0xff]
        %v581 = vld [vmem:[#allocation1 + $0x24] sm:$0xff]
        %v582 = vld [vmem:[#allocation1 + $0x2d] sm:$0xff]
        %v583 = vld [vmem:[#allocation1 + $0x36] sm:$0xff]
        %v584 = vld [vmem:[#allocation1 + $0x3f] sm:$0xff]
        %v601 = vunpack.c.l.b16 %v349
        %v602 = vunpack.c.h.b16 %v349
        %v603 = vunpack.c.l.b16 %v350
        %v604 = vunpack.c.h.b16 %v350
        %v605 = vunpack.c.l.b16 %v351
        %v606 = vunpack.c.h.b16 %v351
        %v607 = vunpack.c.l.b16 %v352
        %v608 = vunpack.c.h.b16 %v352
        %v609 = vunpack.c.l.b16 %v353
        %v610 = vunpack.c.h.b16 %v353
        %v611 = vunpack.c.l.b16 %v354
        %v612 = vunpack.c.h.b16 %v354
        %v613 = vunpack.c.l.b16 %v355
        %v614 = vunpack.c.h.b16 %v355
        %v615 = vunpack.c.l.b16 %v356
        %v616 = vunpack.c.h.b16 %v356
        %v617 = vpack.c.b16 %v609, %v601
        %v618 = vpack.c.b16 %v610, %v602
        %v619 = vpack.c.b16 %v611, %v603
        %v620 = vpack.c.b16 %v612, %v604
        %v621 = vpack.c.b16 %v613, %v605
        %v622 = vpack.c.b16 %v614, %v606
        %v623 = vpack.c.b16 %v615, %v607
        %v624 = vpack.c.b16 %v616, %v608
        %633 = vmatpush.bf16.xpose.msra.mxu0 0
        %634 = vmatpush.bf16.xpose.msra.mxu0 0
        %635 = vmatpush.bf16.xpose.msra.mxu0 0
        %636 = vmatpush.bf16.xpose.msra.mxu0 0
        %637 = vmatpush.bf16.xpose.msra.mxu0 0
        %638 = vmatpush.bf16.xpose.msra.mxu0 0
        %639 = vmatpush.bf16.xpose.msra.mxu0 0
        %640 = vmatpush.bf16.xpose.msra.mxu0 %v617
        %641 = vmatmul.bf16.gmra.mxu0 %v577
        %v642 = vpop.f32.mrf.mxu0
        %v643 = vadd.f32 0.0, %v642
        %v644 = vpop.f32.mrf.mxu0
        %645 = vdwg.mxu0
        %646 = vmatpush.bf16.xpose.msra.mxu0 0
        %647 = vmatpush.bf16.xpose.msra.mxu0 0
        %648 = vmatpush.bf16.xpose.msra.mxu0 0
        %649 = vmatpush.bf16.xpose.msra.mxu0 0
        %650 = vmatpush.bf16.xpose.msra.mxu0 0
        %651 = vmatpush.bf16.xpose.msra.mxu0 0
        %652 = vmatpush.bf16.xpose.msra.mxu0 0
        %653 = vmatpush.bf16.xpose.msra.mxu0 %v618
        %654 = vmatmul.bf16.gmra.mxu0 %v578
        %v655 = vpop.f32.mrf.mxu0
        %v656 = vadd.f32 %v643, %v655
        %v657 = vpop.f32.mrf.mxu0
        %658 = vdwg.mxu0
        %659 = vmatpush.bf16.xpose.msra.mxu0 0
        %660 = vmatpush.bf16.xpose.msra.mxu0 0
        %661 = vmatpush.bf16.xpose.msra.mxu0 0
        %662 = vmatpush.bf16.xpose.msra.mxu0 0
        %663 = vmatpush.bf16.xpose.msra.mxu0 0
        %664 = vmatpush.bf16.xpose.msra.mxu0 0
        %665 = vmatpush.bf16.xpose.msra.mxu0 0
        %666 = vmatpush.bf16.xpose.msra.mxu0 %v619
        %667 = vmatmul.bf16.gmra.mxu0 %v579
        %v668 = vpop.f32.mrf.mxu0
        %v669 = vadd.f32 %v656, %v668
        %v670 = vpop.f32.mrf.mxu0
        %671 = vdwg.mxu0
        %672 = vmatpush.bf16.xpose.msra.mxu0 0
        %673 = vmatpush.bf16.xpose.msra.mxu0 0
        %674 = vmatpush.bf16.xpose.msra.mxu0 0
        %675 = vmatpush.bf16.xpose.msra.mxu0 0
        %676 = vmatpush.bf16.xpose.msra.mxu0 0
        %677 = vmatpush.bf16.xpose.msra.mxu0 0
        %678 = vmatpush.bf16.xpose.msra.mxu0 0
        %679 = vmatpush.bf16.xpose.msra.mxu0 %v620
        %680 = vmatmul.bf16.gmra.mxu0 %v580
        %v681 = vpop.f32.mrf.mxu0
        %v682 = vadd.f32 %v669, %v681
        %v683 = vpop.f32.mrf.mxu0
        %684 = vdwg.mxu0
        %685 = vmatpush.bf16.xpose.msra.mxu0 0
        %686 = vmatpush.bf16.xpose.msra.mxu0 0
        %687 = vmatpush.bf16.xpose.msra.mxu0 0
        %688 = vmatpush.bf16.xpose.msra.mxu0 0
        %689 = vmatpush.bf16.xpose.msra.mxu0 0
        %690 = vmatpush.bf16.xpose.msra.mxu0 0
        %691 = vmatpush.bf16.xpose.msra.mxu0 0
        %692 = vmatpush.bf16.xpose.msra.mxu0 %v621
        %693 = vmatmul.bf16.gmra.mxu0 %v581
        %v694 = vpop.f32.mrf.mxu0
        %v695 = vadd.f32 %v682, %v694
        %v696 = vpop.f32.mrf.mxu0
        %697 = vdwg.mxu0
        %698 = vmatpush.bf16.xpose.msra.mxu0 0
        %699 = vmatpush.bf16.xpose.msra.mxu0 0
        %700 = vmatpush.bf16.xpose.msra.mxu0 0
        %701 = vmatpush.bf16.xpose.msra.mxu0 0
        %702 = vmatpush.bf16.xpose.msra.mxu0 0
        %703 = vmatpush.bf16.xpose.msra.mxu0 0
        %704 = vmatpush.bf16.xpose.msra.mxu0 0
        %705 = vmatpush.bf16.xpose.msra.mxu0 %v622
        %706 = vmatmul.bf16.gmra.mxu0 %v582
        %v707 = vpop.f32.mrf.mxu0
        %v708 = vadd.f32 %v695, %v707
        %v709 = vpop.f32.mrf.mxu0
        %710 = vdwg.mxu0
        %711 = vmatpush.bf16.xpose.msra.mxu0 0
        %712 = vmatpush.bf16.xpose.msra.mxu0 0
        %713 = vmatpush.bf16.xpose.msra.mxu0 0
        %714 = vmatpush.bf16.xpose.msra.mxu0 0
        %715 = vmatpush.bf16.xpose.msra.mxu0 0
        %716 = vmatpush.bf16.xpose.msra.mxu0 0
        %717 = vmatpush.bf16.xpose.msra.mxu0 0
        %718 = vmatpush.bf16.xpose.msra.mxu0 %v623
        %719 = vmatmul.bf16.gmra.mxu0 %v583
        %v720 = vpop.f32.mrf.mxu0
        %v721 = vadd.f32 %v708, %v720
        %v722 = vpop.f32.mrf.mxu0
        %723 = vdwg.mxu0
        %724 = vmatpush.bf16.xpose.msra.mxu0 0
        %725 = vmatpush.bf16.xpose.msra.mxu0 0
        %726 = vmatpush.bf16.xpose.msra.mxu0 0
        %727 = vmatpush.bf16.xpose.msra.mxu0 0
        %728 = vmatpush.bf16.xpose.msra.mxu0 0
        %729 = vmatpush.bf16.xpose.msra.mxu0 0
        %730 = vmatpush.bf16.xpose.msra.mxu0 0
        %731 = vmatpush.bf16.xpose.msra.mxu0 %v624
        %732 = vmatmul.bf16.gmra.mxu0 %v584
        %v733 = vpop.f32.mrf.mxu0
        %v734 = vadd.f32 %v721, %v733
        %v735 = vpop.f32.mrf.mxu0
        %736 = vdwg.mxu0
        %738 = vst [vmem:[#allocation1] ss:$9 sm:$0xff] %v407
        %v739 = vld [vmem:[#allocation1] sm:$0xff]
        %v740 = vld [vmem:[#allocation1 + $0x9] sm:$0xff]
        %v741 = vld [vmem:[#allocation1 + $0x12] sm:$0xff]
        %v742 = vld [vmem:[#allocation1 + $0x1b] sm:$0xff]
        %v743 = vld [vmem:[#allocation1 + $0x24] sm:$0xff]
        %v744 = vld [vmem:[#allocation1 + $0x2d] sm:$0xff]
        %v745 = vld [vmem:[#allocation1 + $0x36] sm:$0xff]
        %v746 = vld [vmem:[#allocation1 + $0x3f] sm:$0xff]
        %v763 = vunpack.c.l.b16 %v357
        %v764 = vunpack.c.h.b16 %v357
        %v765 = vunpack.c.l.b16 %v358
        %v766 = vunpack.c.h.b16 %v358
        %v767 = vunpack.c.l.b16 %v359
        %v768 = vunpack.c.h.b16 %v359
        %v769 = vunpack.c.l.b16 %v360
        %v770 = vunpack.c.h.b16 %v360
        %v771 = vunpack.c.l.b16 %v361
        %v772 = vunpack.c.h.b16 %v361
        %v773 = vunpack.c.l.b16 %v362
        %v774 = vunpack.c.h.b16 %v362
        %v775 = vunpack.c.l.b16 %v363
        %v776 = vunpack.c.h.b16 %v363
        %v777 = vunpack.c.l.b16 %v364
        %v778 = vunpack.c.h.b16 %v364
        %v779 = vpack.c.b16 %v771, %v763
        %v780 = vpack.c.b16 %v772, %v764
        %v781 = vpack.c.b16 %v773, %v765
        %v782 = vpack.c.b16 %v774, %v766
        %v783 = vpack.c.b16 %v775, %v767
        %v784 = vpack.c.b16 %v776, %v768
        %v785 = vpack.c.b16 %v777, %v769
        %v786 = vpack.c.b16 %v778, %v770
        %795 = vmatpush.bf16.xpose.msra.mxu0 0
        %796 = vmatpush.bf16.xpose.msra.mxu0 0
        %797 = vmatpush.bf16.xpose.msra.mxu0 0
        %798 = vmatpush.bf16.xpose.msra.mxu0 0
        %799 = vmatpush.bf16.xpose.msra.mxu0 0
        %800 = vmatpush.bf16.xpose.msra.mxu0 0
        %801 = vmatpush.bf16.xpose.msra.mxu0 0
        %802 = vmatpush.bf16.xpose.msra.mxu0 %v779
        %803 = vmatmul.bf16.gmra.mxu0 %v739
        %v804 = vpop.f32.mrf.mxu0
        %v805 = vadd.f32 0.0, %v804
        %v806 = vpop.f32.mrf.mxu0
        %807 = vdwg.mxu0
        %808 = vmatpush.bf16.xpose.msra.mxu0 0
        %809 = vmatpush.bf16.xpose.msra.mxu0 0
        %810 = vmatpush.bf16.xpose.msra.mxu0 0
        %811 = vmatpush.bf16.xpose.msra.mxu0 0
        %812 = vmatpush.bf16.xpose.msra.mxu0 0
        %813 = vmatpush.bf16.xpose.msra.mxu0 0
        %814 = vmatpush.bf16.xpose.msra.mxu0 0
        %815 = vmatpush.bf16.xpose.msra.mxu0 %v780
        %816 = vmatmul.bf16.gmra.mxu0 %v740
        %v817 = vpop.f32.mrf.mxu0
        %v818 = vadd.f32 %v805, %v817
        %v819 = vpop.f32.mrf.mxu0
        %820 = vdwg.mxu0
        %821 = vmatpush.bf16.xpose.msra.mxu0 0
        %822 = vmatpush.bf16.xpose.msra.mxu0 0
        %823 = vmatpush.bf16.xpose.msra.mxu0 0
        %824 = vmatpush.bf16.xpose.msra.mxu0 0
        %825 = vmatpush.bf16.xpose.msra.mxu0 0
        %826 = vmatpush.bf16.xpose.msra.mxu0 0
        %827 = vmatpush.bf16.xpose.msra.mxu0 0
        %828 = vmatpush.bf16.xpose.msra.mxu0 %v781
        %829 = vmatmul.bf16.gmra.mxu0 %v741
        %v830 = vpop.f32.mrf.mxu0
        %v831 = vadd.f32 %v818, %v830
        %v832 = vpop.f32.mrf.mxu0
        %833 = vdwg.mxu0
        %834 = vmatpush.bf16.xpose.msra.mxu0 0
        %835 = vmatpush.bf16.xpose.msra.mxu0 0
        %836 = vmatpush.bf16.xpose.msra.mxu0 0
        %837 = vmatpush.bf16.xpose.msra.mxu0 0
        %838 = vmatpush.bf16.xpose.msra.mxu0 0
        %839 = vmatpush.bf16.xpose.msra.mxu0 0
        %840 = vmatpush.bf16.xpose.msra.mxu0 0
        %841 = vmatpush.bf16.xpose.msra.mxu0 %v782
        %842 = vmatmul.bf16.gmra.mxu0 %v742
        %v843 = vpop.f32.mrf.mxu0
        %v844 = vadd.f32 %v831, %v843
        %v845 = vpop.f32.mrf.mxu0
        %846 = vdwg.mxu0
        %847 = vmatpush.bf16.xpose.msra.mxu0 0
        %848 = vmatpush.bf16.xpose.msra.mxu0 0
        %849 = vmatpush.bf16.xpose.msra.mxu0 0
        %850 = vmatpush.bf16.xpose.msra.mxu0 0
        %851 = vmatpush.bf16.xpose.msra.mxu0 0
        %852 = vmatpush.bf16.xpose.msra.mxu0 0
        %853 = vmatpush.bf16.xpose.msra.mxu0 0
        %854 = vmatpush.bf16.xpose.msra.mxu0 %v783
        %855 = vmatmul.bf16.gmra.mxu0 %v743
        %v856 = vpop.f32.mrf.mxu0
        %v857 = vadd.f32 %v844, %v856
        %v858 = vpop.f32.mrf.mxu0
        %859 = vdwg.mxu0
        %860 = vmatpush.bf16.xpose.msra.mxu0 0
        %861 = vmatpush.bf16.xpose.msra.mxu0 0
        %862 = vmatpush.bf16.xpose.msra.mxu0 0
        %863 = vmatpush.bf16.xpose.msra.mxu0 0
        %864 = vmatpush.bf16.xpose.msra.mxu0 0
        %865 = vmatpush.bf16.xpose.msra.mxu0 0
        %866 = vmatpush.bf16.xpose.msra.mxu0 0
        %867 = vmatpush.bf16.xpose.msra.mxu0 %v784
        %868 = vmatmul.bf16.gmra.mxu0 %v744
        %v869 = vpop.f32.mrf.mxu0
        %v870 = vadd.f32 %v857, %v869
        %v871 = vpop.f32.mrf.mxu0
        %872 = vdwg.mxu0
        %873 = vmatpush.bf16.xpose.msra.mxu0 0
        %874 = vmatpush.bf16.xpose.msra.mxu0 0
        %875 = vmatpush.bf16.xpose.msra.mxu0 0
        %876 = vmatpush.bf16.xpose.msra.mxu0 0
        %877 = vmatpush.bf16.xpose.msra.mxu0 0
        %878 = vmatpush.bf16.xpose.msra.mxu0 0
        %879 = vmatpush.bf16.xpose.msra.mxu0 0
        %880 = vmatpush.bf16.xpose.msra.mxu0 %v785
        %881 = vmatmul.bf16.gmra.mxu0 %v745
        %v882 = vpop.f32.mrf.mxu0
        %v883 = vadd.f32 %v870, %v882
        %v884 = vpop.f32.mrf.mxu0
        %885 = vdwg.mxu0
        %886 = vmatpush.bf16.xpose.msra.mxu0 0
        %887 = vmatpush.bf16.xpose.msra.mxu0 0
        %888 = vmatpush.bf16.xpose.msra.mxu0 0
        %889 = vmatpush.bf16.xpose.msra.mxu0 0
        %890 = vmatpush.bf16.xpose.msra.mxu0 0
        %891 = vmatpush.bf16.xpose.msra.mxu0 0
        %892 = vmatpush.bf16.xpose.msra.mxu0 0
        %893 = vmatpush.bf16.xpose.msra.mxu0 %v786
        %894 = vmatmul.bf16.gmra.mxu0 %v746
        %v895 = vpop.f32.mrf.mxu0
        %v896 = vadd.f32 %v883, %v895
        %v897 = vpop.f32.mrf.mxu0
        %898 = vdwg.mxu0
        %900 = vst [vmem:[#allocation1] ss:$9 sm:$0xff] %v408
        %v901 = vld [vmem:[#allocation1] sm:$0xff]
        %v902 = vld [vmem:[#allocation1 + $0x9] sm:$0xff]
        %v903 = vld [vmem:[#allocation1 + $0x12] sm:$0xff]
        %v904 = vld [vmem:[#allocation1 + $0x1b] sm:$0xff]
        %v905 = vld [vmem:[#allocation1 + $0x24] sm:$0xff]
        %v906 = vld [vmem:[#allocation1 + $0x2d] sm:$0xff]
        %v907 = vld [vmem:[#allocation1 + $0x36] sm:$0xff]
        %v908 = vld [vmem:[#allocation1 + $0x3f] sm:$0xff]
        %v925 = vunpack.c.l.b16 %v365
        %v926 = vunpack.c.h.b16 %v365
        %v927 = vunpack.c.l.b16 %v366
        %v928 = vunpack.c.h.b16 %v366
        %v929 = vunpack.c.l.b16 %v367
        %v930 = vunpack.c.h.b16 %v367
        %v931 = vunpack.c.l.b16 %v368
        %v932 = vunpack.c.h.b16 %v368
        %v933 = vunpack.c.l.b16 %v369
        %v934 = vunpack.c.h.b16 %v369
        %v935 = vunpack.c.l.b16 %v370
        %v936 = vunpack.c.h.b16 %v370
        %v937 = vunpack.c.l.b16 %v371
        %v938 = vunpack.c.h.b16 %v371
        %v939 = vunpack.c.l.b16 %v372
        %v940 = vunpack.c.h.b16 %v372
        %v941 = vpack.c.b16 %v933, %v925
        %v942 = vpack.c.b16 %v934, %v926
        %v943 = vpack.c.b16 %v935, %v927
        %v944 = vpack.c.b16 %v936, %v928
        %v945 = vpack.c.b16 %v937, %v929
        %v946 = vpack.c.b16 %v938, %v930
        %v947 = vpack.c.b16 %v939, %v931
        %v948 = vpack.c.b16 %v940, %v932
        %957 = vmatpush.bf16.xpose.msra.mxu0 0
        %958 = vmatpush.bf16.xpose.msra.mxu0 0
        %959 = vmatpush.bf16.xpose.msra.mxu0 0
        %960 = vmatpush.bf16.xpose.msra.mxu0 0
        %961 = vmatpush.bf16.xpose.msra.mxu0 0
        %962 = vmatpush.bf16.xpose.msra.mxu0 0
        %963 = vmatpush.bf16.xpose.msra.mxu0 0
        %964 = vmatpush.bf16.xpose.msra.mxu0 %v941
        %965 = vmatmul.bf16.gmra.mxu0 %v901
        %v966 = vpop.f32.mrf.mxu0
        %v967 = vadd.f32 0.0, %v966
        %v968 = vpop.f32.mrf.mxu0
        %969 = vdwg.mxu0
        %970 = vmatpush.bf16.xpose.msra.mxu0 0
        %971 = vmatpush.bf16.xpose.msra.mxu0 0
        %972 = vmatpush.bf16.xpose.msra.mxu0 0
        %973 = vmatpush.bf16.xpose.msra.mxu0 0
        %974 = vmatpush.bf16.xpose.msra.mxu0 0
        %975 = vmatpush.bf16.xpose.msra.mxu0 0
        %976 = vmatpush.bf16.xpose.msra.mxu0 0
        %977 = vmatpush.bf16.xpose.msra.mxu0 %v942
        %978 = vmatmul.bf16.gmra.mxu0 %v902
        %v979 = vpop.f32.mrf.mxu0
        %v980 = vadd.f32 %v967, %v979
        %v981 = vpop.f32.mrf.mxu0
        %982 = vdwg.mxu0
        %983 = vmatpush.bf16.xpose.msra.mxu0 0
        %984 = vmatpush.bf16.xpose.msra.mxu0 0
        %985 = vmatpush.bf16.xpose.msra.mxu0 0
        %986 = vmatpush.bf16.xpose.msra.mxu0 0
        %987 = vmatpush.bf16.xpose.msra.mxu0 0
        %988 = vmatpush.bf16.xpose.msra.mxu0 0
        %989 = vmatpush.bf16.xpose.msra.mxu0 0
        %990 = vmatpush.bf16.xpose.msra.mxu0 %v943
        %991 = vmatmul.bf16.gmra.mxu0 %v903
        %v992 = vpop.f32.mrf.mxu0
        %v993 = vadd.f32 %v980, %v992
        %v994 = vpop.f32.mrf.mxu0
        %995 = vdwg.mxu0
        %996 = vmatpush.bf16.xpose.msra.mxu0 0
        %997 = vmatpush.bf16.xpose.msra.mxu0 0
        %998 = vmatpush.bf16.xpose.msra.mxu0 0
        %999 = vmatpush.bf16.xpose.msra.mxu0 0
        %1000 = vmatpush.bf16.xpose.msra.mxu0 0
        %1001 = vmatpush.bf16.xpose.msra.mxu0 0
        %1002 = vmatpush.bf16.xpose.msra.mxu0 0
        %1003 = vmatpush.bf16.xpose.msra.mxu0 %v944
        %1004 = vmatmul.bf16.gmra.mxu0 %v904
        %v1005 = vpop.f32.mrf.mxu0
        %v1006 = vadd.f32 %v993, %v1005
        %v1007 = vpop.f32.mrf.mxu0
        %1008 = vdwg.mxu0
        %1009 = vmatpush.bf16.xpose.msra.mxu0 0
        %1010 = vmatpush.bf16.xpose.msra.mxu0 0
        %1011 = vmatpush.bf16.xpose.msra.mxu0 0
        %1012 = vmatpush.bf16.xpose.msra.mxu0 0
        %1013 = vmatpush.bf16.xpose.msra.mxu0 0
        %1014 = vmatpush.bf16.xpose.msra.mxu0 0
        %1015 = vmatpush.bf16.xpose.msra.mxu0 0
        %1016 = vmatpush.bf16.xpose.msra.mxu0 %v945
        %1017 = vmatmul.bf16.gmra.mxu0 %v905
        %v1018 = vpop.f32.mrf.mxu0
        %v1019 = vadd.f32 %v1006, %v1018
        %v1020 = vpop.f32.mrf.mxu0
        %1021 = vdwg.mxu0
        %1022 = vmatpush.bf16.xpose.msra.mxu0 0
        %1023 = vmatpush.bf16.xpose.msra.mxu0 0
        %1024 = vmatpush.bf16.xpose.msra.mxu0 0
        %1025 = vmatpush.bf16.xpose.msra.mxu0 0
        %1026 = vmatpush.bf16.xpose.msra.mxu0 0
        %1027 = vmatpush.bf16.xpose.msra.mxu0 0
        %1028 = vmatpush.bf16.xpose.msra.mxu0 0
        %1029 = vmatpush.bf16.xpose.msra.mxu0 %v946
        %1030 = vmatmul.bf16.gmra.mxu0 %v906
        %v1031 = vpop.f32.mrf.mxu0
        %v1032 = vadd.f32 %v1019, %v1031
        %v1033 = vpop.f32.mrf.mxu0
        %1034 = vdwg.mxu0
        %1035 = vmatpush.bf16.xpose.msra.mxu0 0
        %1036 = vmatpush.bf16.xpose.msra.mxu0 0
        %1037 = vmatpush.bf16.xpose.msra.mxu0 0
        %1038 = vmatpush.bf16.xpose.msra.mxu0 0
        %1039 = vmatpush.bf16.xpose.msra.mxu0 0
        %1040 = vmatpush.bf16.xpose.msra.mxu0 0
        %1041 = vmatpush.bf16.xpose.msra.mxu0 0
        %1042 = vmatpush.bf16.xpose.msra.mxu0 %v947
        %1043 = vmatmul.bf16.gmra.mxu0 %v907
        %v1044 = vpop.f32.mrf.mxu0
        %v1045 = vadd.f32 %v1032, %v1044
        %v1046 = vpop.f32.mrf.mxu0
        %1047 = vdwg.mxu0
        %1048 = vmatpush.bf16.xpose.msra.mxu0 0
        %1049 = vmatpush.bf16.xpose.msra.mxu0 0
        %1050 = vmatpush.bf16.xpose.msra.mxu0 0
        %1051 = vmatpush.bf16.xpose.msra.mxu0 0
        %1052 = vmatpush.bf16.xpose.msra.mxu0 0
        %1053 = vmatpush.bf16.xpose.msra.mxu0 0
        %1054 = vmatpush.bf16.xpose.msra.mxu0 0
        %1055 = vmatpush.bf16.xpose.msra.mxu0 %v948
        %1056 = vmatmul.bf16.gmra.mxu0 %v908
        %v1057 = vpop.f32.mrf.mxu0
        %v1058 = vadd.f32 %v1045, %v1057
        %v1059 = vpop.f32.mrf.mxu0
        %1060 = vdwg.mxu0
        %1062 = vst [vmem:[#allocation1] ss:$9 sm:$0xff] %v409
        %v1063 = vld [vmem:[#allocation1] sm:$0xff]
        %v1064 = vld [vmem:[#allocation1 + $0x9] sm:$0xff]
        %v1065 = vld [vmem:[#allocation1 + $0x12] sm:$0xff]
        %v1066 = vld [vmem:[#allocation1 + $0x1b] sm:$0xff]
        %v1067 = vld [vmem:[#allocation1 + $0x24] sm:$0xff]
        %v1068 = vld [vmem:[#allocation1 + $0x2d] sm:$0xff]
        %v1069 = vld [vmem:[#allocation1 + $0x36] sm:$0xff]
        %v1070 = vld [vmem:[#allocation1 + $0x3f] sm:$0xff]
        %v1087 = vunpack.c.l.b16 %v373
        %v1088 = vunpack.c.h.b16 %v373
        %v1089 = vunpack.c.l.b16 %v374
        %v1090 = vunpack.c.h.b16 %v374
        %v1091 = vunpack.c.l.b16 %v375
        %v1092 = vunpack.c.h.b16 %v375
        %v1093 = vunpack.c.l.b16 %v376
        %v1094 = vunpack.c.h.b16 %v376
        %v1095 = vunpack.c.l.b16 %v377
        %v1096 = vunpack.c.h.b16 %v377
        %v1097 = vunpack.c.l.b16 %v378
        %v1098 = vunpack.c.h.b16 %v378
        %v1099 = vunpack.c.l.b16 %v379
        %v1100 = vunpack.c.h.b16 %v379
        %v1101 = vunpack.c.l.b16 %v380
        %v1102 = vunpack.c.h.b16 %v380
        %v1103 = vpack.c.b16 %v1095, %v1087
        %v1104 = vpack.c.b16 %v1096, %v1088
        %v1105 = vpack.c.b16 %v1097, %v1089
        %v1106 = vpack.c.b16 %v1098, %v1090
        %v1107 = vpack.c.b16 %v1099, %v1091
        %v1108 = vpack.c.b16 %v1100, %v1092
        %v1109 = vpack.c.b16 %v1101, %v1093
        %v1110 = vpack.c.b16 %v1102, %v1094
        %1119 = vmatpush.bf16.xpose.msra.mxu0 0
        %1120 = vmatpush.bf16.xpose.msra.mxu0 0
        %1121 = vmatpush.bf16.xpose.msra.mxu0 0
        %1122 = vmatpush.bf16.xpose.msra.mxu0 0
        %1123 = vmatpush.bf16.xpose.msra.mxu0 0
        %1124 = vmatpush.bf16.xpose.msra.mxu0 0
        %1125 = vmatpush.bf16.xpose.msra.mxu0 0
        %1126 = vmatpush.bf16.xpose.msra.mxu0 %v1103
        %1127 = vmatmul.bf16.gmra.mxu0 %v1063
        %v1128 = vpop.f32.mrf.mxu0
        %v1129 = vadd.f32 0.0, %v1128
        %v1130 = vpop.f32.mrf.mxu0
        %1131 = vdwg.mxu0
        %1132 = vmatpush.bf16.xpose.msra.mxu0 0
        %1133 = vmatpush.bf16.xpose.msra.mxu0 0
        %1134 = vmatpush.bf16.xpose.msra.mxu0 0
        %1135 = vmatpush.bf16.xpose.msra.mxu0 0
        %1136 = vmatpush.bf16.xpose.msra.mxu0 0
        %1137 = vmatpush.bf16.xpose.msra.mxu0 0
        %1138 = vmatpush.bf16.xpose.msra.mxu0 0
        %1139 = vmatpush.bf16.xpose.msra.mxu0 %v1104
        %1140 = vmatmul.bf16.gmra.mxu0 %v1064
        %v1141 = vpop.f32.mrf.mxu0
        %v1142 = vadd.f32 %v1129, %v1141
        %v1143 = vpop.f32.mrf.mxu0
        %1144 = vdwg.mxu0
        %1145 = vmatpush.bf16.xpose.msra.mxu0 0
        %1146 = vmatpush.bf16.xpose.msra.mxu0 0
        %1147 = vmatpush.bf16.xpose.msra.mxu0 0
        %1148 = vmatpush.bf16.xpose.msra.mxu0 0
        %1149 = vmatpush.bf16.xpose.msra.mxu0 0
        %1150 = vmatpush.bf16.xpose.msra.mxu0 0
        %1151 = vmatpush.bf16.xpose.msra.mxu0 0
        %1152 = vmatpush.bf16.xpose.msra.mxu0 %v1105
        %1153 = vmatmul.bf16.gmra.mxu0 %v1065
        %v1154 = vpop.f32.mrf.mxu0
        %v1155 = vadd.f32 %v1142, %v1154
        %v1156 = vpop.f32.mrf.mxu0
        %1157 = vdwg.mxu0
        %1158 = vmatpush.bf16.xpose.msra.mxu0 0
        %1159 = vmatpush.bf16.xpose.msra.mxu0 0
        %1160 = vmatpush.bf16.xpose.msra.mxu0 0
        %1161 = vmatpush.bf16.xpose.msra.mxu0 0
        %1162 = vmatpush.bf16.xpose.msra.mxu0 0
        %1163 = vmatpush.bf16.xpose.msra.mxu0 0
        %1164 = vmatpush.bf16.xpose.msra.mxu0 0
        %1165 = vmatpush.bf16.xpose.msra.mxu0 %v1106
        %1166 = vmatmul.bf16.gmra.mxu0 %v1066
        %v1167 = vpop.f32.mrf.mxu0
        %v1168 = vadd.f32 %v1155, %v1167
        %v1169 = vpop.f32.mrf.mxu0
        %1170 = vdwg.mxu0
        %1171 = vmatpush.bf16.xpose.msra.mxu0 0
        %1172 = vmatpush.bf16.xpose.msra.mxu0 0
        %1173 = vmatpush.bf16.xpose.msra.mxu0 0
        %1174 = vmatpush.bf16.xpose.msra.mxu0 0
        %1175 = vmatpush.bf16.xpose.msra.mxu0 0
        %1176 = vmatpush.bf16.xpose.msra.mxu0 0
        %1177 = vmatpush.bf16.xpose.msra.mxu0 0
        %1178 = vmatpush.bf16.xpose.msra.mxu0 %v1107
        %1179 = vmatmul.bf16.gmra.mxu0 %v1067
        %v1180 = vpop.f32.mrf.mxu0
        %v1181 = vadd.f32 %v1168, %v1180
        %v1182 = vpop.f32.mrf.mxu0
        %1183 = vdwg.mxu0
        %1184 = vmatpush.bf16.xpose.msra.mxu0 0
        %1185 = vmatpush.bf16.xpose.msra.mxu0 0
        %1186 = vmatpush.bf16.xpose.msra.mxu0 0
        %1187 = vmatpush.bf16.xpose.msra.mxu0 0
        %1188 = vmatpush.bf16.xpose.msra.mxu0 0
        %1189 = vmatpush.bf16.xpose.msra.mxu0 0
        %1190 = vmatpush.bf16.xpose.msra.mxu0 0
        %1191 = vmatpush.bf16.xpose.msra.mxu0 %v1108
        %1192 = vmatmul.bf16.gmra.mxu0 %v1068
        %v1193 = vpop.f32.mrf.mxu0
        %v1194 = vadd.f32 %v1181, %v1193
        %v1195 = vpop.f32.mrf.mxu0
        %1196 = vdwg.mxu0
        %1197 = vmatpush.bf16.xpose.msra.mxu0 0
        %1198 = vmatpush.bf16.xpose.msra.mxu0 0
        %1199 = vmatpush.bf16.xpose.msra.mxu0 0
        %1200 = vmatpush.bf16.xpose.msra.mxu0 0
        %1201 = vmatpush.bf16.xpose.msra.mxu0 0
        %1202 = vmatpush.bf16.xpose.msra.mxu0 0
        %1203 = vmatpush.bf16.xpose.msra.mxu0 0
        %1204 = vmatpush.bf16.xpose.msra.mxu0 %v1109
        %1205 = vmatmul.bf16.gmra.mxu0 %v1069
        %v1206 = vpop.f32.mrf.mxu0
        %v1207 = vadd.f32 %v1194, %v1206
        %v1208 = vpop.f32.mrf.mxu0
        %1209 = vdwg.mxu0
        %1210 = vmatpush.bf16.xpose.msra.mxu0 0
        %1211 = vmatpush.bf16.xpose.msra.mxu0 0
        %1212 = vmatpush.bf16.xpose.msra.mxu0 0
        %1213 = vmatpush.bf16.xpose.msra.mxu0 0
        %1214 = vmatpush.bf16.xpose.msra.mxu0 0
        %1215 = vmatpush.bf16.xpose.msra.mxu0 0
        %1216 = vmatpush.bf16.xpose.msra.mxu0 0
        %1217 = vmatpush.bf16.xpose.msra.mxu0 %v1110
        %1218 = vmatmul.bf16.gmra.mxu0 %v1070
        %v1219 = vpop.f32.mrf.mxu0
        %v1220 = vadd.f32 %v1207, %v1219
        %v1221 = vpop.f32.mrf.mxu0
        %1222 = vdwg.mxu0
        %1224 = vst [vmem:[#allocation1] ss:$9 sm:$0xff] %v410
        %v1225 = vld [vmem:[#allocation1] sm:$0xff]
        %v1226 = vld [vmem:[#allocation1 + $0x9] sm:$0xff]
        %v1227 = vld [vmem:[#allocation1 + $0x12] sm:$0xff]
        %v1228 = vld [vmem:[#allocation1 + $0x1b] sm:$0xff]
        %v1229 = vld [vmem:[#allocation1 + $0x24] sm:$0xff]
        %v1230 = vld [vmem:[#allocation1 + $0x2d] sm:$0xff]
        %v1231 = vld [vmem:[#allocation1 + $0x36] sm:$0xff]
        %v1232 = vld [vmem:[#allocation1 + $0x3f] sm:$0xff]
        %v1249 = vunpack.c.l.b16 %v381
        %v1250 = vunpack.c.h.b16 %v381
        %v1251 = vunpack.c.l.b16 %v382
        %v1252 = vunpack.c.h.b16 %v382
        %v1253 = vunpack.c.l.b16 %v383
        %v1254 = vunpack.c.h.b16 %v383
        %v1255 = vunpack.c.l.b16 %v384
        %v1256 = vunpack.c.h.b16 %v384
        %v1257 = vunpack.c.l.b16 %v385
        %v1258 = vunpack.c.h.b16 %v385
        %v1259 = vunpack.c.l.b16 %v386
        %v1260 = vunpack.c.h.b16 %v386
        %v1261 = vunpack.c.l.b16 %v387
        %v1262 = vunpack.c.h.b16 %v387
        %v1263 = vunpack.c.l.b16 %v388
        %v1264 = vunpack.c.h.b16 %v388
        %v1265 = vpack.c.b16 %v1257, %v1249
        %v1266 = vpack.c.b16 %v1258, %v1250
        %v1267 = vpack.c.b16 %v1259, %v1251
        %v1268 = vpack.c.b16 %v1260, %v1252
        %v1269 = vpack.c.b16 %v1261, %v1253
        %v1270 = vpack.c.b16 %v1262, %v1254
        %v1271 = vpack.c.b16 %v1263, %v1255
        %v1272 = vpack.c.b16 %v1264, %v1256
        %1281 = vmatpush.bf16.xpose.msra.mxu0 0
        %1282 = vmatpush.bf16.xpose.msra.mxu0 0
        %1283 = vmatpush.bf16.xpose.msra.mxu0 0
        %1284 = vmatpush.bf16.xpose.msra.mxu0 0
        %1285 = vmatpush.bf16.xpose.msra.mxu0 0
        %1286 = vmatpush.bf16.xpose.msra.mxu0 0
        %1287 = vmatpush.bf16.xpose.msra.mxu0 0
        %1288 = vmatpush.bf16.xpose.msra.mxu0 %v1265
        %1289 = vmatmul.bf16.gmra.mxu0 %v1225
        %v1290 = vpop.f32.mrf.mxu0
        %v1291 = vadd.f32 0.0, %v1290
        %v1292 = vpop.f32.mrf.mxu0
        %1293 = vdwg.mxu0
        %1294 = vmatpush.bf16.xpose.msra.mxu0 0
        %1295 = vmatpush.bf16.xpose.msra.mxu0 0
        %1296 = vmatpush.bf16.xpose.msra.mxu0 0
        %1297 = vmatpush.bf16.xpose.msra.mxu0 0
        %1298 = vmatpush.bf16.xpose.msra.mxu0 0
        %1299 = vmatpush.bf16.xpose.msra.mxu0 0
        %1300 = vmatpush.bf16.xpose.msra.mxu0 0
        %1301 = vmatpush.bf16.xpose.msra.mxu0 %v1266
        %1302 = vmatmul.bf16.gmra.mxu0 %v1226
        %v1303 = vpop.f32.mrf.mxu0
        %v1304 = vadd.f32 %v1291, %v1303
        %v1305 = vpop.f32.mrf.mxu0
        %1306 = vdwg.mxu0
        %1307 = vmatpush.bf16.xpose.msra.mxu0 0
        %1308 = vmatpush.bf16.xpose.msra.mxu0 0
        %1309 = vmatpush.bf16.xpose.msra.mxu0 0
        %1310 = vmatpush.bf16.xpose.msra.mxu0 0
        %1311 = vmatpush.bf16.xpose.msra.mxu0 0
        %1312 = vmatpush.bf16.xpose.msra.mxu0 0
        %1313 = vmatpush.bf16.xpose.msra.mxu0 0
        %1314 = vmatpush.bf16.xpose.msra.mxu0 %v1267
        %1315 = vmatmul.bf16.gmra.mxu0 %v1227
        %v1316 = vpop.f32.mrf.mxu0
        %v1317 = vadd.f32 %v1304, %v1316
        %v1318 = vpop.f32.mrf.mxu0
        %1319 = vdwg.mxu0
        %1320 = vmatpush.bf16.xpose.msra.mxu0 0
        %1321 = vmatpush.bf16.xpose.msra.mxu0 0
        %1322 = vmatpush.bf16.xpose.msra.mxu0 0
        %1323 = vmatpush.bf16.xpose.msra.mxu0 0
        %1324 = vmatpush.bf16.xpose.msra.mxu0 0
        %1325 = vmatpush.bf16.xpose.msra.mxu0 0
        %1326 = vmatpush.bf16.xpose.msra.mxu0 0
        %1327 = vmatpush.bf16.xpose.msra.mxu0 %v1268
        %1328 = vmatmul.bf16.gmra.mxu0 %v1228
        %v1329 = vpop.f32.mrf.mxu0
        %v1330 = vadd.f32 %v1317, %v1329
        %v1331 = vpop.f32.mrf.mxu0
        %1332 = vdwg.mxu0
        %1333 = vmatpush.bf16.xpose.msra.mxu0 0
        %1334 = vmatpush.bf16.xpose.msra.mxu0 0
        %1335 = vmatpush.bf16.xpose.msra.mxu0 0
        %1336 = vmatpush.bf16.xpose.msra.mxu0 0
        %1337 = vmatpush.bf16.xpose.msra.mxu0 0
        %1338 = vmatpush.bf16.xpose.msra.mxu0 0
        %1339 = vmatpush.bf16.xpose.msra.mxu0 0
        %1340 = vmatpush.bf16.xpose.msra.mxu0 %v1269
        %1341 = vmatmul.bf16.gmra.mxu0 %v1229
        %v1342 = vpop.f32.mrf.mxu0
        %v1343 = vadd.f32 %v1330, %v1342
        %v1344 = vpop.f32.mrf.mxu0
        %1345 = vdwg.mxu0
        %1346 = vmatpush.bf16.xpose.msra.mxu0 0
        %1347 = vmatpush.bf16.xpose.msra.mxu0 0
        %1348 = vmatpush.bf16.xpose.msra.mxu0 0
        %1349 = vmatpush.bf16.xpose.msra.mxu0 0
        %1350 = vmatpush.bf16.xpose.msra.mxu0 0
        %1351 = vmatpush.bf16.xpose.msra.mxu0 0
        %1352 = vmatpush.bf16.xpose.msra.mxu0 0
        %1353 = vmatpush.bf16.xpose.msra.mxu0 %v1270
        %1354 = vmatmul.bf16.gmra.mxu0 %v1230
        %v1355 = vpop.f32.mrf.mxu0
        %v1356 = vadd.f32 %v1343, %v1355
        %v1357 = vpop.f32.mrf.mxu0
        %1358 = vdwg.mxu0
        %1359 = vmatpush.bf16.xpose.msra.mxu0 0
        %1360 = vmatpush.bf16.xpose.msra.mxu0 0
        %1361 = vmatpush.bf16.xpose.msra.mxu0 0
        %1362 = vmatpush.bf16.xpose.msra.mxu0 0
        %1363 = vmatpush.bf16.xpose.msra.mxu0 0
        %1364 = vmatpush.bf16.xpose.msra.mxu0 0
        %1365 = vmatpush.bf16.xpose.msra.mxu0 0
        %1366 = vmatpush.bf16.xpose.msra.mxu0 %v1271
        %1367 = vmatmul.bf16.gmra.mxu0 %v1231
        %v1368 = vpop.f32.mrf.mxu0
        %v1369 = vadd.f32 %v1356, %v1368
        %v1370 = vpop.f32.mrf.mxu0
        %1371 = vdwg.mxu0
        %1372 = vmatpush.bf16.xpose.msra.mxu0 0
        %1373 = vmatpush.bf16.xpose.msra.mxu0 0
        %1374 = vmatpush.bf16.xpose.msra.mxu0 0
        %1375 = vmatpush.bf16.xpose.msra.mxu0 0
        %1376 = vmatpush.bf16.xpose.msra.mxu0 0
        %1377 = vmatpush.bf16.xpose.msra.mxu0 0
        %1378 = vmatpush.bf16.xpose.msra.mxu0 0
        %1379 = vmatpush.bf16.xpose.msra.mxu0 %v1272
        %1380 = vmatmul.bf16.gmra.mxu0 %v1232
        %v1381 = vpop.f32.mrf.mxu0
        %v1382 = vadd.f32 %v1369, %v1381
        %v1383 = vpop.f32.mrf.mxu0
        %1384 = vdwg.mxu0
        %1386 = vst [vmem:[#allocation1] ss:$9 sm:$0xff] %v411
        %v1387 = vld [vmem:[#allocation1] sm:$0xff]
        %v1388 = vld [vmem:[#allocation1 + $0x9] sm:$0xff]
        %v1389 = vld [vmem:[#allocation1 + $0x12] sm:$0xff]
        %v1390 = vld [vmem:[#allocation1 + $0x1b] sm:$0xff]
        %v1391 = vld [vmem:[#allocation1 + $0x24] sm:$0xff]
        %v1392 = vld [vmem:[#allocation1 + $0x2d] sm:$0xff]
        %v1393 = vld [vmem:[#allocation1 + $0x36] sm:$0xff]
        %v1394 = vld [vmem:[#allocation1 + $0x3f] sm:$0xff]
        %v1411 = vunpack.c.l.b16 %v389
        %v1412 = vunpack.c.h.b16 %v389
        %v1413 = vunpack.c.l.b16 %v390
        %v1414 = vunpack.c.h.b16 %v390
        %v1415 = vunpack.c.l.b16 %v391
        %v1416 = vunpack.c.h.b16 %v391
        %v1417 = vunpack.c.l.b16 %v392
        %v1418 = vunpack.c.h.b16 %v392
        %v1419 = vunpack.c.l.b16 %v393
        %v1420 = vunpack.c.h.b16 %v393
        %v1421 = vunpack.c.l.b16 %v394
        %v1422 = vunpack.c.h.b16 %v394
        %v1423 = vunpack.c.l.b16 %v395
        %v1424 = vunpack.c.h.b16 %v395
        %v1425 = vunpack.c.l.b16 %v396
        %v1426 = vunpack.c.h.b16 %v396
        %v1427 = vpack.c.b16 %v1419, %v1411
        %v1428 = vpack.c.b16 %v1420, %v1412
        %v1429 = vpack.c.b16 %v1421, %v1413
        %v1430 = vpack.c.b16 %v1422, %v1414
        %v1431 = vpack.c.b16 %v1423, %v1415
        %v1432 = vpack.c.b16 %v1424, %v1416
        %v1433 = vpack.c.b16 %v1425, %v1417
        %v1434 = vpack.c.b16 %v1426, %v1418
        %1443 = vmatpush.bf16.xpose.msra.mxu0 0
        %1444 = vmatpush.bf16.xpose.msra.mxu0 0
        %1445 = vmatpush.bf16.xpose.msra.mxu0 0
        %1446 = vmatpush.bf16.xpose.msra.mxu0 0
        %1447 = vmatpush.bf16.xpose.msra.mxu0 0
        %1448 = vmatpush.bf16.xpose.msra.mxu0 0
        %1449 = vmatpush.bf16.xpose.msra.mxu0 0
        %1450 = vmatpush.bf16.xpose.msra.mxu0 %v1427
        %1451 = vmatmul.bf16.gmra.mxu0 %v1387
        %v1452 = vpop.f32.mrf.mxu0
        %v1453 = vadd.f32 0.0, %v1452
        %v1454 = vpop.f32.mrf.mxu0
        %1455 = vdwg.mxu0
        %1456 = vmatpush.bf16.xpose.msra.mxu0 0
        %1457 = vmatpush.bf16.xpose.msra.mxu0 0
        %1458 = vmatpush.bf16.xpose.msra.mxu0 0
        %1459 = vmatpush.bf16.xpose.msra.mxu0 0
        %1460 = vmatpush.bf16.xpose.msra.mxu0 0
        %1461 = vmatpush.bf16.xpose.msra.mxu0 0
        %1462 = vmatpush.bf16.xpose.msra.mxu0 0
        %1463 = vmatpush.bf16.xpose.msra.mxu0 %v1428
        %1464 = vmatmul.bf16.gmra.mxu0 %v1388
        %v1465 = vpop.f32.mrf.mxu0
        %v1466 = vadd.f32 %v1453, %v1465
        %v1467 = vpop.f32.mrf.mxu0
        %1468 = vdwg.mxu0
        %1469 = vmatpush.bf16.xpose.msra.mxu0 0
        %1470 = vmatpush.bf16.xpose.msra.mxu0 0
        %1471 = vmatpush.bf16.xpose.msra.mxu0 0
        %1472 = vmatpush.bf16.xpose.msra.mxu0 0
        %1473 = vmatpush.bf16.xpose.msra.mxu0 0
        %1474 = vmatpush.bf16.xpose.msra.mxu0 0
        %1475 = vmatpush.bf16.xpose.msra.mxu0 0
        %1476 = vmatpush.bf16.xpose.msra.mxu0 %v1429
        %1477 = vmatmul.bf16.gmra.mxu0 %v1389
        %v1478 = vpop.f32.mrf.mxu0
        %v1479 = vadd.f32 %v1466, %v1478
        %v1480 = vpop.f32.mrf.mxu0
        %1481 = vdwg.mxu0
        %1482 = vmatpush.bf16.xpose.msra.mxu0 0
        %1483 = vmatpush.bf16.xpose.msra.mxu0 0
        %1484 = vmatpush.bf16.xpose.msra.mxu0 0
        %1485 = vmatpush.bf16.xpose.msra.mxu0 0
        %1486 = vmatpush.bf16.xpose.msra.mxu0 0
        %1487 = vmatpush.bf16.xpose.msra.mxu0 0
        %1488 = vmatpush.bf16.xpose.msra.mxu0 0
        %1489 = vmatpush.bf16.xpose.msra.mxu0 %v1430
        %1490 = vmatmul.bf16.gmra.mxu0 %v1390
        %v1491 = vpop.f32.mrf.mxu0
        %v1492 = vadd.f32 %v1479, %v1491
        %v1493 = vpop.f32.mrf.mxu0
        %1494 = vdwg.mxu0
        %1495 = vmatpush.bf16.xpose.msra.mxu0 0
        %1496 = vmatpush.bf16.xpose.msra.mxu0 0
        %1497 = vmatpush.bf16.xpose.msra.mxu0 0
        %1498 = vmatpush.bf16.xpose.msra.mxu0 0
        %1499 = vmatpush.bf16.xpose.msra.mxu0 0
        %1500 = vmatpush.bf16.xpose.msra.mxu0 0
        %1501 = vmatpush.bf16.xpose.msra.mxu0 0
        %1502 = vmatpush.bf16.xpose.msra.mxu0 %v1431
        %1503 = vmatmul.bf16.gmra.mxu0 %v1391
        %v1504 = vpop.f32.mrf.mxu0
        %v1505 = vadd.f32 %v1492, %v1504
        %v1506 = vpop.f32.mrf.mxu0
        %1507 = vdwg.mxu0
        %1508 = vmatpush.bf16.xpose.msra.mxu0 0
        %1509 = vmatpush.bf16.xpose.msra.mxu0 0
        %1510 = vmatpush.bf16.xpose.msra.mxu0 0
        %1511 = vmatpush.bf16.xpose.msra.mxu0 0
        %1512 = vmatpush.bf16.xpose.msra.mxu0 0
        %1513 = vmatpush.bf16.xpose.msra.mxu0 0
        %1514 = vmatpush.bf16.xpose.msra.mxu0 0
        %1515 = vmatpush.bf16.xpose.msra.mxu0 %v1432
        %1516 = vmatmul.bf16.gmra.mxu0 %v1392
        %v1517 = vpop.f32.mrf.mxu0
        %v1518 = vadd.f32 %v1505, %v1517
        %v1519 = vpop.f32.mrf.mxu0
        %1520 = vdwg.mxu0
        %1521 = vmatpush.bf16.xpose.msra.mxu0 0
        %1522 = vmatpush.bf16.xpose.msra.mxu0 0
        %1523 = vmatpush.bf16.xpose.msra.mxu0 0
        %1524 = vmatpush.bf16.xpose.msra.mxu0 0
        %1525 = vmatpush.bf16.xpose.msra.mxu0 0
        %1526 = vmatpush.bf16.xpose.msra.mxu0 0
        %1527 = vmatpush.bf16.xpose.msra.mxu0 0
        %1528 = vmatpush.bf16.xpose.msra.mxu0 %v1433
        %1529 = vmatmul.bf16.gmra.mxu0 %v1393
        %v1530 = vpop.f32.mrf.mxu0
        %v1531 = vadd.f32 %v1518, %v1530
        %v1532 = vpop.f32.mrf.mxu0
        %1533 = vdwg.mxu0
        %1534 = vmatpush.bf16.xpose.msra.mxu0 0
        %1535 = vmatpush.bf16.xpose.msra.mxu0 0
        %1536 = vmatpush.bf16.xpose.msra.mxu0 0
        %1537 = vmatpush.bf16.xpose.msra.mxu0 0
        %1538 = vmatpush.bf16.xpose.msra.mxu0 0
        %1539 = vmatpush.bf16.xpose.msra.mxu0 0
        %1540 = vmatpush.bf16.xpose.msra.mxu0 0
        %1541 = vmatpush.bf16.xpose.msra.mxu0 %v1434
        %1542 = vmatmul.bf16.gmra.mxu0 %v1394
        %v1543 = vpop.f32.mrf.mxu0
        %v1544 = vadd.f32 %v1531, %v1543
        %v1545 = vpop.f32.mrf.mxu0
        %1546 = vdwg.mxu0
        %1548 = vst [vmem:[#allocation1] ss:$9 sm:$0xff] %v412
        %v1549 = vld [vmem:[#allocation1] sm:$0xff]
        %v1550 = vld [vmem:[#allocation1 + $0x9] sm:$0xff]
        %v1551 = vld [vmem:[#allocation1 + $0x12] sm:$0xff]
        %v1552 = vld [vmem:[#allocation1 + $0x1b] sm:$0xff]
        %v1553 = vld [vmem:[#allocation1 + $0x24] sm:$0xff]
        %v1554 = vld [vmem:[#allocation1 + $0x2d] sm:$0xff]
        %v1555 = vld [vmem:[#allocation1 + $0x36] sm:$0xff]
        %v1556 = vld [vmem:[#allocation1 + $0x3f] sm:$0xff]
        %v1573 = vunpack.c.l.b16 %v397
        %v1574 = vunpack.c.h.b16 %v397
        %v1575 = vunpack.c.l.b16 %v398
        %v1576 = vunpack.c.h.b16 %v398
        %v1577 = vunpack.c.l.b16 %v399
        %v1578 = vunpack.c.h.b16 %v399
        %v1579 = vunpack.c.l.b16 %v400
        %v1580 = vunpack.c.h.b16 %v400
        %v1581 = vunpack.c.l.b16 %v401
        %v1582 = vunpack.c.h.b16 %v401
        %v1583 = vunpack.c.l.b16 %v402
        %v1584 = vunpack.c.h.b16 %v402
        %v1585 = vunpack.c.l.b16 %v403
        %v1586 = vunpack.c.h.b16 %v403
        %v1587 = vunpack.c.l.b16 %v404
        %v1588 = vunpack.c.h.b16 %v404
        %v1589 = vpack.c.b16 %v1581, %v1573
        %v1590 = vpack.c.b16 %v1582, %v1574
        %v1591 = vpack.c.b16 %v1583, %v1575
        %v1592 = vpack.c.b16 %v1584, %v1576
        %v1593 = vpack.c.b16 %v1585, %v1577
        %v1594 = vpack.c.b16 %v1586, %v1578
        %v1595 = vpack.c.b16 %v1587, %v1579
        %v1596 = vpack.c.b16 %v1588, %v1580
        %1605 = vmatpush.bf16.xpose.msra.mxu0 0
        %1606 = vmatpush.bf16.xpose.msra.mxu0 0
        %1607 = vmatpush.bf16.xpose.msra.mxu0 0
        %1608 = vmatpush.bf16.xpose.msra.mxu0 0
        %1609 = vmatpush.bf16.xpose.msra.mxu0 0
        %1610 = vmatpush.bf16.xpose.msra.mxu0 0
        %1611 = vmatpush.bf16.xpose.msra.mxu0 0
        %1612 = vmatpush.bf16.xpose.msra.mxu0 %v1589
        %1613 = vmatmul.bf16.gmra.mxu0 %v1549
        %v1614 = vpop.f32.mrf.mxu0
        %v1615 = vadd.f32 0.0, %v1614
        %v1616 = vpop.f32.mrf.mxu0
        %1617 = vdwg.mxu0
        %1618 = vmatpush.bf16.xpose.msra.mxu0 0
        %1619 = vmatpush.bf16.xpose.msra.mxu0 0
        %1620 = vmatpush.bf16.xpose.msra.mxu0 0
        %1621 = vmatpush.bf16.xpose.msra.mxu0 0
        %1622 = vmatpush.bf16.xpose.msra.mxu0 0
        %1623 = vmatpush.bf16.xpose.msra.mxu0 0
        %1624 = vmatpush.bf16.xpose.msra.mxu0 0
        %1625 = vmatpush.bf16.xpose.msra.mxu0 %v1590
        %1626 = vmatmul.bf16.gmra.mxu0 %v1550
        %v1627 = vpop.f32.mrf.mxu0
        %v1628 = vadd.f32 %v1615, %v1627
        %v1629 = vpop.f32.mrf.mxu0
        %1630 = vdwg.mxu0
        %1631 = vmatpush.bf16.xpose.msra.mxu0 0
        %1632 = vmatpush.bf16.xpose.msra.mxu0 0
        %1633 = vmatpush.bf16.xpose.msra.mxu0 0
        %1634 = vmatpush.bf16.xpose.msra.mxu0 0
        %1635 = vmatpush.bf16.xpose.msra.mxu0 0
        %1636 = vmatpush.bf16.xpose.msra.mxu0 0
        %1637 = vmatpush.bf16.xpose.msra.mxu0 0
        %1638 = vmatpush.bf16.xpose.msra.mxu0 %v1591
        %1639 = vmatmul.bf16.gmra.mxu0 %v1551
        %v1640 = vpop.f32.mrf.mxu0
        %v1641 = vadd.f32 %v1628, %v1640
        %v1642 = vpop.f32.mrf.mxu0
        %1643 = vdwg.mxu0
        %1644 = vmatpush.bf16.xpose.msra.mxu0 0
        %1645 = vmatpush.bf16.xpose.msra.mxu0 0
        %1646 = vmatpush.bf16.xpose.msra.mxu0 0
        %1647 = vmatpush.bf16.xpose.msra.mxu0 0
        %1648 = vmatpush.bf16.xpose.msra.mxu0 0
        %1649 = vmatpush.bf16.xpose.msra.mxu0 0
        %1650 = vmatpush.bf16.xpose.msra.mxu0 0
        %1651 = vmatpush.bf16.xpose.msra.mxu0 %v1592
        %1652 = vmatmul.bf16.gmra.mxu0 %v1552
        %v1653 = vpop.f32.mrf.mxu0
        %v1654 = vadd.f32 %v1641, %v1653
        %v1655 = vpop.f32.mrf.mxu0
        %1656 = vdwg.mxu0
        %1657 = vmatpush.bf16.xpose.msra.mxu0 0
        %1658 = vmatpush.bf16.xpose.msra.mxu0 0
        %1659 = vmatpush.bf16.xpose.msra.mxu0 0
        %1660 = vmatpush.bf16.xpose.msra.mxu0 0
        %1661 = vmatpush.bf16.xpose.msra.mxu0 0
        %1662 = vmatpush.bf16.xpose.msra.mxu0 0
        %1663 = vmatpush.bf16.xpose.msra.mxu0 0
        %1664 = vmatpush.bf16.xpose.msra.mxu0 %v1593
        %1665 = vmatmul.bf16.gmra.mxu0 %v1553
        %v1666 = vpop.f32.mrf.mxu0
        %v1667 = vadd.f32 %v1654, %v1666
        %v1668 = vpop.f32.mrf.mxu0
        %1669 = vdwg.mxu0
        %1670 = vmatpush.bf16.xpose.msra.mxu0 0
        %1671 = vmatpush.bf16.xpose.msra.mxu0 0
        %1672 = vmatpush.bf16.xpose.msra.mxu0 0
        %1673 = vmatpush.bf16.xpose.msra.mxu0 0
        %1674 = vmatpush.bf16.xpose.msra.mxu0 0
        %1675 = vmatpush.bf16.xpose.msra.mxu0 0
        %1676 = vmatpush.bf16.xpose.msra.mxu0 0
        %1677 = vmatpush.bf16.xpose.msra.mxu0 %v1594
        %1678 = vmatmul.bf16.gmra.mxu0 %v1554
        %v1679 = vpop.f32.mrf.mxu0
        %v1680 = vadd.f32 %v1667, %v1679
        %v1681 = vpop.f32.mrf.mxu0
        %1682 = vdwg.mxu0
        %1683 = vmatpush.bf16.xpose.msra.mxu0 0
        %1684 = vmatpush.bf16.xpose.msra.mxu0 0
        %1685 = vmatpush.bf16.xpose.msra.mxu0 0
        %1686 = vmatpush.bf16.xpose.msra.mxu0 0
        %1687 = vmatpush.bf16.xpose.msra.mxu0 0
        %1688 = vmatpush.bf16.xpose.msra.mxu0 0
        %1689 = vmatpush.bf16.xpose.msra.mxu0 0
        %1690 = vmatpush.bf16.xpose.msra.mxu0 %v1595
        %1691 = vmatmul.bf16.gmra.mxu0 %v1555
        %v1692 = vpop.f32.mrf.mxu0
        %v1693 = vadd.f32 %v1680, %v1692
        %v1694 = vpop.f32.mrf.mxu0
        %1695 = vdwg.mxu0
        %1696 = vmatpush.bf16.xpose.msra.mxu0 0
        %1697 = vmatpush.bf16.xpose.msra.mxu0 0
        %1698 = vmatpush.bf16.xpose.msra.mxu0 0
        %1699 = vmatpush.bf16.xpose.msra.mxu0 0
        %1700 = vmatpush.bf16.xpose.msra.mxu0 0
        %1701 = vmatpush.bf16.xpose.msra.mxu0 0
        %1702 = vmatpush.bf16.xpose.msra.mxu0 0
        %1703 = vmatpush.bf16.xpose.msra.mxu0 %v1596
        %1704 = vmatmul.bf16.gmra.mxu0 %v1556
        %v1705 = vpop.f32.mrf.mxu0
        %v1706 = vadd.f32 %v1693, %v1705
        %v1707 = vpop.f32.mrf.mxu0
        %1708 = vdwg.mxu0
        %v1709 = vld [vmem:[#allocation2] sm:$0x1]
        %v1710 = vld [vmem:[#allocation2 + $0x1] sm:$0x1]
        %v1711 = vld [vmem:[#allocation2 + $0x2] sm:$0x1]
        %v1712 = vld [vmem:[#allocation2 + $0x3] sm:$0x1]
        %v1713 = vld [vmem:[#allocation2 + $0x4] sm:$0x1]
        %v1714 = vld [vmem:[#allocation2 + $0x5] sm:$0x1]
        %v1715 = vld [vmem:[#allocation2 + $0x6] sm:$0x1]
        %v1716 = vld [vmem:[#allocation2 + $0x7] sm:$0x1]
        %vm1717 = vcmask 122880
        %v1718 = vsel %vm1717, %v572, -inf
        %1719 = vmax.xlane.f32.xlu0 %v1718
        %v1720 = vpop.xlane.xlu0 %1719
        %v1721 = vsel %vm1717, %v734, -inf
        %1722 = vmax.xlane.f32.xlu0 %v1721
        %v1723 = vpop.xlane.xlu0 %1722
        %v1724 = vsel %vm1717, %v896, -inf
        %1725 = vmax.xlane.f32.xlu0 %v1724
        %v1726 = vpop.xlane.xlu0 %1725
        %v1727 = vsel %vm1717, %v1058, -inf
        %1728 = vmax.xlane.f32.xlu0 %v1727
        %v1729 = vpop.xlane.xlu0 %1728
        %v1730 = vsel %vm1717, %v1220, -inf
        %1731 = vmax.xlane.f32.xlu0 %v1730
        %v1732 = vpop.xlane.xlu0 %1731
        %v1733 = vsel %vm1717, %v1382, -inf
        %1734 = vmax.xlane.f32.xlu0 %v1733
        %v1735 = vpop.xlane.xlu0 %1734
        %v1736 = vsel %vm1717, %v1544, -inf
        %1737 = vmax.xlane.f32.xlu0 %v1736
        %v1738 = vpop.xlane.xlu0 %1737
        %v1739 = vsel %vm1717, %v1706, -inf
        %1740 = vmax.xlane.f32.xlu0 %v1739
        %v1741 = vpop.xlane.xlu0 %1740
        %v1742 = vmax.f32 %v1709, %v1720
        %v1743 = vmax.f32 %v1710, %v1723
        %v1744 = vmax.f32 %v1711, %v1726
        %v1745 = vmax.f32 %v1712, %v1729
        %v1746 = vmax.f32 %v1713, %v1732
        %v1747 = vmax.f32 %v1714, %v1735
        %v1748 = vmax.f32 %v1715, %v1738
        %v1749 = vmax.f32 %v1716, %v1741
        %v1750 = vsub.f32 %v1709, %v1742
        %v1751 = vsub.f32 %v1710, %v1743
        %v1752 = vsub.f32 %v1711, %v1744
        %v1753 = vsub.f32 %v1712, %v1745
        %v1754 = vsub.f32 %v1713, %v1746
        %v1755 = vsub.f32 %v1714, %v1747
        %v1756 = vsub.f32 %v1715, %v1748
        %v1757 = vsub.f32 %v1716, %v1749
        %v1758 = vmul.f32 %v1750, 1.442695
        %v1759 = vpow.pop %v1758
        %v1760 = vmul.f32 %v1751, 1.442695
        %v1761 = vpow.pop %v1760
        %v1762 = vmul.f32 %v1752, 1.442695
        %v1763 = vpow.pop %v1762
        %v1764 = vmul.f32 %v1753, 1.442695
        %v1765 = vpow.pop %v1764
        %v1766 = vmul.f32 %v1754, 1.442695
        %v1767 = vpow.pop %v1766
        %v1768 = vmul.f32 %v1755, 1.442695
        %v1769 = vpow.pop %v1768
        %v1770 = vmul.f32 %v1756, 1.442695
        %v1771 = vpow.pop %v1770
        %v1772 = vmul.f32 %v1757, 1.442695
        %v1773 = vpow.pop %v1772
        %1775 = vset.pattern.permute.xlu0 0
        %1776 = vperm.xlu0 %1775, %v1742
        %v1777 = vpop.permute.xlu0 %1776
        %v1779 = vperm.slane %v1777, 0
        %1781 = vset.pattern.permute.xlu0 0
        %1782 = vperm.xlu0 %1781, %v1743
        %v1783 = vpop.permute.xlu0 %1782
        %v1785 = vperm.slane %v1783, 0
        %1787 = vset.pattern.permute.xlu0 0
        %1788 = vperm.xlu0 %1787, %v1744
        %v1789 = vpop.permute.xlu0 %1788
        %v1791 = vperm.slane %v1789, 0
        %1793 = vset.pattern.permute.xlu0 0
        %1794 = vperm.xlu0 %1793, %v1745
        %v1795 = vpop.permute.xlu0 %1794
        %v1797 = vperm.slane %v1795, 0
        %1799 = vset.pattern.permute.xlu0 0
        %1800 = vperm.xlu0 %1799, %v1746
        %v1801 = vpop.permute.xlu0 %1800
        %v1803 = vperm.slane %v1801, 0
        %1805 = vset.pattern.permute.xlu0 0
        %1806 = vperm.xlu0 %1805, %v1747
        %v1807 = vpop.permute.xlu0 %1806
        %v1809 = vperm.slane %v1807, 0
        %1811 = vset.pattern.permute.xlu0 0
        %1812 = vperm.xlu0 %1811, %v1748
        %v1813 = vpop.permute.xlu0 %1812
        %v1815 = vperm.slane %v1813, 0
        %1817 = vset.pattern.permute.xlu0 0
        %1818 = vperm.xlu0 %1817, %v1749
        %v1819 = vpop.permute.xlu0 %1818
        %v1821 = vperm.slane %v1819, 0
        %v1822 = vsub.f32 %v572, %v1779
        %v1823 = vsub.f32 %v734, %v1785
        %v1824 = vsub.f32 %v896, %v1791
        %v1825 = vsub.f32 %v1058, %v1797
        %v1826 = vsub.f32 %v1220, %v1803
        %v1827 = vsub.f32 %v1382, %v1809
        %v1828 = vsub.f32 %v1544, %v1815
        %v1829 = vsub.f32 %v1706, %v1821
        %v1830 = vmul.f32 %v1822, 1.442695
        %v1831 = vpow.pop %v1830
        %v1832 = vmul.f32 %v1823, 1.442695
        %v1833 = vpow.pop %v1832
        %v1834 = vmul.f32 %v1824, 1.442695
        %v1835 = vpow.pop %v1834
        %v1836 = vmul.f32 %v1825, 1.442695
        %v1837 = vpow.pop %v1836
        %v1838 = vmul.f32 %v1826, 1.442695
        %v1839 = vpow.pop %v1838
        %v1840 = vmul.f32 %v1827, 1.442695
        %v1841 = vpow.pop %v1840
        %v1842 = vmul.f32 %v1828, 1.442695
        %v1843 = vpow.pop %v1842
        %v1844 = vmul.f32 %v1829, 1.442695
        %v1845 = vpow.pop %v1844
        %v1846 = vld [vmem:[#allocation3] sm:$0x1]
        %v1847 = vld [vmem:[#allocation3 + $0x1] sm:$0x1]
        %v1848 = vld [vmem:[#allocation3 + $0x2] sm:$0x1]
        %v1849 = vld [vmem:[#allocation3 + $0x3] sm:$0x1]
        %v1850 = vld [vmem:[#allocation3 + $0x4] sm:$0x1]
        %v1851 = vld [vmem:[#allocation3 + $0x5] sm:$0x1]
        %v1852 = vld [vmem:[#allocation3 + $0x6] sm:$0x1]
        %v1853 = vld [vmem:[#allocation3 + $0x7] sm:$0x1]
        %v1854 = vmul.f32 %v1759, %v1846
        %v1855 = vmul.f32 %v1761, %v1847
        %v1856 = vmul.f32 %v1763, %v1848
        %v1857 = vmul.f32 %v1765, %v1849
        %v1858 = vmul.f32 %v1767, %v1850
        %v1859 = vmul.f32 %v1769, %v1851
        %v1860 = vmul.f32 %v1771, %v1852
        %v1861 = vmul.f32 %v1773, %v1853
        %v1862 = vsel %vm1717, %v1831, 0.0
        %1863 = vadd.xlane.f32.xlu0 %v1862
        %v1864 = vpop.xlane.xlu0 %1863
        %v1865 = vsel %vm1717, %v1833, 0.0
        %1866 = vadd.xlane.f32.xlu0 %v1865
        %v1867 = vpop.xlane.xlu0 %1866
        %v1868 = vsel %vm1717, %v1835, 0.0
        %1869 = vadd.xlane.f32.xlu0 %v1868
        %v1870 = vpop.xlane.xlu0 %1869
        %v1871 = vsel %vm1717, %v1837, 0.0
        %1872 = vadd.xlane.f32.xlu0 %v1871
        %v1873 = vpop.xlane.xlu0 %1872
        %v1874 = vsel %vm1717, %v1839, 0.0
        %1875 = vadd.xlane.f32.xlu0 %v1874
        %v1876 = vpop.xlane.xlu0 %1875
        %v1877 = vsel %vm1717, %v1841, 0.0
        %1878 = vadd.xlane.f32.xlu0 %v1877
        %v1879 = vpop.xlane.xlu0 %1878
        %v1880 = vsel %vm1717, %v1843, 0.0
        %1881 = vadd.xlane.f32.xlu0 %v1880
        %v1882 = vpop.xlane.xlu0 %1881
        %v1883 = vsel %vm1717, %v1845, 0.0
        %1884 = vadd.xlane.f32.xlu0 %v1883
        %v1885 = vpop.xlane.xlu0 %1884
        %v1886 = vadd.f32 %v1854, %v1864
        %v1887 = vadd.f32 %v1855, %v1867
        %v1888 = vadd.f32 %v1856, %v1870
        %v1889 = vadd.f32 %v1857, %v1873
        %v1890 = vadd.f32 %v1858, %v1876
        %v1891 = vadd.f32 %v1859, %v1879
        %v1892 = vadd.f32 %v1860, %v1882
        %v1893 = vadd.f32 %v1861, %v1885
        %vm1894 = vcmask 0
        %1895 = vst.msk [vmem:[#allocation3] sm:$0x1] %vm1894, %v1886
        %1896 = vst.msk [vmem:[#allocation3 + $0x1] sm:$0x1] %vm1894, %v1887
        %1897 = vst.msk [vmem:[#allocation3 + $0x2] sm:$0x1] %vm1894, %v1888
        %1898 = vst.msk [vmem:[#allocation3 + $0x3] sm:$0x1] %vm1894, %v1889
        %1899 = vst.msk [vmem:[#allocation3 + $0x4] sm:$0x1] %vm1894, %v1890
        %1900 = vst.msk [vmem:[#allocation3 + $0x5] sm:$0x1] %vm1894, %v1891
        %1901 = vst.msk [vmem:[#allocation3 + $0x6] sm:$0x1] %vm1894, %v1892
        %1902 = vst.msk [vmem:[#allocation3 + $0x7] sm:$0x1] %vm1894, %v1893
        %v1903 = vld [vmem:[#allocation4] sm:$0xff]
        %v1904 = vld [vmem:[#allocation4 + $0x8] sm:$0xff]
        %v1905 = vld [vmem:[#allocation4 + $0x10] sm:$0xff]
        %v1906 = vld [vmem:[#allocation4 + $0x18] sm:$0xff]
        %v1907 = vld [vmem:[#allocation4 + $0x20] sm:$0xff]
        %v1908 = vld [vmem:[#allocation4 + $0x28] sm:$0xff]
        %v1909 = vld [vmem:[#allocation4 + $0x30] sm:$0xff]
        %v1910 = vld [vmem:[#allocation4 + $0x38] sm:$0xff]
        %1912 = vset.pattern.permute.xlu0 0
        %1913 = vperm.xlu0 %1912, %v1759
        %v1914 = vpop.permute.xlu0 %1913
        %v1916 = vperm.slane %v1914, 0
        %1918 = vset.pattern.permute.xlu0 0
        %1919 = vperm.xlu0 %1918, %v1761
        %v1920 = vpop.permute.xlu0 %1919
        %v1922 = vperm.slane %v1920, 0
        %1924 = vset.pattern.permute.xlu0 0
        %1925 = vperm.xlu0 %1924, %v1763
        %v1926 = vpop.permute.xlu0 %1925
        %v1928 = vperm.slane %v1926, 0
        %1930 = vset.pattern.permute.xlu0 0
        %1931 = vperm.xlu0 %1930, %v1765
        %v1932 = vpop.permute.xlu0 %1931
        %v1934 = vperm.slane %v1932, 0
        %1936 = vset.pattern.permute.xlu0 0
        %1937 = vperm.xlu0 %1936, %v1767
        %v1938 = vpop.permute.xlu0 %1937
        %v1940 = vperm.slane %v1938, 0
        %1942 = vset.pattern.permute.xlu0 0
        %1943 = vperm.xlu0 %1942, %v1769
        %v1944 = vpop.permute.xlu0 %1943
        %v1946 = vperm.slane %v1944, 0
        %1948 = vset.pattern.permute.xlu0 0
        %1949 = vperm.xlu0 %1948, %v1771
        %v1950 = vpop.permute.xlu0 %1949
        %v1952 = vperm.slane %v1950, 0
        %1954 = vset.pattern.permute.xlu0 0
        %1955 = vperm.xlu0 %1954, %v1773
        %v1956 = vpop.permute.xlu0 %1955
        %v1958 = vperm.slane %v1956, 0
        %v1959 = vmul.f32 %v1916, %v1903
        %v1960 = vmul.f32 %v1922, %v1904
        %v1961 = vmul.f32 %v1928, %v1905
        %v1962 = vmul.f32 %v1934, %v1906
        %v1963 = vmul.f32 %v1940, %v1907
        %v1964 = vmul.f32 %v1946, %v1908
        %v1965 = vmul.f32 %v1952, %v1909
        %v1966 = vmul.f32 %v1958, %v1910
        %v1967 = vpack.c.bf16 %v1831, %v1831
        %v1968 = vpack.c.bf16 %v1833, %v1833
        %v1969 = vpack.c.bf16 %v1835, %v1835
        %v1970 = vpack.c.bf16 %v1837, %v1837
        %v1971 = vpack.c.bf16 %v1839, %v1839
        %v1972 = vpack.c.bf16 %v1841, %v1841
        %v1973 = vpack.c.bf16 %v1843, %v1843
        %v1974 = vpack.c.bf16 %v1845, %v1845
        %vm1975 = vcmask 130048
        %v1977 = vsel %vm1975, %v1967, 0
        %1979 = vmatpush.bf16.msra.mxu0 0
        %1980 = vmatpush.bf16.msra.mxu0 0
        %1981 = vmatpush.bf16.msra.mxu0 0
        %1982 = vmatpush.bf16.msra.mxu0 0
        %1983 = vmatpush.bf16.msra.mxu0 0
        %1984 = vmatpush.bf16.msra.mxu0 0
        %1985 = vmatpush.bf16.msra.mxu0 0
        %1986 = vmatpush.bf16.msra.mxu0 %v455
        %1987 = vmatmul.bf16.gmra.mxu0 %v1977
        %v1988 = vpop.f32.mrf.mxu0
        %v1989 = vadd.f32 0.0, %v1988
        %v1990 = vpop.f32.mrf.mxu0
        %1991 = vdwg.mxu0
        %1992 = vmatpush.bf16.msra.mxu0 0
        %1993 = vmatpush.bf16.msra.mxu0 0
        %1994 = vmatpush.bf16.msra.mxu0 0
        %1995 = vmatpush.bf16.msra.mxu0 0
        %1996 = vmatpush.bf16.msra.mxu0 0
        %1997 = vmatpush.bf16.msra.mxu0 0
        %1998 = vmatpush.bf16.msra.mxu0 0
        %1999 = vmatpush.bf16.msra.mxu0 %v456
        %2000 = vmatmul.bf16.gmra.mxu0 %v1977
        %v2001 = vpop.f32.mrf.mxu0
        %v2002 = vadd.f32 0.0, %v2001
        %v2003 = vpop.f32.mrf.mxu0
        %2004 = vdwg.mxu0
        %2005 = vmatpush.bf16.msra.mxu0 0
        %2006 = vmatpush.bf16.msra.mxu0 0
        %2007 = vmatpush.bf16.msra.mxu0 0
        %2008 = vmatpush.bf16.msra.mxu0 0
        %2009 = vmatpush.bf16.msra.mxu0 0
        %2010 = vmatpush.bf16.msra.mxu0 0
        %2011 = vmatpush.bf16.msra.mxu0 0
        %2012 = vmatpush.bf16.msra.mxu0 %v457
        %2013 = vmatmul.bf16.gmra.mxu0 %v1977
        %v2014 = vpop.f32.mrf.mxu0
        %v2015 = vadd.f32 0.0, %v2014
        %v2016 = vpop.f32.mrf.mxu0
        %2017 = vdwg.mxu0
        %2018 = vmatpush.bf16.msra.mxu0 0
        %2019 = vmatpush.bf16.msra.mxu0 0
        %2020 = vmatpush.bf16.msra.mxu0 0
        %2021 = vmatpush.bf16.msra.mxu0 0
        %2022 = vmatpush.bf16.msra.mxu0 0
        %2023 = vmatpush.bf16.msra.mxu0 0
        %2024 = vmatpush.bf16.msra.mxu0 0
        %2025 = vmatpush.bf16.msra.mxu0 %v458
        %2026 = vmatmul.bf16.gmra.mxu0 %v1977
        %v2027 = vpop.f32.mrf.mxu0
        %v2028 = vadd.f32 0.0, %v2027
        %v2029 = vpop.f32.mrf.mxu0
        %2030 = vdwg.mxu0
        %2031 = vmatpush.bf16.msra.mxu0 0
        %2032 = vmatpush.bf16.msra.mxu0 0
        %2033 = vmatpush.bf16.msra.mxu0 0
        %2034 = vmatpush.bf16.msra.mxu0 0
        %2035 = vmatpush.bf16.msra.mxu0 0
        %2036 = vmatpush.bf16.msra.mxu0 0
        %2037 = vmatpush.bf16.msra.mxu0 0
        %2038 = vmatpush.bf16.msra.mxu0 %v459
        %2039 = vmatmul.bf16.gmra.mxu0 %v1977
        %v2040 = vpop.f32.mrf.mxu0
        %v2041 = vadd.f32 0.0, %v2040
        %v2042 = vpop.f32.mrf.mxu0
        %2043 = vdwg.mxu0
        %2044 = vmatpush.bf16.msra.mxu0 0
        %2045 = vmatpush.bf16.msra.mxu0 0
        %2046 = vmatpush.bf16.msra.mxu0 0
        %2047 = vmatpush.bf16.msra.mxu0 0
        %2048 = vmatpush.bf16.msra.mxu0 0
        %2049 = vmatpush.bf16.msra.mxu0 0
        %2050 = vmatpush.bf16.msra.mxu0 0
        %2051 = vmatpush.bf16.msra.mxu0 %v460
        %2052 = vmatmul.bf16.gmra.mxu0 %v1977
        %v2053 = vpop.f32.mrf.mxu0
        %v2054 = vadd.f32 0.0, %v2053
        %v2055 = vpop.f32.mrf.mxu0
        %2056 = vdwg.mxu0
        %2057 = vmatpush.bf16.msra.mxu0 0
        %2058 = vmatpush.bf16.msra.mxu0 0
        %2059 = vmatpush.bf16.msra.mxu0 0
        %2060 = vmatpush.bf16.msra.mxu0 0
        %2061 = vmatpush.bf16.msra.mxu0 0
        %2062 = vmatpush.bf16.msra.mxu0 0
        %2063 = vmatpush.bf16.msra.mxu0 0
        %2064 = vmatpush.bf16.msra.mxu0 %v461
        %2065 = vmatmul.bf16.gmra.mxu0 %v1977
        %v2066 = vpop.f32.mrf.mxu0
        %v2067 = vadd.f32 0.0, %v2066
        %v2068 = vpop.f32.mrf.mxu0
        %2069 = vdwg.mxu0
        %2070 = vmatpush.bf16.msra.mxu0 0
        %2071 = vmatpush.bf16.msra.mxu0 0
        %2072 = vmatpush.bf16.msra.mxu0 0
        %2073 = vmatpush.bf16.msra.mxu0 0
        %2074 = vmatpush.bf16.msra.mxu0 0
        %2075 = vmatpush.bf16.msra.mxu0 0
        %2076 = vmatpush.bf16.msra.mxu0 0
        %2077 = vmatpush.bf16.msra.mxu0 %v462
        %2078 = vmatmul.bf16.gmra.mxu0 %v1977
        %v2079 = vpop.f32.mrf.mxu0
        %v2080 = vadd.f32 0.0, %v2079
        %v2081 = vpop.f32.mrf.mxu0
        %2082 = vdwg.mxu0
        %v2084 = vsel %vm1975, %v1968, 0
        %2086 = vmatpush.bf16.msra.mxu0 0
        %2087 = vmatpush.bf16.msra.mxu0 0
        %2088 = vmatpush.bf16.msra.mxu0 0
        %2089 = vmatpush.bf16.msra.mxu0 0
        %2090 = vmatpush.bf16.msra.mxu0 0
        %2091 = vmatpush.bf16.msra.mxu0 0
        %2092 = vmatpush.bf16.msra.mxu0 0
        %2093 = vmatpush.bf16.msra.mxu0 %v617
        %2094 = vmatmul.bf16.gmra.mxu0 %v2084
        %v2095 = vpop.f32.mrf.mxu0
        %v2096 = vadd.f32 0.0, %v2095
        %v2097 = vpop.f32.mrf.mxu0
        %2098 = vdwg.mxu0
        %2099 = vmatpush.bf16.msra.mxu0 0
        %2100 = vmatpush.bf16.msra.mxu0 0
        %2101 = vmatpush.bf16.msra.mxu0 0
        %2102 = vmatpush.bf16.msra.mxu0 0
        %2103 = vmatpush.bf16.msra.mxu0 0
        %2104 = vmatpush.bf16.msra.mxu0 0
        %2105 = vmatpush.bf16.msra.mxu0 0
        %2106 = vmatpush.bf16.msra.mxu0 %v618
        %2107 = vmatmul.bf16.gmra.mxu0 %v2084
        %v2108 = vpop.f32.mrf.mxu0
        %v2109 = vadd.f32 0.0, %v2108
        %v2110 = vpop.f32.mrf.mxu0
        %2111 = vdwg.mxu0
        %2112 = vmatpush.bf16.msra.mxu0 0
        %2113 = vmatpush.bf16.msra.mxu0 0
        %2114 = vmatpush.bf16.msra.mxu0 0
        %2115 = vmatpush.bf16.msra.mxu0 0
        %2116 = vmatpush.bf16.msra.mxu0 0
        %2117 = vmatpush.bf16.msra.mxu0 0
        %2118 = vmatpush.bf16.msra.mxu0 0
        %2119 = vmatpush.bf16.msra.mxu0 %v619
        %2120 = vmatmul.bf16.gmra.mxu0 %v2084
        %v2121 = vpop.f32.mrf.mxu0
        %v2122 = vadd.f32 0.0, %v2121
        %v2123 = vpop.f32.mrf.mxu0
        %2124 = vdwg.mxu0
        %2125 = vmatpush.bf16.msra.mxu0 0
        %2126 = vmatpush.bf16.msra.mxu0 0
        %2127 = vmatpush.bf16.msra.mxu0 0
        %2128 = vmatpush.bf16.msra.mxu0 0
        %2129 = vmatpush.bf16.msra.mxu0 0
        %2130 = vmatpush.bf16.msra.mxu0 0
        %2131 = vmatpush.bf16.msra.mxu0 0
        %2132 = vmatpush.bf16.msra.mxu0 %v620
        %2133 = vmatmul.bf16.gmra.mxu0 %v2084
        %v2134 = vpop.f32.mrf.mxu0
        %v2135 = vadd.f32 0.0, %v2134
        %v2136 = vpop.f32.mrf.mxu0
        %2137 = vdwg.mxu0
        %2138 = vmatpush.bf16.msra.mxu0 0
        %2139 = vmatpush.bf16.msra.mxu0 0
        %2140 = vmatpush.bf16.msra.mxu0 0
        %2141 = vmatpush.bf16.msra.mxu0 0
        %2142 = vmatpush.bf16.msra.mxu0 0
        %2143 = vmatpush.bf16.msra.mxu0 0
        %2144 = vmatpush.bf16.msra.mxu0 0
        %2145 = vmatpush.bf16.msra.mxu0 %v621
        %2146 = vmatmul.bf16.gmra.mxu0 %v2084
        %v2147 = vpop.f32.mrf.mxu0
        %v2148 = vadd.f32 0.0, %v2147
        %v2149 = vpop.f32.mrf.mxu0
        %2150 = vdwg.mxu0
        %2151 = vmatpush.bf16.msra.mxu0 0
        %2152 = vmatpush.bf16.msra.mxu0 0
        %2153 = vmatpush.bf16.msra.mxu0 0
        %2154 = vmatpush.bf16.msra.mxu0 0
        %2155 = vmatpush.bf16.msra.mxu0 0
        %2156 = vmatpush.bf16.msra.mxu0 0
        %2157 = vmatpush.bf16.msra.mxu0 0
        %2158 = vmatpush.bf16.msra.mxu0 %v622
        %2159 = vmatmul.bf16.gmra.mxu0 %v2084
        %v2160 = vpop.f32.mrf.mxu0
        %v2161 = vadd.f32 0.0, %v2160
        %v2162 = vpop.f32.mrf.mxu0
        %2163 = vdwg.mxu0
        %2164 = vmatpush.bf16.msra.mxu0 0
        %2165 = vmatpush.bf16.msra.mxu0 0
        %2166 = vmatpush.bf16.msra.mxu0 0
        %2167 = vmatpush.bf16.msra.mxu0 0
        %2168 = vmatpush.bf16.msra.mxu0 0
        %2169 = vmatpush.bf16.msra.mxu0 0
        %2170 = vmatpush.bf16.msra.mxu0 0
        %2171 = vmatpush.bf16.msra.mxu0 %v623
        %2172 = vmatmul.bf16.gmra.mxu0 %v2084
        %v2173 = vpop.f32.mrf.mxu0
        %v2174 = vadd.f32 0.0, %v2173
        %v2175 = vpop.f32.mrf.mxu0
        %2176 = vdwg.mxu0
        %2177 = vmatpush.bf16.msra.mxu0 0
        %2178 = vmatpush.bf16.msra.mxu0 0
        %2179 = vmatpush.bf16.msra.mxu0 0
        %2180 = vmatpush.bf16.msra.mxu0 0
        %2181 = vmatpush.bf16.msra.mxu0 0
        %2182 = vmatpush.bf16.msra.mxu0 0
        %2183 = vmatpush.bf16.msra.mxu0 0
        %2184 = vmatpush.bf16.msra.mxu0 %v624
        %2185 = vmatmul.bf16.gmra.mxu0 %v2084
        %v2186 = vpop.f32.mrf.mxu0
        %v2187 = vadd.f32 0.0, %v2186
        %v2188 = vpop.f32.mrf.mxu0
        %2189 = vdwg.mxu0
        %v2191 = vsel %vm1975, %v1969, 0
        %2193 = vmatpush.bf16.msra.mxu0 0
        %2194 = vmatpush.bf16.msra.mxu0 0
        %2195 = vmatpush.bf16.msra.mxu0 0
        %2196 = vmatpush.bf16.msra.mxu0 0
        %2197 = vmatpush.bf16.msra.mxu0 0
        %2198 = vmatpush.bf16.msra.mxu0 0
        %2199 = vmatpush.bf16.msra.mxu0 0
        %2200 = vmatpush.bf16.msra.mxu0 %v779
        %2201 = vmatmul.bf16.gmra.mxu0 %v2191
        %v2202 = vpop.f32.mrf.mxu0
        %v2203 = vadd.f32 0.0, %v2202
        %v2204 = vpop.f32.mrf.mxu0
        %2205 = vdwg.mxu0
        %2206 = vmatpush.bf16.msra.mxu0 0
        %2207 = vmatpush.bf16.msra.mxu0 0
        %2208 = vmatpush.bf16.msra.mxu0 0
        %2209 = vmatpush.bf16.msra.mxu0 0
        %2210 = vmatpush.bf16.msra.mxu0 0
        %2211 = vmatpush.bf16.msra.mxu0 0
        %2212 = vmatpush.bf16.msra.mxu0 0
        %2213 = vmatpush.bf16.msra.mxu0 %v780
        %2214 = vmatmul.bf16.gmra.mxu0 %v2191
        %v2215 = vpop.f32.mrf.mxu0
        %v2216 = vadd.f32 0.0, %v2215
        %v2217 = vpop.f32.mrf.mxu0
        %2218 = vdwg.mxu0
        %2219 = vmatpush.bf16.msra.mxu0 0
        %2220 = vmatpush.bf16.msra.mxu0 0
        %2221 = vmatpush.bf16.msra.mxu0 0
        %2222 = vmatpush.bf16.msra.mxu0 0
        %2223 = vmatpush.bf16.msra.mxu0 0
        %2224 = vmatpush.bf16.msra.mxu0 0
        %2225 = vmatpush.bf16.msra.mxu0 0
        %2226 = vmatpush.bf16.msra.mxu0 %v781
        %2227 = vmatmul.bf16.gmra.mxu0 %v2191
        %v2228 = vpop.f32.mrf.mxu0
        %v2229 = vadd.f32 0.0, %v2228
        %v2230 = vpop.f32.mrf.mxu0
        %2231 = vdwg.mxu0
        %2232 = vmatpush.bf16.msra.mxu0 0
        %2233 = vmatpush.bf16.msra.mxu0 0
        %2234 = vmatpush.bf16.msra.mxu0 0
        %2235 = vmatpush.bf16.msra.mxu0 0
        %2236 = vmatpush.bf16.msra.mxu0 0
        %2237 = vmatpush.bf16.msra.mxu0 0
        %2238 = vmatpush.bf16.msra.mxu0 0
        %2239 = vmatpush.bf16.msra.mxu0 %v782
        %2240 = vmatmul.bf16.gmra.mxu0 %v2191
        %v2241 = vpop.f32.mrf.mxu0
        %v2242 = vadd.f32 0.0, %v2241
        %v2243 = vpop.f32.mrf.mxu0
        %2244 = vdwg.mxu0
        %2245 = vmatpush.bf16.msra.mxu0 0
        %2246 = vmatpush.bf16.msra.mxu0 0
        %2247 = vmatpush.bf16.msra.mxu0 0
        %2248 = vmatpush.bf16.msra.mxu0 0
        %2249 = vmatpush.bf16.msra.mxu0 0
        %2250 = vmatpush.bf16.msra.mxu0 0
        %2251 = vmatpush.bf16.msra.mxu0 0
        %2252 = vmatpush.bf16.msra.mxu0 %v783
        %2253 = vmatmul.bf16.gmra.mxu0 %v2191
        %v2254 = vpop.f32.mrf.mxu0
        %v2255 = vadd.f32 0.0, %v2254
        %v2256 = vpop.f32.mrf.mxu0
        %2257 = vdwg.mxu0
        %2258 = vmatpush.bf16.msra.mxu0 0
        %2259 = vmatpush.bf16.msra.mxu0 0
        %2260 = vmatpush.bf16.msra.mxu0 0
        %2261 = vmatpush.bf16.msra.mxu0 0
        %2262 = vmatpush.bf16.msra.mxu0 0
        %2263 = vmatpush.bf16.msra.mxu0 0
        %2264 = vmatpush.bf16.msra.mxu0 0
        %2265 = vmatpush.bf16.msra.mxu0 %v784
        %2266 = vmatmul.bf16.gmra.mxu0 %v2191
        %v2267 = vpop.f32.mrf.mxu0
        %v2268 = vadd.f32 0.0, %v2267
        %v2269 = vpop.f32.mrf.mxu0
        %2270 = vdwg.mxu0
        %2271 = vmatpush.bf16.msra.mxu0 0
        %2272 = vmatpush.bf16.msra.mxu0 0
        %2273 = vmatpush.bf16.msra.mxu0 0
        %2274 = vmatpush.bf16.msra.mxu0 0
        %2275 = vmatpush.bf16.msra.mxu0 0
        %2276 = vmatpush.bf16.msra.mxu0 0
        %2277 = vmatpush.bf16.msra.mxu0 0
        %2278 = vmatpush.bf16.msra.mxu0 %v785
        %2279 = vmatmul.bf16.gmra.mxu0 %v2191
        %v2280 = vpop.f32.mrf.mxu0
        %v2281 = vadd.f32 0.0, %v2280
        %v2282 = vpop.f32.mrf.mxu0
        %2283 = vdwg.mxu0
        %2284 = vmatpush.bf16.msra.mxu0 0
        %2285 = vmatpush.bf16.msra.mxu0 0
        %2286 = vmatpush.bf16.msra.mxu0 0
        %2287 = vmatpush.bf16.msra.mxu0 0
        %2288 = vmatpush.bf16.msra.mxu0 0
        %2289 = vmatpush.bf16.msra.mxu0 0
        %2290 = vmatpush.bf16.msra.mxu0 0
        %2291 = vmatpush.bf16.msra.mxu0 %v786
        %2292 = vmatmul.bf16.gmra.mxu0 %v2191
        %v2293 = vpop.f32.mrf.mxu0
        %v2294 = vadd.f32 0.0, %v2293
        %v2295 = vpop.f32.mrf.mxu0
        %2296 = vdwg.mxu0
        %v2298 = vsel %vm1975, %v1970, 0
        %2300 = vmatpush.bf16.msra.mxu0 0
        %2301 = vmatpush.bf16.msra.mxu0 0
        %2302 = vmatpush.bf16.msra.mxu0 0
        %2303 = vmatpush.bf16.msra.mxu0 0
        %2304 = vmatpush.bf16.msra.mxu0 0
        %2305 = vmatpush.bf16.msra.mxu0 0
        %2306 = vmatpush.bf16.msra.mxu0 0
        %2307 = vmatpush.bf16.msra.mxu0 %v941
        %2308 = vmatmul.bf16.gmra.mxu0 %v2298
        %v2309 = vpop.f32.mrf.mxu0
        %v2310 = vadd.f32 0.0, %v2309
        %v2311 = vpop.f32.mrf.mxu0
        %2312 = vdwg.mxu0
        %2313 = vmatpush.bf16.msra.mxu0 0
        %2314 = vmatpush.bf16.msra.mxu0 0
        %2315 = vmatpush.bf16.msra.mxu0 0
        %2316 = vmatpush.bf16.msra.mxu0 0
        %2317 = vmatpush.bf16.msra.mxu0 0
        %2318 = vmatpush.bf16.msra.mxu0 0
        %2319 = vmatpush.bf16.msra.mxu0 0
        %2320 = vmatpush.bf16.msra.mxu0 %v942
        %2321 = vmatmul.bf16.gmra.mxu0 %v2298
        %v2322 = vpop.f32.mrf.mxu0
        %v2323 = vadd.f32 0.0, %v2322
        %v2324 = vpop.f32.mrf.mxu0
        %2325 = vdwg.mxu0
        %2326 = vmatpush.bf16.msra.mxu0 0
        %2327 = vmatpush.bf16.msra.mxu0 0
        %2328 = vmatpush.bf16.msra.mxu0 0
        %2329 = vmatpush.bf16.msra.mxu0 0
        %2330 = vmatpush.bf16.msra.mxu0 0
        %2331 = vmatpush.bf16.msra.mxu0 0
        %2332 = vmatpush.bf16.msra.mxu0 0
        %2333 = vmatpush.bf16.msra.mxu0 %v943
        %2334 = vmatmul.bf16.gmra.mxu0 %v2298
        %v2335 = vpop.f32.mrf.mxu0
        %v2336 = vadd.f32 0.0, %v2335
        %v2337 = vpop.f32.mrf.mxu0
        %2338 = vdwg.mxu0
        %2339 = vmatpush.bf16.msra.mxu0 0
        %2340 = vmatpush.bf16.msra.mxu0 0
        %2341 = vmatpush.bf16.msra.mxu0 0
        %2342 = vmatpush.bf16.msra.mxu0 0
        %2343 = vmatpush.bf16.msra.mxu0 0
        %2344 = vmatpush.bf16.msra.mxu0 0
        %2345 = vmatpush.bf16.msra.mxu0 0
        %2346 = vmatpush.bf16.msra.mxu0 %v944
        %2347 = vmatmul.bf16.gmra.mxu0 %v2298
        %v2348 = vpop.f32.mrf.mxu0
        %v2349 = vadd.f32 0.0, %v2348
        %v2350 = vpop.f32.mrf.mxu0
        %2351 = vdwg.mxu0
        %2352 = vmatpush.bf16.msra.mxu0 0
        %2353 = vmatpush.bf16.msra.mxu0 0
        %2354 = vmatpush.bf16.msra.mxu0 0
        %2355 = vmatpush.bf16.msra.mxu0 0
        %2356 = vmatpush.bf16.msra.mxu0 0
        %2357 = vmatpush.bf16.msra.mxu0 0
        %2358 = vmatpush.bf16.msra.mxu0 0
        %2359 = vmatpush.bf16.msra.mxu0 %v945
        %2360 = vmatmul.bf16.gmra.mxu0 %v2298
        %v2361 = vpop.f32.mrf.mxu0
        %v2362 = vadd.f32 0.0, %v2361
        %v2363 = vpop.f32.mrf.mxu0
        %2364 = vdwg.mxu0
        %2365 = vmatpush.bf16.msra.mxu0 0
        %2366 = vmatpush.bf16.msra.mxu0 0
        %2367 = vmatpush.bf16.msra.mxu0 0
        %2368 = vmatpush.bf16.msra.mxu0 0
        %2369 = vmatpush.bf16.msra.mxu0 0
        %2370 = vmatpush.bf16.msra.mxu0 0
        %2371 = vmatpush.bf16.msra.mxu0 0
        %2372 = vmatpush.bf16.msra.mxu0 %v946
        %2373 = vmatmul.bf16.gmra.mxu0 %v2298
        %v2374 = vpop.f32.mrf.mxu0
        %v2375 = vadd.f32 0.0, %v2374
        %v2376 = vpop.f32.mrf.mxu0
        %2377 = vdwg.mxu0
        %2378 = vmatpush.bf16.msra.mxu0 0
        %2379 = vmatpush.bf16.msra.mxu0 0
        %2380 = vmatpush.bf16.msra.mxu0 0
        %2381 = vmatpush.bf16.msra.mxu0 0
        %2382 = vmatpush.bf16.msra.mxu0 0
        %2383 = vmatpush.bf16.msra.mxu0 0
        %2384 = vmatpush.bf16.msra.mxu0 0
        %2385 = vmatpush.bf16.msra.mxu0 %v947
        %2386 = vmatmul.bf16.gmra.mxu0 %v2298
        %v2387 = vpop.f32.mrf.mxu0
        %v2388 = vadd.f32 0.0, %v2387
        %v2389 = vpop.f32.mrf.mxu0
        %2390 = vdwg.mxu0
        %2391 = vmatpush.bf16.msra.mxu0 0
        %2392 = vmatpush.bf16.msra.mxu0 0
        %2393 = vmatpush.bf16.msra.mxu0 0
        %2394 = vmatpush.bf16.msra.mxu0 0
        %2395 = vmatpush.bf16.msra.mxu0 0
        %2396 = vmatpush.bf16.msra.mxu0 0
        %2397 = vmatpush.bf16.msra.mxu0 0
        %2398 = vmatpush.bf16.msra.mxu0 %v948
        %2399 = vmatmul.bf16.gmra.mxu0 %v2298
        %v2400 = vpop.f32.mrf.mxu0
        %v2401 = vadd.f32 0.0, %v2400
        %v2402 = vpop.f32.mrf.mxu0
        %2403 = vdwg.mxu0
        %v2405 = vsel %vm1975, %v1971, 0
        %2407 = vmatpush.bf16.msra.mxu0 0
        %2408 = vmatpush.bf16.msra.mxu0 0
        %2409 = vmatpush.bf16.msra.mxu0 0
        %2410 = vmatpush.bf16.msra.mxu0 0
        %2411 = vmatpush.bf16.msra.mxu0 0
        %2412 = vmatpush.bf16.msra.mxu0 0
        %2413 = vmatpush.bf16.msra.mxu0 0
        %2414 = vmatpush.bf16.msra.mxu0 %v1103
        %2415 = vmatmul.bf16.gmra.mxu0 %v2405
        %v2416 = vpop.f32.mrf.mxu0
        %v2417 = vadd.f32 0.0, %v2416
        %v2418 = vpop.f32.mrf.mxu0
        %2419 = vdwg.mxu0
        %2420 = vmatpush.bf16.msra.mxu0 0
        %2421 = vmatpush.bf16.msra.mxu0 0
        %2422 = vmatpush.bf16.msra.mxu0 0
        %2423 = vmatpush.bf16.msra.mxu0 0
        %2424 = vmatpush.bf16.msra.mxu0 0
        %2425 = vmatpush.bf16.msra.mxu0 0
        %2426 = vmatpush.bf16.msra.mxu0 0
        %2427 = vmatpush.bf16.msra.mxu0 %v1104
        %2428 = vmatmul.bf16.gmra.mxu0 %v2405
        %v2429 = vpop.f32.mrf.mxu0
        %v2430 = vadd.f32 0.0, %v2429
        %v2431 = vpop.f32.mrf.mxu0
        %2432 = vdwg.mxu0
        %2433 = vmatpush.bf16.msra.mxu0 0
        %2434 = vmatpush.bf16.msra.mxu0 0
        %2435 = vmatpush.bf16.msra.mxu0 0
        %2436 = vmatpush.bf16.msra.mxu0 0
        %2437 = vmatpush.bf16.msra.mxu0 0
        %2438 = vmatpush.bf16.msra.mxu0 0
        %2439 = vmatpush.bf16.msra.mxu0 0
        %2440 = vmatpush.bf16.msra.mxu0 %v1105
        %2441 = vmatmul.bf16.gmra.mxu0 %v2405
        %v2442 = vpop.f32.mrf.mxu0
        %v2443 = vadd.f32 0.0, %v2442
        %v2444 = vpop.f32.mrf.mxu0
        %2445 = vdwg.mxu0
        %2446 = vmatpush.bf16.msra.mxu0 0
        %2447 = vmatpush.bf16.msra.mxu0 0
        %2448 = vmatpush.bf16.msra.mxu0 0
        %2449 = vmatpush.bf16.msra.mxu0 0
        %2450 = vmatpush.bf16.msra.mxu0 0
        %2451 = vmatpush.bf16.msra.mxu0 0
        %2452 = vmatpush.bf16.msra.mxu0 0
        %2453 = vmatpush.bf16.msra.mxu0 %v1106
        %2454 = vmatmul.bf16.gmra.mxu0 %v2405
        %v2455 = vpop.f32.mrf.mxu0
        %v2456 = vadd.f32 0.0, %v2455
        %v2457 = vpop.f32.mrf.mxu0
        %2458 = vdwg.mxu0
        %2459 = vmatpush.bf16.msra.mxu0 0
        %2460 = vmatpush.bf16.msra.mxu0 0
        %2461 = vmatpush.bf16.msra.mxu0 0
        %2462 = vmatpush.bf16.msra.mxu0 0
        %2463 = vmatpush.bf16.msra.mxu0 0
        %2464 = vmatpush.bf16.msra.mxu0 0
        %2465 = vmatpush.bf16.msra.mxu0 0
        %2466 = vmatpush.bf16.msra.mxu0 %v1107
        %2467 = vmatmul.bf16.gmra.mxu0 %v2405
        %v2468 = vpop.f32.mrf.mxu0
        %v2469 = vadd.f32 0.0, %v2468
        %v2470 = vpop.f32.mrf.mxu0
        %2471 = vdwg.mxu0
        %2472 = vmatpush.bf16.msra.mxu0 0
        %2473 = vmatpush.bf16.msra.mxu0 0
        %2474 = vmatpush.bf16.msra.mxu0 0
        %2475 = vmatpush.bf16.msra.mxu0 0
        %2476 = vmatpush.bf16.msra.mxu0 0
        %2477 = vmatpush.bf16.msra.mxu0 0
        %2478 = vmatpush.bf16.msra.mxu0 0
        %2479 = vmatpush.bf16.msra.mxu0 %v1108
        %2480 = vmatmul.bf16.gmra.mxu0 %v2405
        %v2481 = vpop.f32.mrf.mxu0
        %v2482 = vadd.f32 0.0, %v2481
        %v2483 = vpop.f32.mrf.mxu0
        %2484 = vdwg.mxu0
        %2485 = vmatpush.bf16.msra.mxu0 0
        %2486 = vmatpush.bf16.msra.mxu0 0
        %2487 = vmatpush.bf16.msra.mxu0 0
        %2488 = vmatpush.bf16.msra.mxu0 0
        %2489 = vmatpush.bf16.msra.mxu0 0
        %2490 = vmatpush.bf16.msra.mxu0 0
        %2491 = vmatpush.bf16.msra.mxu0 0
        %2492 = vmatpush.bf16.msra.mxu0 %v1109
        %2493 = vmatmul.bf16.gmra.mxu0 %v2405
        %v2494 = vpop.f32.mrf.mxu0
        %v2495 = vadd.f32 0.0, %v2494
        %v2496 = vpop.f32.mrf.mxu0
        %2497 = vdwg.mxu0
        %2498 = vmatpush.bf16.msra.mxu0 0
        %2499 = vmatpush.bf16.msra.mxu0 0
        %2500 = vmatpush.bf16.msra.mxu0 0
        %2501 = vmatpush.bf16.msra.mxu0 0
        %2502 = vmatpush.bf16.msra.mxu0 0
        %2503 = vmatpush.bf16.msra.mxu0 0
        %2504 = vmatpush.bf16.msra.mxu0 0
        %2505 = vmatpush.bf16.msra.mxu0 %v1110
        %2506 = vmatmul.bf16.gmra.mxu0 %v2405
        %v2507 = vpop.f32.mrf.mxu0
        %v2508 = vadd.f32 0.0, %v2507
        %v2509 = vpop.f32.mrf.mxu0
        %2510 = vdwg.mxu0
        %v2512 = vsel %vm1975, %v1972, 0
        %2514 = vmatpush.bf16.msra.mxu0 0
        %2515 = vmatpush.bf16.msra.mxu0 0
        %2516 = vmatpush.bf16.msra.mxu0 0
        %2517 = vmatpush.bf16.msra.mxu0 0
        %2518 = vmatpush.bf16.msra.mxu0 0
        %2519 = vmatpush.bf16.msra.mxu0 0
        %2520 = vmatpush.bf16.msra.mxu0 0
        %2521 = vmatpush.bf16.msra.mxu0 %v1265
        %2522 = vmatmul.bf16.gmra.mxu0 %v2512
        %v2523 = vpop.f32.mrf.mxu0
        %v2524 = vadd.f32 0.0, %v2523
        %v2525 = vpop.f32.mrf.mxu0
        %2526 = vdwg.mxu0
        %2527 = vmatpush.bf16.msra.mxu0 0
        %2528 = vmatpush.bf16.msra.mxu0 0
        %2529 = vmatpush.bf16.msra.mxu0 0
        %2530 = vmatpush.bf16.msra.mxu0 0
        %2531 = vmatpush.bf16.msra.mxu0 0
        %2532 = vmatpush.bf16.msra.mxu0 0
        %2533 = vmatpush.bf16.msra.mxu0 0
        %2534 = vmatpush.bf16.msra.mxu0 %v1266
        %2535 = vmatmul.bf16.gmra.mxu0 %v2512
        %v2536 = vpop.f32.mrf.mxu0
        %v2537 = vadd.f32 0.0, %v2536
        %v2538 = vpop.f32.mrf.mxu0
        %2539 = vdwg.mxu0
        %2540 = vmatpush.bf16.msra.mxu0 0
        %2541 = vmatpush.bf16.msra.mxu0 0
        %2542 = vmatpush.bf16.msra.mxu0 0
        %2543 = vmatpush.bf16.msra.mxu0 0
        %2544 = vmatpush.bf16.msra.mxu0 0
        %2545 = vmatpush.bf16.msra.mxu0 0
        %2546 = vmatpush.bf16.msra.mxu0 0
        %2547 = vmatpush.bf16.msra.mxu0 %v1267
        %2548 = vmatmul.bf16.gmra.mxu0 %v2512
        %v2549 = vpop.f32.mrf.mxu0
        %v2550 = vadd.f32 0.0, %v2549
        %v2551 = vpop.f32.mrf.mxu0
        %2552 = vdwg.mxu0
        %2553 = vmatpush.bf16.msra.mxu0 0
        %2554 = vmatpush.bf16.msra.mxu0 0
        %2555 = vmatpush.bf16.msra.mxu0 0
        %2556 = vmatpush.bf16.msra.mxu0 0
        %2557 = vmatpush.bf16.msra.mxu0 0
        %2558 = vmatpush.bf16.msra.mxu0 0
        %2559 = vmatpush.bf16.msra.mxu0 0
        %2560 = vmatpush.bf16.msra.mxu0 %v1268
        %2561 = vmatmul.bf16.gmra.mxu0 %v2512
        %v2562 = vpop.f32.mrf.mxu0
        %v2563 = vadd.f32 0.0, %v2562
        %v2564 = vpop.f32.mrf.mxu0
        %2565 = vdwg.mxu0
        %2566 = vmatpush.bf16.msra.mxu0 0
        %2567 = vmatpush.bf16.msra.mxu0 0
        %2568 = vmatpush.bf16.msra.mxu0 0
        %2569 = vmatpush.bf16.msra.mxu0 0
        %2570 = vmatpush.bf16.msra.mxu0 0
        %2571 = vmatpush.bf16.msra.mxu0 0
        %2572 = vmatpush.bf16.msra.mxu0 0
        %2573 = vmatpush.bf16.msra.mxu0 %v1269
        %2574 = vmatmul.bf16.gmra.mxu0 %v2512
        %v2575 = vpop.f32.mrf.mxu0
        %v2576 = vadd.f32 0.0, %v2575
        %v2577 = vpop.f32.mrf.mxu0
        %2578 = vdwg.mxu0
        %2579 = vmatpush.bf16.msra.mxu0 0
        %2580 = vmatpush.bf16.msra.mxu0 0
        %2581 = vmatpush.bf16.msra.mxu0 0
        %2582 = vmatpush.bf16.msra.mxu0 0
        %2583 = vmatpush.bf16.msra.mxu0 0
        %2584 = vmatpush.bf16.msra.mxu0 0
        %2585 = vmatpush.bf16.msra.mxu0 0
        %2586 = vmatpush.bf16.msra.mxu0 %v1270
        %2587 = vmatmul.bf16.gmra.mxu0 %v2512
        %v2588 = vpop.f32.mrf.mxu0
        %v2589 = vadd.f32 0.0, %v2588
        %v2590 = vpop.f32.mrf.mxu0
        %2591 = vdwg.mxu0
        %2592 = vmatpush.bf16.msra.mxu0 0
        %2593 = vmatpush.bf16.msra.mxu0 0
        %2594 = vmatpush.bf16.msra.mxu0 0
        %2595 = vmatpush.bf16.msra.mxu0 0
        %2596 = vmatpush.bf16.msra.mxu0 0
        %2597 = vmatpush.bf16.msra.mxu0 0
        %2598 = vmatpush.bf16.msra.mxu0 0
        %2599 = vmatpush.bf16.msra.mxu0 %v1271
        %2600 = vmatmul.bf16.gmra.mxu0 %v2512
        %v2601 = vpop.f32.mrf.mxu0
        %v2602 = vadd.f32 0.0, %v2601
        %v2603 = vpop.f32.mrf.mxu0
        %2604 = vdwg.mxu0
        %2605 = vmatpush.bf16.msra.mxu0 0
        %2606 = vmatpush.bf16.msra.mxu0 0
        %2607 = vmatpush.bf16.msra.mxu0 0
        %2608 = vmatpush.bf16.msra.mxu0 0
        %2609 = vmatpush.bf16.msra.mxu0 0
        %2610 = vmatpush.bf16.msra.mxu0 0
        %2611 = vmatpush.bf16.msra.mxu0 0
        %2612 = vmatpush.bf16.msra.mxu0 %v1272
        %2613 = vmatmul.bf16.gmra.mxu0 %v2512
        %v2614 = vpop.f32.mrf.mxu0
        %v2615 = vadd.f32 0.0, %v2614
        %v2616 = vpop.f32.mrf.mxu0
        %2617 = vdwg.mxu0
        %v2619 = vsel %vm1975, %v1973, 0
        %2621 = vmatpush.bf16.msra.mxu0 0
        %2622 = vmatpush.bf16.msra.mxu0 0
        %2623 = vmatpush.bf16.msra.mxu0 0
        %2624 = vmatpush.bf16.msra.mxu0 0
        %2625 = vmatpush.bf16.msra.mxu0 0
        %2626 = vmatpush.bf16.msra.mxu0 0
        %2627 = vmatpush.bf16.msra.mxu0 0
        %2628 = vmatpush.bf16.msra.mxu0 %v1427
        %2629 = vmatmul.bf16.gmra.mxu0 %v2619
        %v2630 = vpop.f32.mrf.mxu0
        %v2631 = vadd.f32 0.0, %v2630
        %v2632 = vpop.f32.mrf.mxu0
        %2633 = vdwg.mxu0
        %2634 = vmatpush.bf16.msra.mxu0 0
        %2635 = vmatpush.bf16.msra.mxu0 0
        %2636 = vmatpush.bf16.msra.mxu0 0
        %2637 = vmatpush.bf16.msra.mxu0 0
        %2638 = vmatpush.bf16.msra.mxu0 0
        %2639 = vmatpush.bf16.msra.mxu0 0
        %2640 = vmatpush.bf16.msra.mxu0 0
        %2641 = vmatpush.bf16.msra.mxu0 %v1428
        %2642 = vmatmul.bf16.gmra.mxu0 %v2619
        %v2643 = vpop.f32.mrf.mxu0
        %v2644 = vadd.f32 0.0, %v2643
        %v2645 = vpop.f32.mrf.mxu0
        %2646 = vdwg.mxu0
        %2647 = vmatpush.bf16.msra.mxu0 0
        %2648 = vmatpush.bf16.msra.mxu0 0
        %2649 = vmatpush.bf16.msra.mxu0 0
        %2650 = vmatpush.bf16.msra.mxu0 0
        %2651 = vmatpush.bf16.msra.mxu0 0
        %2652 = vmatpush.bf16.msra.mxu0 0
        %2653 = vmatpush.bf16.msra.mxu0 0
        %2654 = vmatpush.bf16.msra.mxu0 %v1429
        %2655 = vmatmul.bf16.gmra.mxu0 %v2619
        %v2656 = vpop.f32.mrf.mxu0
        %v2657 = vadd.f32 0.0, %v2656
        %v2658 = vpop.f32.mrf.mxu0
        %2659 = vdwg.mxu0
        %2660 = vmatpush.bf16.msra.mxu0 0
        %2661 = vmatpush.bf16.msra.mxu0 0
        %2662 = vmatpush.bf16.msra.mxu0 0
        %2663 = vmatpush.bf16.msra.mxu0 0
        %2664 = vmatpush.bf16.msra.mxu0 0
        %2665 = vmatpush.bf16.msra.mxu0 0
        %2666 = vmatpush.bf16.msra.mxu0 0
        %2667 = vmatpush.bf16.msra.mxu0 %v1430
        %2668 = vmatmul.bf16.gmra.mxu0 %v2619
        %v2669 = vpop.f32.mrf.mxu0
        %v2670 = vadd.f32 0.0, %v2669
        %v2671 = vpop.f32.mrf.mxu0
        %2672 = vdwg.mxu0
        %2673 = vmatpush.bf16.msra.mxu0 0
        %2674 = vmatpush.bf16.msra.mxu0 0
        %2675 = vmatpush.bf16.msra.mxu0 0
        %2676 = vmatpush.bf16.msra.mxu0 0
        %2677 = vmatpush.bf16.msra.mxu0 0
        %2678 = vmatpush.bf16.msra.mxu0 0
        %2679 = vmatpush.bf16.msra.mxu0 0
        %2680 = vmatpush.bf16.msra.mxu0 %v1431
        %2681 = vmatmul.bf16.gmra.mxu0 %v2619
        %v2682 = vpop.f32.mrf.mxu0
        %v2683 = vadd.f32 0.0, %v2682
        %v2684 = vpop.f32.mrf.mxu0
        %2685 = vdwg.mxu0
        %2686 = vmatpush.bf16.msra.mxu0 0
        %2687 = vmatpush.bf16.msra.mxu0 0
        %2688 = vmatpush.bf16.msra.mxu0 0
        %2689 = vmatpush.bf16.msra.mxu0 0
        %2690 = vmatpush.bf16.msra.mxu0 0
        %2691 = vmatpush.bf16.msra.mxu0 0
        %2692 = vmatpush.bf16.msra.mxu0 0
        %2693 = vmatpush.bf16.msra.mxu0 %v1432
        %2694 = vmatmul.bf16.gmra.mxu0 %v2619
        %v2695 = vpop.f32.mrf.mxu0
        %v2696 = vadd.f32 0.0, %v2695
        %v2697 = vpop.f32.mrf.mxu0
        %2698 = vdwg.mxu0
        %2699 = vmatpush.bf16.msra.mxu0 0
        %2700 = vmatpush.bf16.msra.mxu0 0
        %2701 = vmatpush.bf16.msra.mxu0 0
        %2702 = vmatpush.bf16.msra.mxu0 0
        %2703 = vmatpush.bf16.msra.mxu0 0
        %2704 = vmatpush.bf16.msra.mxu0 0
        %2705 = vmatpush.bf16.msra.mxu0 0
        %2706 = vmatpush.bf16.msra.mxu0 %v1433
        %2707 = vmatmul.bf16.gmra.mxu0 %v2619
        %v2708 = vpop.f32.mrf.mxu0
        %v2709 = vadd.f32 0.0, %v2708
        %v2710 = vpop.f32.mrf.mxu0
        %2711 = vdwg.mxu0
        %2712 = vmatpush.bf16.msra.mxu0 0
        %2713 = vmatpush.bf16.msra.mxu0 0
        %2714 = vmatpush.bf16.msra.mxu0 0
        %2715 = vmatpush.bf16.msra.mxu0 0
        %2716 = vmatpush.bf16.msra.mxu0 0
        %2717 = vmatpush.bf16.msra.mxu0 0
        %2718 = vmatpush.bf16.msra.mxu0 0
        %2719 = vmatpush.bf16.msra.mxu0 %v1434
        %2720 = vmatmul.bf16.gmra.mxu0 %v2619
        %v2721 = vpop.f32.mrf.mxu0
        %v2722 = vadd.f32 0.0, %v2721
        %v2723 = vpop.f32.mrf.mxu0
        %2724 = vdwg.mxu0
        %v2726 = vsel %vm1975, %v1974, 0
        %2728 = vmatpush.bf16.msra.mxu0 0
        %2729 = vmatpush.bf16.msra.mxu0 0
        %2730 = vmatpush.bf16.msra.mxu0 0
        %2731 = vmatpush.bf16.msra.mxu0 0
        %2732 = vmatpush.bf16.msra.mxu0 0
        %2733 = vmatpush.bf16.msra.mxu0 0
        %2734 = vmatpush.bf16.msra.mxu0 0
        %2735 = vmatpush.bf16.msra.mxu0 %v1589
        %2736 = vmatmul.bf16.gmra.mxu0 %v2726
        %v2737 = vpop.f32.mrf.mxu0
        %v2738 = vadd.f32 0.0, %v2737
        %v2739 = vpop.f32.mrf.mxu0
        %2740 = vdwg.mxu0
        %2741 = vmatpush.bf16.msra.mxu0 0
        %2742 = vmatpush.bf16.msra.mxu0 0
        %2743 = vmatpush.bf16.msra.mxu0 0
        %2744 = vmatpush.bf16.msra.mxu0 0
        %2745 = vmatpush.bf16.msra.mxu0 0
        %2746 = vmatpush.bf16.msra.mxu0 0
        %2747 = vmatpush.bf16.msra.mxu0 0
        %2748 = vmatpush.bf16.msra.mxu0 %v1590
        %2749 = vmatmul.bf16.gmra.mxu0 %v2726
        %v2750 = vpop.f32.mrf.mxu0
        %v2751 = vadd.f32 0.0, %v2750
        %v2752 = vpop.f32.mrf.mxu0
        %2753 = vdwg.mxu0
        %2754 = vmatpush.bf16.msra.mxu0 0
        %2755 = vmatpush.bf16.msra.mxu0 0
        %2756 = vmatpush.bf16.msra.mxu0 0
        %2757 = vmatpush.bf16.msra.mxu0 0
        %2758 = vmatpush.bf16.msra.mxu0 0
        %2759 = vmatpush.bf16.msra.mxu0 0
        %2760 = vmatpush.bf16.msra.mxu0 0
        %2761 = vmatpush.bf16.msra.mxu0 %v1591
        %2762 = vmatmul.bf16.gmra.mxu0 %v2726
        %v2763 = vpop.f32.mrf.mxu0
        %v2764 = vadd.f32 0.0, %v2763
        %v2765 = vpop.f32.mrf.mxu0
        %2766 = vdwg.mxu0
        %2767 = vmatpush.bf16.msra.mxu0 0
        %2768 = vmatpush.bf16.msra.mxu0 0
        %2769 = vmatpush.bf16.msra.mxu0 0
        %2770 = vmatpush.bf16.msra.mxu0 0
        %2771 = vmatpush.bf16.msra.mxu0 0
        %2772 = vmatpush.bf16.msra.mxu0 0
        %2773 = vmatpush.bf16.msra.mxu0 0
        %2774 = vmatpush.bf16.msra.mxu0 %v1592
        %2775 = vmatmul.bf16.gmra.mxu0 %v2726
        %v2776 = vpop.f32.mrf.mxu0
        %v2777 = vadd.f32 0.0, %v2776
        %v2778 = vpop.f32.mrf.mxu0
        %2779 = vdwg.mxu0
        %2780 = vmatpush.bf16.msra.mxu0 0
        %2781 = vmatpush.bf16.msra.mxu0 0
        %2782 = vmatpush.bf16.msra.mxu0 0
        %2783 = vmatpush.bf16.msra.mxu0 0
        %2784 = vmatpush.bf16.msra.mxu0 0
        %2785 = vmatpush.bf16.msra.mxu0 0
        %2786 = vmatpush.bf16.msra.mxu0 0
        %2787 = vmatpush.bf16.msra.mxu0 %v1593
        %2788 = vmatmul.bf16.gmra.mxu0 %v2726
        %v2789 = vpop.f32.mrf.mxu0
        %v2790 = vadd.f32 0.0, %v2789
        %v2791 = vpop.f32.mrf.mxu0
        %2792 = vdwg.mxu0
        %2793 = vmatpush.bf16.msra.mxu0 0
        %2794 = vmatpush.bf16.msra.mxu0 0
        %2795 = vmatpush.bf16.msra.mxu0 0
        %2796 = vmatpush.bf16.msra.mxu0 0
        %2797 = vmatpush.bf16.msra.mxu0 0
        %2798 = vmatpush.bf16.msra.mxu0 0
        %2799 = vmatpush.bf16.msra.mxu0 0
        %2800 = vmatpush.bf16.msra.mxu0 %v1594
        %2801 = vmatmul.bf16.gmra.mxu0 %v2726
        %v2802 = vpop.f32.mrf.mxu0
        %v2803 = vadd.f32 0.0, %v2802
        %v2804 = vpop.f32.mrf.mxu0
        %2805 = vdwg.mxu0
        %2806 = vmatpush.bf16.msra.mxu0 0
        %2807 = vmatpush.bf16.msra.mxu0 0
        %2808 = vmatpush.bf16.msra.mxu0 0
        %2809 = vmatpush.bf16.msra.mxu0 0
        %2810 = vmatpush.bf16.msra.mxu0 0
        %2811 = vmatpush.bf16.msra.mxu0 0
        %2812 = vmatpush.bf16.msra.mxu0 0
        %2813 = vmatpush.bf16.msra.mxu0 %v1595
        %2814 = vmatmul.bf16.gmra.mxu0 %v2726
        %v2815 = vpop.f32.mrf.mxu0
        %v2816 = vadd.f32 0.0, %v2815
        %v2817 = vpop.f32.mrf.mxu0
        %2818 = vdwg.mxu0
        %2819 = vmatpush.bf16.msra.mxu0 0
        %2820 = vmatpush.bf16.msra.mxu0 0
        %2821 = vmatpush.bf16.msra.mxu0 0
        %2822 = vmatpush.bf16.msra.mxu0 0
        %2823 = vmatpush.bf16.msra.mxu0 0
        %2824 = vmatpush.bf16.msra.mxu0 0
        %2825 = vmatpush.bf16.msra.mxu0 0
        %2826 = vmatpush.bf16.msra.mxu0 %v1596
        %2827 = vmatmul.bf16.gmra.mxu0 %v2726
        %v2828 = vpop.f32.mrf.mxu0
        %v2829 = vadd.f32 0.0, %v2828
        %v2830 = vpop.f32.mrf.mxu0
        %2831 = vdwg.mxu0
        %v2896 = vrot.slane %v2002, 7
        %v2897 = vrot.slane %v2015, 6
        %v2898 = vrot.slane %v2028, 5
        %v2899 = vrot.slane %v2041, 4
        %v2900 = vrot.slane %v2054, 3
        %v2901 = vrot.slane %v2067, 2
        %v2902 = vrot.slane %v2080, 1
        %v2903 = vrot.slane %v2109, 7
        %v2904 = vrot.slane %v2122, 6
        %v2905 = vrot.slane %v2135, 5
        %v2906 = vrot.slane %v2148, 4
        %v2907 = vrot.slane %v2161, 3
        %v2908 = vrot.slane %v2174, 2
        %v2909 = vrot.slane %v2187, 1
        %v2910 = vrot.slane %v2216, 7
        %v2911 = vrot.slane %v2229, 6
        %v2912 = vrot.slane %v2242, 5
        %v2913 = vrot.slane %v2255, 4
        %v2914 = vrot.slane %v2268, 3
        %v2915 = vrot.slane %v2281, 2
        %v2916 = vrot.slane %v2294, 1
        %v2917 = vrot.slane %v2323, 7
        %v2918 = vrot.slane %v2336, 6
        %v2919 = vrot.slane %v2349, 5
        %v2920 = vrot.slane %v2362, 4
        %v2921 = vrot.slane %v2375, 3
        %v2922 = vrot.slane %v2388, 2
        %v2923 = vrot.slane %v2401, 1
        %v2924 = vrot.slane %v2430, 7
        %v2925 = vrot.slane %v2443, 6
        %v2926 = vrot.slane %v2456, 5
        %v2927 = vrot.slane %v2469, 4
        %v2928 = vrot.slane %v2482, 3
        %v2929 = vrot.slane %v2495, 2
        %v2930 = vrot.slane %v2508, 1
        %v2931 = vrot.slane %v2537, 7
        %v2932 = vrot.slane %v2550, 6
        %v2933 = vrot.slane %v2563, 5
        %v2934 = vrot.slane %v2576, 4
        %v2935 = vrot.slane %v2589, 3
        %v2936 = vrot.slane %v2602, 2
        %v2937 = vrot.slane %v2615, 1
        %v2938 = vrot.slane %v2644, 7
        %v2939 = vrot.slane %v2657, 6
        %v2940 = vrot.slane %v2670, 5
        %v2941 = vrot.slane %v2683, 4
        %v2942 = vrot.slane %v2696, 3
        %v2943 = vrot.slane %v2709, 2
        %v2944 = vrot.slane %v2722, 1
        %v2945 = vrot.slane %v2751, 7
        %v2946 = vrot.slane %v2764, 6
        %v2947 = vrot.slane %v2777, 5
        %v2948 = vrot.slane %v2790, 4
        %v2949 = vrot.slane %v2803, 3
        %v2950 = vrot.slane %v2816, 2
        %v2951 = vrot.slane %v2829, 1
        %vm2952 = vcmask 1040384
        %v2953 = vsel %vm2952, %v1989, %v2896
        %vm2954 = vcmask 1042434
        %v2955 = vsel %vm2954, %v2897, %v2898
        %vm2956 = vcmask 1041408
        %v2957 = vsel %vm2956, %v2953, %v2955
        %vm2958 = vcmask 1044484
        %v2959 = vsel %vm2958, %v2899, %v2900
        %vm2960 = vcmask 1046534
        %v2961 = vsel %vm2960, %v2901, %v2902
        %vm2962 = vcmask 1045508
        %v2963 = vsel %vm2962, %v2959, %v2961
        %vm2964 = vcmask 1043456
        %v2965 = vsel %vm2964, %v2957, %v2963
        %v2966 = vsel %vm2952, %v2096, %v2903
        %v2967 = vsel %vm2954, %v2904, %v2905
        %v2968 = vsel %vm2956, %v2966, %v2967
        %v2969 = vsel %vm2958, %v2906, %v2907
        %v2970 = vsel %vm2960, %v2908, %v2909
        %v2971 = vsel %vm2962, %v2969, %v2970
        %v2972 = vsel %vm2964, %v2968, %v2971
        %v2973 = vsel %vm2952, %v2203, %v2910
        %v2974 = vsel %vm2954, %v2911, %v2912
        %v2975 = vsel %vm2956, %v2973, %v2974
        %v2976 = vsel %vm2958, %v2913, %v2914
        %v2977 = vsel %vm2960, %v2915, %v2916
        %v2978 = vsel %vm2962, %v2976, %v2977
        %v2979 = vsel %vm2964, %v2975, %v2978
        %v2980 = vsel %vm2952, %v2310, %v2917
        %v2981 = vsel %vm2954, %v2918, %v2919
        %v2982 = vsel %vm2956, %v2980, %v2981
        %v2983 = vsel %vm2958, %v2920, %v2921
        %v2984 = vsel %vm2960, %v2922, %v2923
        %v2985 = vsel %vm2962, %v2983, %v2984
        %v2986 = vsel %vm2964, %v2982, %v2985
        %v2987 = vsel %vm2952, %v2417, %v2924
        %v2988 = vsel %vm2954, %v2925, %v2926
        %v2989 = vsel %vm2956, %v2987, %v2988
        %v2990 = vsel %vm2958, %v2927, %v2928
        %v2991 = vsel %vm2960, %v2929, %v2930
        %v2992 = vsel %vm2962, %v2990, %v2991
        %v2993 = vsel %vm2964, %v2989, %v2992
        %v2994 = vsel %vm2952, %v2524, %v2931
        %v2995 = vsel %vm2954, %v2932, %v2933
        %v2996 = vsel %vm2956, %v2994, %v2995
        %v2997 = vsel %vm2958, %v2934, %v2935
        %v2998 = vsel %vm2960, %v2936, %v2937
        %v2999 = vsel %vm2962, %v2997, %v2998
        %v3000 = vsel %vm2964, %v2996, %v2999
        %v3001 = vsel %vm2952, %v2631, %v2938
        %v3002 = vsel %vm2954, %v2939, %v2940
        %v3003 = vsel %vm2956, %v3001, %v3002
        %v3004 = vsel %vm2958, %v2941, %v2942
        %v3005 = vsel %vm2960, %v2943, %v2944
        %v3006 = vsel %vm2962, %v3004, %v3005
        %v3007 = vsel %vm2964, %v3003, %v3006
        %v3008 = vsel %vm2952, %v2738, %v2945
        %v3009 = vsel %vm2954, %v2946, %v2947
        %v3010 = vsel %vm2956, %v3008, %v3009
        %v3011 = vsel %vm2958, %v2948, %v2949
        %v3012 = vsel %vm2960, %v2950, %v2951
        %v3013 = vsel %vm2962, %v3011, %v3012
        %v3014 = vsel %vm2964, %v3010, %v3013
        %v3023 = vadd.f32 %v1959, %v2965
        %v3024 = vadd.f32 %v1960, %v2972
        %v3025 = vadd.f32 %v1961, %v2979
        %v3026 = vadd.f32 %v1962, %v2986
        %v3027 = vadd.f32 %v1963, %v2993
        %v3028 = vadd.f32 %v1964, %v3000
        %v3029 = vadd.f32 %v1965, %v3007
        %v3030 = vadd.f32 %v1966, %v3014
        %3031 = vst [vmem:[#allocation4] sm:$0xff] %v3023
        %3032 = vst [vmem:[#allocation4 + $0x8] sm:$0xff] %v3024
        %3033 = vst [vmem:[#allocation4 + $0x10] sm:$0xff] %v3025
        %3034 = vst [vmem:[#allocation4 + $0x18] sm:$0xff] %v3026
        %3035 = vst [vmem:[#allocation4 + $0x20] sm:$0xff] %v3027
        %3036 = vst [vmem:[#allocation4 + $0x28] sm:$0xff] %v3028
        %3037 = vst [vmem:[#allocation4 + $0x30] sm:$0xff] %v3029
        %3038 = vst [vmem:[#allocation4 + $0x38] sm:$0xff] %v3030
        %3039 = vst.msk [vmem:[#allocation2] sm:$0x1] %vm1894, %v1742
        %3040 = vst.msk [vmem:[#allocation2 + $0x1] sm:$0x1] %vm1894, %v1743
        %3041 = vst.msk [vmem:[#allocation2 + $0x2] sm:$0x1] %vm1894, %v1744
        %3042 = vst.msk [vmem:[#allocation2 + $0x3] sm:$0x1] %vm1894, %v1745
        %3043 = vst.msk [vmem:[#allocation2 + $0x4] sm:$0x1] %vm1894, %v1746
        %3044 = vst.msk [vmem:[#allocation2 + $0x5] sm:$0x1] %vm1894, %v1747
        %3045 = vst.msk [vmem:[#allocation2 + $0x6] sm:$0x1] %vm1894, %v1748
        %3046 = vst.msk [vmem:[#allocation2 + $0x7] sm:$0x1] %vm1894, %v1749
        %p3047 = scmp.eq.s32.totalorder %s18, 1
        // Predicated region
        $region56: #{_lambda_.2} parent=46 // pred_check
          %p3048 = pneg %p3047
        $region57: #{_lambda_.2} parent=46 // pred_check_branch
          %3050 = sbr.rel (%p3048) target = $region59
        $region58: #{_lambda_.2} parent=46 // pred_region
          %v3051 = vld [vmem:[#allocation4] sm:$0xff]
          %v3052 = vld [vmem:[#allocation4 + $0x8] sm:$0xff]
          %v3053 = vld [vmem:[#allocation4 + $0x10] sm:$0xff]
          %v3054 = vld [vmem:[#allocation4 + $0x18] sm:$0xff]
          %v3055 = vld [vmem:[#allocation4 + $0x20] sm:$0xff]
          %v3056 = vld [vmem:[#allocation4 + $0x28] sm:$0xff]
          %v3057 = vld [vmem:[#allocation4 + $0x30] sm:$0xff]
          %v3058 = vld [vmem:[#allocation4 + $0x38] sm:$0xff]
          %v3059 = vld [vmem:[#allocation3] sm:$0x1]
          %v3060 = vld [vmem:[#allocation3 + $0x1] sm:$0x1]
          %v3061 = vld [vmem:[#allocation3 + $0x2] sm:$0x1]
          %v3062 = vld [vmem:[#allocation3 + $0x3] sm:$0x1]
          %v3063 = vld [vmem:[#allocation3 + $0x4] sm:$0x1]
          %v3064 = vld [vmem:[#allocation3 + $0x5] sm:$0x1]
          %v3065 = vld [vmem:[#allocation3 + $0x6] sm:$0x1]
          %v3066 = vld [vmem:[#allocation3 + $0x7] sm:$0x1]
          %v3067 = vrcp.pop %v3059
          %v3068 = vrcp.pop %v3060
          %v3069 = vrcp.pop %v3061
          %v3070 = vrcp.pop %v3062
          %v3071 = vrcp.pop %v3063
          %v3072 = vrcp.pop %v3064
          %v3073 = vrcp.pop %v3065
          %v3074 = vrcp.pop %v3066
          %3076 = vset.pattern.permute.xlu0 0
          %3077 = vperm.xlu0 %3076, %v3067
          %v3078 = vpop.permute.xlu0 %3077
          %v3080 = vperm.slane %v3078, 0
          %3082 = vset.pattern.permute.xlu0 0
          %3083 = vperm.xlu0 %3082, %v3068
          %v3084 = vpop.permute.xlu0 %3083
          %v3086 = vperm.slane %v3084, 0
          %3088 = vset.pattern.permute.xlu0 0
          %3089 = vperm.xlu0 %3088, %v3069
          %v3090 = vpop.permute.xlu0 %3089
          %v3092 = vperm.slane %v3090, 0
          %3094 = vset.pattern.permute.xlu0 0
          %3095 = vperm.xlu0 %3094, %v3070
          %v3096 = vpop.permute.xlu0 %3095
          %v3098 = vperm.slane %v3096, 0
          %3100 = vset.pattern.permute.xlu0 0
          %3101 = vperm.xlu0 %3100, %v3071
          %v3102 = vpop.permute.xlu0 %3101
          %v3104 = vperm.slane %v3102, 0
          %3106 = vset.pattern.permute.xlu0 0
          %3107 = vperm.xlu0 %3106, %v3072
          %v3108 = vpop.permute.xlu0 %3107
          %v3110 = vperm.slane %v3108, 0
          %3112 = vset.pattern.permute.xlu0 0
          %3113 = vperm.xlu0 %3112, %v3073
          %v3114 = vpop.permute.xlu0 %3113
          %v3116 = vperm.slane %v3114, 0
          %3118 = vset.pattern.permute.xlu0 0
          %3119 = vperm.xlu0 %3118, %v3074
          %v3120 = vpop.permute.xlu0 %3119
          %v3122 = vperm.slane %v3120, 0
          %v3123 = vmul.f32 %v3051, %v3080
          %v3124 = vmul.f32 %v3052, %v3086
          %v3125 = vmul.f32 %v3053, %v3092
          %v3126 = vmul.f32 %v3054, %v3098
          %v3127 = vmul.f32 %v3055, %v3104
          %v3128 = vmul.f32 %v3056, %v3110
          %v3129 = vmul.f32 %v3057, %v3116
          %v3130 = vmul.f32 %v3058, %v3122
          %3131 = vst [vmem:[%s309] sm:$0xff] %v3123
          %3132 = vst [vmem:[%s309 + $0x8] sm:$0xff] %v3124
          %3133 = vst [vmem:[%s309 + $0x10] sm:$0xff] %v3125
          %3134 = vst [vmem:[%s309 + $0x18] sm:$0xff] %v3126
          %3135 = vst [vmem:[%s309 + $0x20] sm:$0xff] %v3127
          %3136 = vst [vmem:[%s309 + $0x28] sm:$0xff] %v3128
          %3137 = vst [vmem:[%s309 + $0x30] sm:$0xff] %v3129
          %3138 = vst [vmem:[%s309 + $0x38] sm:$0xff] %v3130
        $region59: #{_lambda_.2} parent=46 // pred_fallthru
          _
        %s3139 = smul.u32 8, %s17
        %p3140 = scmp.lt.s32.totalorder %s3139, 15
        %s3141 = scalar_select %p3140, %s3139, 15
        %s3142 = smul.addr %s3141, 8
        %s3143 = scalar_lea.vmem %s2, %s3142
        // Predicated region
        $region60: #{_lambda_.2} parent=46 // pred_check
          %p3144 = pneg %p92
        $region61: #{_lambda_.2} parent=46 // pred_check_branch
          %3146 = sbr.rel (%p3144) target = $region63
        $region62: #{_lambda_.2} parent=46 // pred_region
          %s3147 = smul.u32 8, %s17
        $region63: #{_lambda_.2} parent=46 // pred_fallthru
          _
      $region47: #{_lambda_.2} parent=5 // pred_fallthru
        _
      %p3148 = scmp.le.s32.totalorder 2, %s8
      // Predicated region
      $region64: #{_lambda_.2} parent=5 // pred_check
        %p3149 = pneg %p3148
      $region65: #{_lambda_.2} parent=5 // pred_check_branch
        %3151 = sbr.rel (%p3149) target = $region67
      $region66: #{_lambda_.2} parent=5 // pred_region
        %s3152 = ssub.s32 %s8, 2
        // Predicated region
        $region68: #{_lambda_.2} parent=66 // pred_check
          %p3153 = pneg %p98
        $region69: #{_lambda_.2} parent=66 // pred_check_branch
          %3155 = sbr.rel (%p3153) target = $region71
        $region70: #{_lambda_.2} parent=66 // pred_region
          %s3156 = smul.u32 8, %s19
          %p3157 = scmp.lt.s32.totalorder %s3156, 15
          %s3158 = scalar_select %p3157, %s3156, 15
          %s3159 = smul.addr %s3158, 8
          %s3160 = scalar_lea.vmem %s2, %s3159
        $region71: #{_lambda_.2} parent=66 // pred_fallthru
          _
      $region67: #{_lambda_.2} parent=5 // pred_fallthru
        _
    $region6: #{_lambda_.2} parent=1 // loop_footer
      %s12 = sadd.s32 1, %s8
    $region7: #{_lambda_.2} parent=1 // loop_footer_branch
      %7 = sbr.rel target = $region3
    $region8: #{_lambda_.2} parent=1 // loop_exit
      _

</llo_original>
